<compile_context>
chip_gen: v7x
topology: tpu7x:2x2x1
jax: 0.10.0
libtpu: 0.0.40
codegen_flags: <defaults>
</compile_context>

<pallas_src>
import functools
from types import SimpleNamespace

import jax
import jax.numpy as jnp
import numpy as np
from jax.experimental import pallas as pl
from jax.experimental.pallas import tpu as pltpu

COMPUTE_DTYPE = jnp.bfloat16  # MXU operand dtype; accumulation is always f32.


# ---------------------------------------------------------------------------
# Numerics helpers (only exp / mul / add / where -> always lowers in Mosaic)
# ---------------------------------------------------------------------------
def _erf(x):
    # Abramowitz & Stegun 7.1.26 polynomial, |err| < 1.5e-7 (effectively exact
    # GELU without depending on a lax.erf lowering inside the kernel).
    a1, a2, a3, a4, a5 = (0.254829592, -0.284496736, 1.421413741,
                          -1.453152027, 1.061405429)
    sign = jnp.where(x >= 0.0, 1.0, -1.0)
    ax = jnp.abs(x)
    t = 1.0 / (1.0 + 0.3275911 * ax)
    poly = ((((a5 * t + a4) * t + a3) * t + a2) * t + a1) * t
    return sign * (1.0 - poly * jnp.exp(-ax * ax))


def _gelu(x):
    return 0.5 * x * (1.0 + _erf(x * 0.7071067811865476))


# ---------------------------------------------------------------------------
# Kernel 1: tiled, lane-dense linear  y = x @ w + b
# ---------------------------------------------------------------------------
def _linear_kernel(x_ref, w_ref, b_ref, o_ref):
    y = jnp.dot(x_ref[...], w_ref[...], preferred_element_type=jnp.float32)
    o_ref[...] = (y + b_ref[...]).astype(o_ref.dtype)


def pallas_linear(x, w, b, *, block_m=256):
    """x:(M,K) any float, w:(K,N) bf16, b:(N,) f32 -> (M,N) f32, tiled over M."""
    M, K = x.shape
    N = w.shape[1]
    x = x.astype(w.dtype)
    tm = min(block_m, M)
    if tm % 8 != 0 or M % tm != 0:      # obey the (8,128)/full-dim block rule
        tm = M
    cost = pl.CostEstimate(
        flops=2 * M * K * N,
        transcendentals=0,
        bytes_accessed=M * K * x.dtype.itemsize + K * N * w.dtype.itemsize
        + N * 4 + M * N * 4)
    return pl.pallas_call(
        _linear_kernel,
        out_shape=jax.ShapeDtypeStruct((M, N), jnp.float32),
        grid=(M // tm,),
        in_specs=[
            pl.BlockSpec((tm, K), lambda i: (i, 0)),
            pl.BlockSpec((K, N), lambda i: (0, 0)),
            pl.BlockSpec((1, N), lambda i: (0, 0)),
        ],
        out_specs=pl.BlockSpec((tm, N), lambda i: (i, 0)),
        compiler_params=pltpu.CompilerParams(dimension_semantics=("parallel",)),
        cost_estimate=cost,
    )(x, w, b.reshape(1, N))


# ---------------------------------------------------------------------------
# Kernel 2: fused transformer encoder (all layers, residual attention)
# ---------------------------------------------------------------------------
def _encoder_kernel(src_ref, wqkv_ref, bqkv_ref, wo_ref, bo_ref,
                    w1_ref, b1_ref, w2_ref, b2_ref,
                    out_ref, prev_ref, *,
                    n_heads, scale, bn_scale, cdt):
    layer = pl.program_id(1)

    @pl.when(layer == 0)
    def _init():
        out_ref[...] = src_ref[...]                  # residual stream lives in out block
        prev_ref[...] = jnp.zeros_like(prev_ref)     # residual scores live in VMEM

    G, S, D = out_ref.shape
    Dh = D // n_heads

    wqkv, bqkv = wqkv_ref[0], bqkv_ref[0]
    wo, bo = wo_ref[0], bo_ref[0]
    w1, b1 = w1_ref[0], b1_ref[0]
    w2, b2 = w2_ref[0], b2_ref[0]

    for g in range(G):                               # static unroll over samples in block
        x = out_ref[g]                               # (S, D) f32
        # fused QKV projection: one lane-dense (S, 3D) matmul
        qkv = jnp.dot(x.astype(cdt), wqkv,
                      preferred_element_type=jnp.float32) + bqkv
        heads = []
        for h in range(n_heads):                     # heads packed on the lane axis
            lo = h * Dh
            q = qkv[:, lo:lo + Dh].astype(cdt)
            k = qkv[:, D + lo:D + lo + Dh].astype(cdt)
            v = qkv[:, 2 * D + lo:2 * D + lo + Dh].astype(cdt)
            s = jax.lax.dot_general(q, k, (((1,), (1,)), ((), ())),
                                    preferred_element_type=jnp.float32) * scale
            s = s + prev_ref[g, h]                   # res_attention (zeros at layer 0)
            prev_ref[g, h] = s                       # never leaves VMEM
            m = jnp.max(s, axis=-1, keepdims=True)
            e = jnp.exp(s - m)
            p = e * pl.reciprocal(jnp.sum(e, axis=-1, keepdims=True), approx=True)
            heads.append(jnp.dot(p.astype(cdt), v,
                                 preferred_element_type=jnp.float32))
        attn = jnp.concatenate(heads, axis=-1)       # (S, D) f32
        attn = jnp.dot(attn.astype(cdt), wo,
                       preferred_element_type=jnp.float32) + bo
        x = (x + attn) * bn_scale                    # residual + eval-mode BatchNorm
        ff = jnp.dot(x.astype(cdt), w1,
                     preferred_element_type=jnp.float32) + b1
        ff = _gelu(ff)
        ff = jnp.dot(ff.astype(cdt), w2,
                     preferred_element_type=jnp.float32) + b2
        out_ref[g] = (x + ff) * bn_scale


def _choose_group(bc, s, max_rows=512):
    """Samples per grid block: divisor of BC, big enough to amortize the
    ~0.35us/step grid overhead, small enough to keep >=2 blocks so the
    "parallel" axis can shard across v7x's two TensorCores."""
    divisors = [g for g in range(1, bc + 1) if bc % g == 0 and g * s <= max_rows]
    if not divisors:
        return 1
    multi = [g for g in divisors if bc // g >= 2]
    return max(multi) if multi else max(divisors)


def pallas_encoder(src, ep, *, n_heads, bn_eps=1e-5):
    BC, S, D = src.shape
    n_layers, _, dff = ep["w1"].shape
    d_head = D // n_heads
    G = _choose_group(BC, S)
    scale = float(d_head) ** -0.5                    # Python floats -> static
    bn_scale = float(1.0 / np.sqrt(1.0 + bn_eps))

    per_sample_layer_flops = (2 * S * D * 3 * D + 4 * S * S * D
                              + 2 * S * D * D + 4 * S * D * dff)
    cost = pl.CostEstimate(
        flops=n_layers * BC * per_sample_layer_flops,
        transcendentals=n_layers * BC * S * (n_heads * S + dff),
        bytes_accessed=2 * BC * S * D * 4
        + n_layers * (3 * D * D + D * D + 2 * D * dff) * 2)

    kernel = functools.partial(_encoder_kernel, n_heads=n_heads, scale=scale,
                               bn_scale=bn_scale, cdt=COMPUTE_DTYPE)
    return pl.pallas_call(
        kernel,
        out_shape=jax.ShapeDtypeStruct((BC, S, D), jnp.float32),
        grid=(BC // G, n_layers),
        in_specs=[
            pl.BlockSpec((G, S, D), lambda i, l: (i, 0, 0)),
            pl.BlockSpec((1, D, 3 * D), lambda i, l: (l, 0, 0)),
            pl.BlockSpec((1, 1, 3 * D), lambda i, l: (l, 0, 0)),
            pl.BlockSpec((1, D, D), lambda i, l: (l, 0, 0)),
            pl.BlockSpec((1, 1, D), lambda i, l: (l, 0, 0)),
            pl.BlockSpec((1, D, dff), lambda i, l: (l, 0, 0)),
            pl.BlockSpec((1, 1, dff), lambda i, l: (l, 0, 0)),
            pl.BlockSpec((1, dff, D), lambda i, l: (l, 0, 0)),
            pl.BlockSpec((1, 1, D), lambda i, l: (l, 0, 0)),
        ],
        out_specs=pl.BlockSpec((G, S, D), lambda i, l: (i, 0, 0)),
        scratch_shapes=[pltpu.VMEM((G, n_heads, S, S), jnp.float32)],
        compiler_params=pltpu.CompilerParams(
            dimension_semantics=("parallel", "arbitrary")),
        cost_estimate=cost,
    )(src, ep["wqkv"], ep["bqkv"], ep["wo"], ep["bo"],
      ep["w1"], ep["b1"], ep["w2"], ep["b2"])


# ---------------------------------------------------------------------------
# Parameter construction (deterministic, synthetic); weights pre-cast to bf16
# ---------------------------------------------------------------------------
def init_params(cfg, key):
    D, dff, Lyr, P = cfg.d_model, cfg.d_ff, cfg.e_layers, cfg.patch_len
    S = (cfg.seq_len - P) // cfg.stride + 1
    if cfg.padding_patch == "end":
        S += 1

    def dense(k, fan_in, fan_out):
        kw, _ = jax.random.split(k)
        w = jax.random.normal(kw, (fan_in, fan_out), jnp.float32) * 0.02
        return w, jnp.zeros((fan_out,), jnp.float32)

    keys = jax.random.split(key, 3 + Lyr)
    w_p, b_p = dense(keys[0], P, D)
    w_pos = jax.random.uniform(keys[1], (S, D), jnp.float32, -0.02, 0.02)
    w_head, b_head = dense(keys[2], D * S, cfg.pred_len)
    # Permute head-weight rows from the PyTorch Flatten(-2) ordering
    # (row = d * patch_num + s) to our row-major (row = s * d_model + d)
    # activation layout, so no runtime transpose is needed before the head.
    w_head = jnp.transpose(w_head.reshape(D, S, cfg.pred_len),
                           (1, 0, 2)).reshape(S * D, cfg.pred_len)

    wqkv, bqkv, wo, bo, w1, b1, w2, b2 = ([] for _ in range(8))
    for li in range(Lyr):
        lk = jax.random.split(keys[3 + li], 6)
        wq, bq = dense(lk[0], D, D)
        wk, bk = dense(lk[1], D, D)
        wv, bv = dense(lk[2], D, D)
        wqkv.append(jnp.concatenate([wq, wk, wv], axis=1))
        bqkv.append(jnp.concatenate([bq, bk, bv], axis=0)[None, :])
        w, b = dense(lk[3], D, D);   wo.append(w); bo.append(b[None, :])
        w, b = dense(lk[4], D, dff); w1.append(w); b1.append(b[None, :])
        w, b = dense(lk[5], dff, D); w2.append(w); b2.append(b[None, :])

    params = {
        "W_P": {"w": w_p.astype(COMPUTE_DTYPE), "b": b_p},
        "W_pos": w_pos,
        "head": {"w": w_head.astype(COMPUTE_DTYPE), "b": b_head},
        "enc": {
            "wqkv": jnp.stack(wqkv).astype(COMPUTE_DTYPE), "bqkv": jnp.stack(bqkv),
            "wo": jnp.stack(wo).astype(COMPUTE_DTYPE),     "bo": jnp.stack(bo),
            "w1": jnp.stack(w1).astype(COMPUTE_DTYPE),     "b1": jnp.stack(b1),
            "w2": jnp.stack(w2).astype(COMPUTE_DTYPE),     "b2": jnp.stack(b2),
        },
    }
    return params, S


# ---------------------------------------------------------------------------
# Forward pass (JAX glue + Pallas kernels)
# ---------------------------------------------------------------------------
def seasonal_block_forward(x, params, cfg, patch_num):
    """x: (B, seq_len, C) f32 -> (B, pred_len, C) f32."""
    B, _, C = x.shape
    D, H, S = cfg.d_model, cfg.n_heads, patch_num
    eps = 1e-5

    # SeasonalBlock: permute to (B, C, L)
    z = jnp.transpose(x, (0, 2, 1))

    # RevIN normalize (revin=1, affine=0, subtract_last=0; biased variance)
    mean = jnp.mean(z, axis=-1, keepdims=True)
    std = jnp.sqrt(jnp.var(z, axis=-1, keepdims=True) + eps)
    z = (z - mean) / std

    # patching (padding_patch='end': replicate last value by `stride`)
    pad = jnp.repeat(z[..., -1:], cfg.stride, axis=-1)
    zp = jnp.concatenate([z, pad], axis=-1)                      # (B, C, L+stride)
    starts = np.arange(S) * cfg.stride
    patches = jnp.stack([zp[..., s0:s0 + cfg.patch_len] for s0 in starts], axis=2)

    # patch embedding (channel independent) + positional encoding
    BC = B * C
    flat = patches.reshape(BC * S, cfg.patch_len)
    emb = pallas_linear(flat, params["W_P"]["w"], params["W_P"]["b"])  # (BC*S, D) f32
    src = emb.reshape(BC, S, D) + params["W_pos"][None]                # dropout=0 -> no-op

    # fused transformer encoder (all layers, residual attention in VMEM)
    enc = pallas_encoder(src, params["enc"], n_heads=H)                # (BC, S, D) f32

    # flatten head (weight rows pre-permuted at init -> no runtime transpose)
    y = pallas_linear(enc.reshape(BC, S * D),
                      params["head"]["w"], params["head"]["b"])        # (BC, pred_len)
    y = y.reshape(B, C, cfg.pred_len)

    # RevIN denormalize, then permute back to (B, pred_len, C)
    y = y * std + mean
    return jnp.transpose(y, (0, 2, 1))


# ---------------------------------------------------------------------------
if __name__ == "__main__":
    cfg = SimpleNamespace(
        target_num=4, seq_len=16, pred_len=8, e_layers=2, n_heads=2,
        d_model=32, d_ff=64, dropout=0.0, fc_dropout=0.0, head_dropout=0.0,
        individual=False, add=True, wo_conv=True, serial_conv=False,
        kernel_list=[3, 5], patch_len=4, period=[4], scale_weight=[1.0],
        stride=4, padding_patch="end", revin=1, affine=0, subtract_last=0,
    )

    key = jax.random.PRNGKey(0)
    kx, kp = jax.random.split(key)
    B = 2
    x = jax.random.normal(kx, (B, cfg.seq_len, cfg.target_num), jnp.float32)

    params, patch_num = init_params(cfg, kp)

    fwd = jax.jit(functools.partial(seasonal_block_forward,
                                    cfg=cfg, patch_num=patch_num))
    out = fwd(x, params)
    jax.block_until_ready(out)

    assert out.shape == (B, cfg.pred_len, cfg.target_num), out.shape
    assert bool(jnp.all(jnp.isfinite(out)))
    print("KERNEL_OK")
</pallas_src>

<mosaic_0001>
module attributes {stable_mosaic.version = 11 : i64} {
  func.func @_linear_kernel(%arg0: i32, %arg1: memref<40x4xbf16, #tpu.memory_space<vmem>>, %arg2: memref<4x32xbf16, #tpu.memory_space<vmem>>, %arg3: memref<1x32xf32, #tpu.memory_space<vmem>>, %arg4: memref<40x32xf32, #tpu.memory_space<vmem>>) attributes {dimension_semantics = [#tpu.dimension_semantics<parallel>], iteration_bounds = array<i64: 1>, scalar_prefetch = 0 : i64, scratch_operands = 0 : i64, tpu.core_type = #tpu.core_type<tc>, window_params = [{transform_indices = @transform_0, window_bounds = array<i64: 40, 4>}, {pipeline_mode = #tpu.pipeline_mode<synchronous>, transform_indices = @transform_1, window_bounds = array<i64: 4, 32>}, {pipeline_mode = #tpu.pipeline_mode<synchronous>, transform_indices = @transform_2, window_bounds = array<i64: 1, 32>}, {transform_indices = @transform_3, window_bounds = array<i64: 40, 32>}]} {
    %c0 = arith.constant 0 : index
    %c0_0 = arith.constant 0 : index
    %0 = vector.load %arg1[%c0, %c0_0] : memref<40x4xbf16, #tpu.memory_space<vmem>>, vector<40x4xbf16>
    %c0_1 = arith.constant 0 : index
    %c0_2 = arith.constant 0 : index
    %1 = vector.load %arg2[%c0_1, %c0_2] : memref<4x32xbf16, #tpu.memory_space<vmem>>, vector<4x32xbf16>
    %cst = arith.constant dense<0.000000e+00> : vector<40x32xf32>
    %2 = tpu.matmul %0, %1, %cst {dimension_numbers = #tpu.dot_dimension_numbers<[1], [0], [0], [1], [0, 0, 1, 1], [], []>} : vector<40x4xbf16>, vector<4x32xbf16>, vector<40x32xf32> -> vector<40x32xf32>
    %c0_3 = arith.constant 0 : index
    %c0_4 = arith.constant 0 : index
    %3 = vector.load %arg3[%c0_3, %c0_4] : memref<1x32xf32, #tpu.memory_space<vmem>>, vector<1x32xf32>
    %4 = vector.broadcast %3 : vector<1x32xf32> to vector<40x32xf32>
    %5 = arith.addf %2, %4 : vector<40x32xf32>
    %c0_5 = arith.constant 0 : index
    %c0_6 = arith.constant 0 : index
    %6 = vector.load %arg4[%c0_5, %c0_6] : memref<40x32xf32, #tpu.memory_space<vmem>>, vector<40x32xf32>
    tpu.vector_store %arg4[%c0_5, %c0_6], %5 {strides = array<i32>} : memref<40x32xf32, #tpu.memory_space<vmem>>, vector<40x32xf32>,
    return
  }
  func.func @transform_0(%arg0: i32) -> (i32, i32) {
    %c0_i32 = arith.constant 0 : i32
    %c0_i32_0 = arith.constant 0 : i32
    return %arg0, %c0_i32 : i32, i32
  }
  func.func @transform_1(%arg0: i32) -> (i32, i32) {
    %c0_i32 = arith.constant 0 : i32
    %c0_i32_0 = arith.constant 0 : i32
    %c0_i32_1 = arith.constant 0 : i32
    return %c0_i32, %c0_i32_0 : i32, i32
  }
  func.func @transform_2(%arg0: i32) -> (i32, i32) {
    %c0_i32 = arith.constant 0 : i32
    %c0_i32_0 = arith.constant 0 : i32
    %c0_i32_1 = arith.constant 0 : i32
    return %c0_i32, %c0_i32_0 : i32, i32
  }
  func.func @transform_3(%arg0: i32) -> (i32, i32) {
    %c0_i32 = arith.constant 0 : i32
    %c0_i32_0 = arith.constant 0 : i32
    return %arg0, %c0_i32 : i32, i32
  }
}

module attributes {stable_mosaic.version = 11 : i64} {
  func.func @_linear_kernel(%arg0: i32, %arg1: memref<8x160xbf16, #tpu.memory_space<vmem>>, %arg2: memref<160x8xbf16, #tpu.memory_space<vmem>>, %arg3: memref<1x8xf32, #tpu.memory_space<vmem>>, %arg4: memref<8x8xf32, #tpu.memory_space<vmem>>) attributes {dimension_semantics = [#tpu.dimension_semantics<parallel>], iteration_bounds = array<i64: 1>, scalar_prefetch = 0 : i64, scratch_operands = 0 : i64, tpu.core_type = #tpu.core_type<tc>, window_params = [{transform_indices = @transform_0, window_bounds = array<i64: 8, 160>}, {pipeline_mode = #tpu.pipeline_mode<synchronous>, transform_indices = @transform_1, window_bounds = array<i64: 160, 8>}, {pipeline_mode = #tpu.pipeline_mode<synchronous>, transform_indices = @transform_2, window_bounds = array<i64: 1, 8>}, {transform_indices = @transform_3, window_bounds = array<i64: 8, 8>}]} {
    %c0 = arith.constant 0 : index
    %c0_0 = arith.constant 0 : index
    %0 = vector.load %arg1[%c0, %c0_0] : memref<8x160xbf16, #tpu.memory_space<vmem>>, vector<8x160xbf16>
    %c0_1 = arith.constant 0 : index
    %c0_2 = arith.constant 0 : index
    %1 = vector.load %arg2[%c0_1, %c0_2] : memref<160x8xbf16, #tpu.memory_space<vmem>>, vector<160x8xbf16>
    %cst = arith.constant dense<0.000000e+00> : vector<8x8xf32>
    %2 = tpu.matmul %0, %1, %cst {dimension_numbers = #tpu.dot_dimension_numbers<[1], [0], [0], [1], [0, 0, 1, 1], [], []>} : vector<8x160xbf16>, vector<160x8xbf16>, vector<8x8xf32> -> vector<8x8xf32>
    %c0_3 = arith.constant 0 : index
    %c0_4 = arith.constant 0 : index
    %3 = vector.load %arg3[%c0_3, %c0_4] : memref<1x8xf32, #tpu.memory_space<vmem>>, vector<1x8xf32>
    %4 = vector.broadcast %3 : vector<1x8xf32> to vector<8x8xf32>
    %5 = arith.addf %2, %4 : vector<8x8xf32>
    %c0_5 = arith.constant 0 : index
    %c0_6 = arith.constant 0 : index
    %6 = vector.load %arg4[%c0_5, %c0_6] : memref<8x8xf32, #tpu.memory_space<vmem>>, vector<8x8xf32>
    tpu.vector_store %arg4[%c0_5, %c0_6], %5 {strides = array<i32>} : memref<8x8xf32, #tpu.memory_space<vmem>>, vector<8x8xf32>,
    return
  }
  func.func @transform_0(%arg0: i32) -> (i32, i32) {
    %c0_i32 = arith.constant 0 : i32
    %c0_i32_0 = arith.constant 0 : i32
    return %arg0, %c0_i32 : i32, i32
  }
  func.func @transform_1(%arg0: i32) -> (i32, i32) {
    %c0_i32 = arith.constant 0 : i32
    %c0_i32_0 = arith.constant 0 : i32
    %c0_i32_1 = arith.constant 0 : i32
    return %c0_i32, %c0_i32_0 : i32, i32
  }
  func.func @transform_2(%arg0: i32) -> (i32, i32) {
    %c0_i32 = arith.constant 0 : i32
    %c0_i32_0 = arith.constant 0 : i32
    %c0_i32_1 = arith.constant 0 : i32
    return %c0_i32, %c0_i32_0 : i32, i32
  }
  func.func @transform_3(%arg0: i32) -> (i32, i32) {
    %c0_i32 = arith.constant 0 : i32
    %c0_i32_0 = arith.constant 0 : i32
    return %arg0, %c0_i32 : i32, i32
  }
}

module attributes {stable_mosaic.version = 11 : i64} {
  func.func @_encoder_kernel(%arg0: i32, %arg1: i32, %arg2: memref<4x5x32xf32, #tpu.memory_space<vmem>>, %arg3: memref<1x32x96xbf16, #tpu.memory_space<vmem>>, %arg4: memref<1x1x96xf32, #tpu.memory_space<vmem>>, %arg5: memref<1x32x32xbf16, #tpu.memory_space<vmem>>, %arg6: memref<1x1x32xf32, #tpu.memory_space<vmem>>, %arg7: memref<1x32x64xbf16, #tpu.memory_space<vmem>>, %arg8: memref<1x1x64xf32, #tpu.memory_space<vmem>>, %arg9: memref<1x64x32xbf16, #tpu.memory_space<vmem>>, %arg10: memref<1x1x32xf32, #tpu.memory_space<vmem>>, %arg11: memref<4x5x32xf32, #tpu.memory_space<vmem>>, %arg12: memref<4x2x5x5xf32, #tpu.memory_space<vmem>>) attributes {dimension_semantics = [#tpu.dimension_semantics<parallel>, #tpu.dimension_semantics<arbitrary>], iteration_bounds = array<i64: 2, 2>, scalar_prefetch = 0 : i64, scratch_operands = 1 : i64, tpu.core_type = #tpu.core_type<tc>, window_params = [{transform_indices = @transform_0, window_bounds = array<i64: 4, 5, 32>}, {transform_indices = @transform_1, window_bounds = array<i64: 1, 32, 96>}, {transform_indices = @transform_2, window_bounds = array<i64: 1, 1, 96>}, {transform_indices = @transform_3, window_bounds = array<i64: 1, 32, 32>}, {transform_indices = @transform_4, window_bounds = array<i64: 1, 1, 32>}, {transform_indices = @transform_5, window_bounds = array<i64: 1, 32, 64>}, {transform_indices = @transform_6, window_bounds = array<i64: 1, 1, 64>}, {transform_indices = @transform_7, window_bounds = array<i64: 1, 64, 32>}, {transform_indices = @transform_8, window_bounds = array<i64: 1, 1, 32>}, {transform_indices = @transform_9, window_bounds = array<i64: 4, 5, 32>}]} {
    %c0_i32 = arith.constant 0 : i32
    %0 = arith.cmpi eq, %arg1, %c0_i32 : i32
    %1 = arith.extui %0 : i1 to i32
    %c0_i32_0 = arith.constant 0 : i32
    %2 = arith.cmpi ne, %1, %c0_i32_0 : i32
    scf.if %2 {
      %c0_236 = arith.constant 0 : index
      %c0_237 = arith.constant 0 : index
      %c0_238 = arith.constant 0 : index
      %511 = vector.load %arg2[%c0_236, %c0_237, %c0_238] : memref<4x5x32xf32, #tpu.memory_space<vmem>>, vector<4x5x32xf32>
      %c0_239 = arith.constant 0 : index
      %c0_240 = arith.constant 0 : index
      %c0_241 = arith.constant 0 : index
      %512 = vector.load %arg11[%c0_239, %c0_240, %c0_241] : memref<4x5x32xf32, #tpu.memory_space<vmem>>, vector<4x5x32xf32>
      tpu.vector_store %arg11[%c0_239, %c0_240, %c0_241], %511 {strides = array<i32>} : memref<4x5x32xf32, #tpu.memory_space<vmem>>, vector<4x5x32xf32>,
      %cst_242 = arith.constant 0.000000e+00 : f32
      %513 = vector.broadcast %cst_242 : f32 to vector<4x2x5x5xf32>
      %c0_243 = arith.constant 0 : index
      %c0_244 = arith.constant 0 : index
      %c0_245 = arith.constant 0 : index
      %c0_246 = arith.constant 0 : index
      %514 = vector.load %arg12[%c0_243, %c0_244, %c0_245, %c0_246] : memref<4x2x5x5xf32, #tpu.memory_space<vmem>>, vector<4x2x5x5xf32>
      tpu.vector_store %arg12[%c0_243, %c0_244, %c0_245, %c0_246], %513 {strides = array<i32>} : memref<4x2x5x5xf32, #tpu.memory_space<vmem>>, vector<4x2x5x5xf32>,
    } else {
    }
    %c0 = arith.constant 0 : index
    %c0_1 = arith.constant 0 : index
    %c0_2 = arith.constant 0 : index
    %3 = vector.load %arg3[%c0, %c0_1, %c0_2] : memref<1x32x96xbf16, #tpu.memory_space<vmem>>, vector<1x32x96xbf16>
    %4 = vector.shape_cast %3 : vector<1x32x96xbf16> to vector<32x96xbf16>
    %c0_3 = arith.constant 0 : index
    %c0_4 = arith.constant 0 : index
    %c0_5 = arith.constant 0 : index
    %5 = vector.load %arg4[%c0_3, %c0_4, %c0_5] : memref<1x1x96xf32, #tpu.memory_space<vmem>>, vector<1x1x96xf32>
    %6 = vector.shape_cast %5 : vector<1x1x96xf32> to vector<1x96xf32>
    %c0_6 = arith.constant 0 : index
    %c0_7 = arith.constant 0 : index
    %c0_8 = arith.constant 0 : index
    %7 = vector.load %arg5[%c0_6, %c0_7, %c0_8] : memref<1x32x32xbf16, #tpu.memory_space<vmem>>, vector<1x32x32xbf16>
    %8 = vector.shape_cast %7 : vector<1x32x32xbf16> to vector<32x32xbf16>
    %c0_9 = arith.constant 0 : index
    %c0_10 = arith.constant 0 : index
    %c0_11 = arith.constant 0 : index
    %9 = vector.load %arg6[%c0_9, %c0_10, %c0_11] : memref<1x1x32xf32, #tpu.memory_space<vmem>>, vector<1x1x32xf32>
    %10 = vector.shape_cast %9 : vector<1x1x32xf32> to vector<1x32xf32>
    %c0_12 = arith.constant 0 : index
    %c0_13 = arith.constant 0 : index
    %c0_14 = arith.constant 0 : index
    %11 = vector.load %arg7[%c0_12, %c0_13, %c0_14] : memref<1x32x64xbf16, #tpu.memory_space<vmem>>, vector<1x32x64xbf16>
    %12 = vector.shape_cast %11 : vector<1x32x64xbf16> to vector<32x64xbf16>
    %c0_15 = arith.constant 0 : index
    %c0_16 = arith.constant 0 : index
    %c0_17 = arith.constant 0 : index
    %13 = vector.load %arg8[%c0_15, %c0_16, %c0_17] : memref<1x1x64xf32, #tpu.memory_space<vmem>>, vector<1x1x64xf32>
    %14 = vector.shape_cast %13 : vector<1x1x64xf32> to vector<1x64xf32>
    %c0_18 = arith.constant 0 : index
    %c0_19 = arith.constant 0 : index
    %c0_20 = arith.constant 0 : index
    %15 = vector.load %arg9[%c0_18, %c0_19, %c0_20] : memref<1x64x32xbf16, #tpu.memory_space<vmem>>, vector<1x64x32xbf16>
    %16 = vector.shape_cast %15 : vector<1x64x32xbf16> to vector<64x32xbf16>
    %c0_21 = arith.constant 0 : index
    %c0_22 = arith.constant 0 : index
    %c0_23 = arith.constant 0 : index
    %17 = vector.load %arg10[%c0_21, %c0_22, %c0_23] : memref<1x1x32xf32, #tpu.memory_space<vmem>>, vector<1x1x32xf32>
    %18 = vector.shape_cast %17 : vector<1x1x32xf32> to vector<1x32xf32>
    %c0_24 = arith.constant 0 : index
    %c0_25 = arith.constant 0 : index
    %c0_26 = arith.constant 0 : index
    %19 = vector.load %arg11[%c0_24, %c0_25, %c0_26] : memref<4x5x32xf32, #tpu.memory_space<vmem>>, vector<1x5x32xf32>
    %20 = vector.shape_cast %19 : vector<1x5x32xf32> to vector<5x32xf32>
    %21 = arith.truncf %20 : vector<5x32xf32> to vector<5x32xbf16>
    %cst = arith.constant dense<0.000000e+00> : vector<5x96xf32>
    %22 = tpu.matmul %21, %4, %cst {dimension_numbers = #tpu.dot_dimension_numbers<[1], [0], [0], [1], [0, 0, 1, 1], [], []>} : vector<5x32xbf16>, vector<32x96xbf16>, vector<5x96xf32> -> vector<5x96xf32>
    %23 = vector.broadcast %6 : vector<1x96xf32> to vector<5x96xf32>
    %24 = arith.addf %22, %23 : vector<5x96xf32>
    %25 = vector.extract_strided_slice %24 {offsets = [0, 0], sizes = [5, 16], strides = [1, 1]} : vector<5x96xf32> to vector<5x16xf32>
    %26 = arith.truncf %25 : vector<5x16xf32> to vector<5x16xbf16>
    %27 = vector.extract_strided_slice %24 {offsets = [0, 32], sizes = [5, 16], strides = [1, 1]} : vector<5x96xf32> to vector<5x16xf32>
    %28 = arith.truncf %27 : vector<5x16xf32> to vector<5x16xbf16>
    %29 = vector.extract_strided_slice %24 {offsets = [0, 64], sizes = [5, 16], strides = [1, 1]} : vector<5x96xf32> to vector<5x16xf32>
    %30 = arith.truncf %29 : vector<5x16xf32> to vector<5x16xbf16>
    %cst_27 = arith.constant dense<0.000000e+00> : vector<5x5xf32>
    %31 = tpu.matmul %26, %28, %cst_27 {dimension_numbers = #tpu.dot_dimension_numbers<[1], [1], [0], [0], [0, 0, 1, 0], [], []>} : vector<5x16xbf16>, vector<5x16xbf16>, vector<5x5xf32> -> vector<5x5xf32>
    %cst_28 = arith.constant 2.500000e-01 : f32
    %32 = vector.broadcast %cst_28 : f32 to vector<5x5xf32>
    %33 = arith.mulf %31, %32 : vector<5x5xf32>
    %c0_29 = arith.constant 0 : index
    %c0_30 = arith.constant 0 : index
    %c0_31 = arith.constant 0 : index
    %c0_32 = arith.constant 0 : index
    %34 = vector.load %arg12[%c0_29, %c0_30, %c0_31, %c0_32] : memref<4x2x5x5xf32, #tpu.memory_space<vmem>>, vector<1x1x5x5xf32>
    %35 = vector.shape_cast %34 : vector<1x1x5x5xf32> to vector<5x5xf32>
    %36 = arith.addf %33, %35 : vector<5x5xf32>
    %c0_33 = arith.constant 0 : index
    %c0_34 = arith.constant 0 : index
    %c0_35 = arith.constant 0 : index
    %c0_36 = arith.constant 0 : index
    %37 = vector.load %arg12[%c0_33, %c0_34, %c0_35, %c0_36] : memref<4x2x5x5xf32, #tpu.memory_space<vmem>>, vector<1x1x5x5xf32>
    %38 = vector.shape_cast %37 : vector<1x1x5x5xf32> to vector<5x5xf32>
    %39 = vector.shape_cast %36 : vector<5x5xf32> to vector<1x1x5x5xf32>
    tpu.vector_store %arg12[%c0_33, %c0_34, %c0_35, %c0_36], %39 {strides = array<i32>} : memref<4x2x5x5xf32, #tpu.memory_space<vmem>>, vector<1x1x5x5xf32>,
    %cst_37 = arith.constant dense<0xFF800000> : vector<5xf32>
    %40 = vector.multi_reduction <maximumf>, %36, %cst_37 [1] : vector<5x5xf32> to vector<5xf32>
    %41 = vector.shape_cast %40 : vector<5xf32> to vector<5x1xf32>
    %42 = vector.broadcast %41 : vector<5x1xf32> to vector<5x5xf32>
    %43 = arith.subf %36, %42 : vector<5x5xf32>
    %44 = math.exp %43 : vector<5x5xf32>
    %cst_38 = arith.constant dense<0.000000e+00> : vector<5xf32>
    %45 = vector.multi_reduction <add>, %44, %cst_38 [1] : vector<5x5xf32> to vector<5xf32>
    %46 = vector.shape_cast %45 : vector<5xf32> to vector<5x1xf32>
    %47 = tpu.reciprocal %46 {approx = true} : vector<5x1xf32> -> vector<5x1xf32>
    %48 = vector.broadcast %47 : vector<5x1xf32> to vector<5x5xf32>
    %49 = arith.mulf %44, %48 : vector<5x5xf32>
    %50 = arith.truncf %49 : vector<5x5xf32> to vector<5x5xbf16>
    %cst_39 = arith.constant dense<0.000000e+00> : vector<5x16xf32>
    %51 = tpu.matmul %50, %30, %cst_39 {dimension_numbers = #tpu.dot_dimension_numbers<[1], [0], [0], [1], [0, 0, 1, 1], [], []>} : vector<5x5xbf16>, vector<5x16xbf16>, vector<5x16xf32> -> vector<5x16xf32>
    %52 = vector.extract_strided_slice %24 {offsets = [0, 16], sizes = [5, 16], strides = [1, 1]} : vector<5x96xf32> to vector<5x16xf32>
    %53 = arith.truncf %52 : vector<5x16xf32> to vector<5x16xbf16>
    %54 = vector.extract_strided_slice %24 {offsets = [0, 48], sizes = [5, 16], strides = [1, 1]} : vector<5x96xf32> to vector<5x16xf32>
    %55 = arith.truncf %54 : vector<5x16xf32> to vector<5x16xbf16>
    %56 = vector.extract_strided_slice %24 {offsets = [0, 80], sizes = [5, 16], strides = [1, 1]} : vector<5x96xf32> to vector<5x16xf32>
    %57 = arith.truncf %56 : vector<5x16xf32> to vector<5x16xbf16>
    %cst_40 = arith.constant dense<0.000000e+00> : vector<5x5xf32>
    %58 = tpu.matmul %53, %55, %cst_40 {dimension_numbers = #tpu.dot_dimension_numbers<[1], [1], [0], [0], [0, 0, 1, 0], [], []>} : vector<5x16xbf16>, vector<5x16xbf16>, vector<5x5xf32> -> vector<5x5xf32>
    %cst_41 = arith.constant 2.500000e-01 : f32
    %59 = vector.broadcast %cst_41 : f32 to vector<5x5xf32>
    %60 = arith.mulf %58, %59 : vector<5x5xf32>
    %c0_42 = arith.constant 0 : index
    %c1 = arith.constant 1 : index
    %c0_43 = arith.constant 0 : index
    %c0_44 = arith.constant 0 : index
    %61 = vector.load %arg12[%c0_42, %c1, %c0_43, %c0_44] : memref<4x2x5x5xf32, #tpu.memory_space<vmem>>, vector<1x1x5x5xf32>
    %62 = vector.shape_cast %61 : vector<1x1x5x5xf32> to vector<5x5xf32>
    %63 = arith.addf %60, %62 : vector<5x5xf32>
    %c0_45 = arith.constant 0 : index
    %c1_46 = arith.constant 1 : index
    %c0_47 = arith.constant 0 : index
    %c0_48 = arith.constant 0 : index
    %64 = vector.load %arg12[%c0_45, %c1_46, %c0_47, %c0_48] : memref<4x2x5x5xf32, #tpu.memory_space<vmem>>, vector<1x1x5x5xf32>
    %65 = vector.shape_cast %64 : vector<1x1x5x5xf32> to vector<5x5xf32>
    %66 = vector.shape_cast %63 : vector<5x5xf32> to vector<1x1x5x5xf32>
    tpu.vector_store %arg12[%c0_45, %c1_46, %c0_47, %c0_48], %66 {strides = array<i32>} : memref<4x2x5x5xf32, #tpu.memory_space<vmem>>, vector<1x1x5x5xf32>,
    %cst_49 = arith.constant dense<0xFF800000> : vector<5xf32>
    %67 = vector.multi_reduction <maximumf>, %63, %cst_49 [1] : vector<5x5xf32> to vector<5xf32>
    %68 = vector.shape_cast %67 : vector<5xf32> to vector<5x1xf32>
    %69 = vector.broadcast %68 : vector<5x1xf32> to vector<5x5xf32>
    %70 = arith.subf %63, %69 : vector<5x5xf32>
    %71 = math.exp %70 : vector<5x5xf32>
    %cst_50 = arith.constant dense<0.000000e+00> : vector<5xf32>
    %72 = vector.multi_reduction <add>, %71, %cst_50 [1] : vector<5x5xf32> to vector<5xf32>
    %73 = vector.shape_cast %72 : vector<5xf32> to vector<5x1xf32>
    %74 = tpu.reciprocal %73 {approx = true} : vector<5x1xf32> -> vector<5x1xf32>
    %75 = vector.broadcast %74 : vector<5x1xf32> to vector<5x5xf32>
    %76 = arith.mulf %71, %75 : vector<5x5xf32>
    %77 = arith.truncf %76 : vector<5x5xf32> to vector<5x5xbf16>
    %cst_51 = arith.constant dense<0.000000e+00> : vector<5x16xf32>
    %78 = tpu.matmul %77, %57, %cst_51 {dimension_numbers = #tpu.dot_dimension_numbers<[1], [0], [0], [1], [0, 0, 1, 1], [], []>} : vector<5x5xbf16>, vector<5x16xbf16>, vector<5x16xf32> -> vector<5x16xf32>
    %79 = tpu.concatenate %51, %78 in 1 : vector<5x16xf32>, vector<5x16xf32> -> vector<5x32xf32>
    %80 = arith.truncf %79 : vector<5x32xf32> to vector<5x32xbf16>
    %cst_52 = arith.constant dense<0.000000e+00> : vector<5x32xf32>
    %81 = tpu.matmul %80, %8, %cst_52 {dimension_numbers = #tpu.dot_dimension_numbers<[1], [0], [0], [1], [0, 0, 1, 1], [], []>} : vector<5x32xbf16>, vector<32x32xbf16>, vector<5x32xf32> -> vector<5x32xf32>
    %82 = vector.broadcast %10 : vector<1x32xf32> to vector<5x32xf32>
    %83 = arith.addf %81, %82 : vector<5x32xf32>
    %84 = arith.addf %20, %83 : vector<5x32xf32>
    %cst_53 = arith.constant 0.999994993 : f32
    %85 = vector.broadcast %cst_53 : f32 to vector<5x32xf32>
    %86 = arith.mulf %84, %85 : vector<5x32xf32>
    %87 = arith.truncf %86 : vector<5x32xf32> to vector<5x32xbf16>
    %cst_54 = arith.constant dense<0.000000e+00> : vector<5x64xf32>
    %88 = tpu.matmul %87, %12, %cst_54 {dimension_numbers = #tpu.dot_dimension_numbers<[1], [0], [0], [1], [0, 0, 1, 1], [], []>} : vector<5x32xbf16>, vector<32x64xbf16>, vector<5x64xf32> -> vector<5x64xf32>
    %89 = vector.broadcast %14 : vector<1x64xf32> to vector<5x64xf32>
    %90 = arith.addf %88, %89 : vector<5x64xf32>
    %cst_55 = arith.constant 5.000000e-01 : f32
    %91 = vector.broadcast %cst_55 : f32 to vector<5x64xf32>
    %92 = arith.mulf %91, %90 : vector<5x64xf32>
    %cst_56 = arith.constant 0.707106769 : f32
    %93 = vector.broadcast %cst_56 : f32 to vector<5x64xf32>
    %94 = arith.mulf %90, %93 : vector<5x64xf32>
    %cst_57 = arith.constant 0.000000e+00 : f32
    %95 = vector.broadcast %cst_57 : f32 to vector<5x64xf32>
    %96 = arith.cmpf oge, %94, %95 : vector<5x64xf32>
    %cst_58 = arith.constant 1.000000e+00 : f32
    %cst_59 = arith.constant -1.000000e+00 : f32
    %97 = vector.broadcast %cst_58 : f32 to vector<5x64xf32>
    %98 = vector.broadcast %cst_59 : f32 to vector<5x64xf32>
    %99 = arith.select %96, %97, %98 : vector<5x64xi1>, vector<5x64xf32>
    %100 = math.absf %94 : vector<5x64xf32>
    %cst_60 = arith.constant 0.327591091 : f32
    %101 = vector.broadcast %cst_60 : f32 to vector<5x64xf32>
    %102 = arith.mulf %101, %100 : vector<5x64xf32>
    %cst_61 = arith.constant 1.000000e+00 : f32
    %103 = vector.broadcast %cst_61 : f32 to vector<5x64xf32>
    %104 = arith.addf %103, %102 : vector<5x64xf32>
    %cst_62 = arith.constant 1.000000e+00 : f32
    %105 = vector.broadcast %cst_62 : f32 to vector<5x64xf32>
    %106 = arith.divf %105, %104 : vector<5x64xf32>
    %cst_63 = arith.constant 1.06140542 : f32
    %107 = vector.broadcast %cst_63 : f32 to vector<5x64xf32>
    %108 = arith.mulf %107, %106 : vector<5x64xf32>
    %cst_64 = arith.constant -1.45315206 : f32
    %109 = vector.broadcast %cst_64 : f32 to vector<5x64xf32>
    %110 = arith.addf %108, %109 : vector<5x64xf32>
    %111 = arith.mulf %110, %106 : vector<5x64xf32>
    %cst_65 = arith.constant 1.42141378 : f32
    %112 = vector.broadcast %cst_65 : f32 to vector<5x64xf32>
    %113 = arith.addf %111, %112 : vector<5x64xf32>
    %114 = arith.mulf %113, %106 : vector<5x64xf32>
    %cst_66 = arith.constant -0.284496725 : f32
    %115 = vector.broadcast %cst_66 : f32 to vector<5x64xf32>
    %116 = arith.addf %114, %115 : vector<5x64xf32>
    %117 = arith.mulf %116, %106 : vector<5x64xf32>
    %cst_67 = arith.constant 0.254829586 : f32
    %118 = vector.broadcast %cst_67 : f32 to vector<5x64xf32>
    %119 = arith.addf %117, %118 : vector<5x64xf32>
    %120 = arith.mulf %119, %106 : vector<5x64xf32>
    %cst_68 = arith.constant 0.000000e+00 : f32
    %121 = vector.broadcast %cst_68 : f32 to vector<5x64xf32>
    %122 = arith.subf %121, %100 : vector<5x64xf32>
    %123 = arith.mulf %122, %100 : vector<5x64xf32>
    %124 = math.exp %123 : vector<5x64xf32>
    %125 = arith.mulf %120, %124 : vector<5x64xf32>
    %cst_69 = arith.constant 1.000000e+00 : f32
    %126 = vector.broadcast %cst_69 : f32 to vector<5x64xf32>
    %127 = arith.subf %126, %125 : vector<5x64xf32>
    %128 = arith.mulf %99, %127 : vector<5x64xf32>
    %cst_70 = arith.constant 1.000000e+00 : f32
    %129 = vector.broadcast %cst_70 : f32 to vector<5x64xf32>
    %130 = arith.addf %129, %128 : vector<5x64xf32>
    %131 = arith.mulf %92, %130 : vector<5x64xf32>
    %132 = arith.truncf %131 : vector<5x64xf32> to vector<5x64xbf16>
    %cst_71 = arith.constant dense<0.000000e+00> : vector<5x32xf32>
    %133 = tpu.matmul %132, %16, %cst_71 {dimension_numbers = #tpu.dot_dimension_numbers<[1], [0], [0], [1], [0, 0, 1, 1], [], []>} : vector<5x64xbf16>, vector<64x32xbf16>, vector<5x32xf32> -> vector<5x32xf32>
    %134 = vector.broadcast %18 : vector<1x32xf32> to vector<5x32xf32>
    %135 = arith.addf %133, %134 : vector<5x32xf32>
    %136 = arith.addf %86, %135 : vector<5x32xf32>
    %cst_72 = arith.constant 0.999994993 : f32
    %137 = vector.broadcast %cst_72 : f32 to vector<5x32xf32>
    %138 = arith.mulf %136, %137 : vector<5x32xf32>
    %c0_73 = arith.constant 0 : index
    %c0_74 = arith.constant 0 : index
    %c0_75 = arith.constant 0 : index
    %139 = vector.load %arg11[%c0_73, %c0_74, %c0_75] : memref<4x5x32xf32, #tpu.memory_space<vmem>>, vector<1x5x32xf32>
    %140 = vector.shape_cast %139 : vector<1x5x32xf32> to vector<5x32xf32>
    %141 = vector.shape_cast %138 : vector<5x32xf32> to vector<1x5x32xf32>
    tpu.vector_store %arg11[%c0_73, %c0_74, %c0_75], %141 {strides = array<i32>} : memref<4x5x32xf32, #tpu.memory_space<vmem>>, vector<1x5x32xf32>,
    %c1_76 = arith.constant 1 : index
    %c0_77 = arith.constant 0 : index
    %c0_78 = arith.constant 0 : index
    %142 = vector.load %arg11[%c1_76, %c0_77, %c0_78] : memref<4x5x32xf32, #tpu.memory_space<vmem>>, vector<1x5x32xf32>
    %143 = vector.shape_cast %142 : vector<1x5x32xf32> to vector<5x32xf32>
    %144 = arith.truncf %143 : vector<5x32xf32> to vector<5x32xbf16>
    %cst_79 = arith.constant dense<0.000000e+00> : vector<5x96xf32>
    %145 = tpu.matmul %144, %4, %cst_79 {dimension_numbers = #tpu.dot_dimension_numbers<[1], [0], [0], [1], [0, 0, 1, 1], [], []>} : vector<5x32xbf16>, vector<32x96xbf16>, vector<5x96xf32> -> vector<5x96xf32>
    %146 = vector.broadcast %6 : vector<1x96xf32> to vector<5x96xf32>
    %147 = arith.addf %145, %146 : vector<5x96xf32>
    %148 = vector.extract_strided_slice %147 {offsets = [0, 0], sizes = [5, 16], strides = [1, 1]} : vector<5x96xf32> to vector<5x16xf32>
    %149 = arith.truncf %148 : vector<5x16xf32> to vector<5x16xbf16>
    %150 = vector.extract_strided_slice %147 {offsets = [0, 32], sizes = [5, 16], strides = [1, 1]} : vector<5x96xf32> to vector<5x16xf32>
    %151 = arith.truncf %150 : vector<5x16xf32> to vector<5x16xbf16>
    %152 = vector.extract_strided_slice %147 {offsets = [0, 64], sizes = [5, 16], strides = [1, 1]} : vector<5x96xf32> to vector<5x16xf32>
    %153 = arith.truncf %152 : vector<5x16xf32> to vector<5x16xbf16>
    %cst_80 = arith.constant dense<0.000000e+00> : vector<5x5xf32>
    %154 = tpu.matmul %149, %151, %cst_80 {dimension_numbers = #tpu.dot_dimension_numbers<[1], [1], [0], [0], [0, 0, 1, 0], [], []>} : vector<5x16xbf16>, vector<5x16xbf16>, vector<5x5xf32> -> vector<5x5xf32>
    %cst_81 = arith.constant 2.500000e-01 : f32
    %155 = vector.broadcast %cst_81 : f32 to vector<5x5xf32>
    %156 = arith.mulf %154, %155 : vector<5x5xf32>
    %c1_82 = arith.constant 1 : index
    %c0_83 = arith.constant 0 : index
    %c0_84 = arith.constant 0 : index
    %c0_85 = arith.constant 0 : index
    %157 = vector.load %arg12[%c1_82, %c0_83, %c0_84, %c0_85] : memref<4x2x5x5xf32, #tpu.memory_space<vmem>>, vector<1x1x5x5xf32>
    %158 = vector.shape_cast %157 : vector<1x1x5x5xf32> to vector<5x5xf32>
    %159 = arith.addf %156, %158 : vector<5x5xf32>
    %c1_86 = arith.constant 1 : index
    %c0_87 = arith.constant 0 : index
    %c0_88 = arith.constant 0 : index
    %c0_89 = arith.constant 0 : index
    %160 = vector.load %arg12[%c1_86, %c0_87, %c0_88, %c0_89] : memref<4x2x5x5xf32, #tpu.memory_space<vmem>>, vector<1x1x5x5xf32>
    %161 = vector.shape_cast %160 : vector<1x1x5x5xf32> to vector<5x5xf32>
    %162 = vector.shape_cast %159 : vector<5x5xf32> to vector<1x1x5x5xf32>
    tpu.vector_store %arg12[%c1_86, %c0_87, %c0_88, %c0_89], %162 {strides = array<i32>} : memref<4x2x5x5xf32, #tpu.memory_space<vmem>>, vector<1x1x5x5xf32>,
    %cst_90 = arith.constant dense<0xFF800000> : vector<5xf32>
    %163 = vector.multi_reduction <maximumf>, %159, %cst_90 [1] : vector<5x5xf32> to vector<5xf32>
    %164 = vector.shape_cast %163 : vector<5xf32> to vector<5x1xf32>
    %165 = vector.broadcast %164 : vector<5x1xf32> to vector<5x5xf32>
    %166 = arith.subf %159, %165 : vector<5x5xf32>
    %167 = math.exp %166 : vector<5x5xf32>
    %cst_91 = arith.constant dense<0.000000e+00> : vector<5xf32>
    %168 = vector.multi_reduction <add>, %167, %cst_91 [1] : vector<5x5xf32> to vector<5xf32>
    %169 = vector.shape_cast %168 : vector<5xf32> to vector<5x1xf32>
    %170 = tpu.reciprocal %169 {approx = true} : vector<5x1xf32> -> vector<5x1xf32>
    %171 = vector.broadcast %170 : vector<5x1xf32> to vector<5x5xf32>
    %172 = arith.mulf %167, %171 : vector<5x5xf32>
    %173 = arith.truncf %172 : vector<5x5xf32> to vector<5x5xbf16>
    %cst_92 = arith.constant dense<0.000000e+00> : vector<5x16xf32>
    %174 = tpu.matmul %173, %153, %cst_92 {dimension_numbers = #tpu.dot_dimension_numbers<[1], [0], [0], [1], [0, 0, 1, 1], [], []>} : vector<5x5xbf16>, vector<5x16xbf16>, vector<5x16xf32> -> vector<5x16xf32>
    %175 = vector.extract_strided_slice %147 {offsets = [0, 16], sizes = [5, 16], strides = [1, 1]} : vector<5x96xf32> to vector<5x16xf32>
    %176 = arith.truncf %175 : vector<5x16xf32> to vector<5x16xbf16>
    %177 = vector.extract_strided_slice %147 {offsets = [0, 48], sizes = [5, 16], strides = [1, 1]} : vector<5x96xf32> to vector<5x16xf32>
    %178 = arith.truncf %177 : vector<5x16xf32> to vector<5x16xbf16>
    %179 = vector.extract_strided_slice %147 {offsets = [0, 80], sizes = [5, 16], strides = [1, 1]} : vector<5x96xf32> to vector<5x16xf32>
    %180 = arith.truncf %179 : vector<5x16xf32> to vector<5x16xbf16>
    %cst_93 = arith.constant dense<0.000000e+00> : vector<5x5xf32>
    %181 = tpu.matmul %176, %178, %cst_93 {dimension_numbers = #tpu.dot_dimension_numbers<[1], [1], [0], [0], [0, 0, 1, 0], [], []>} : vector<5x16xbf16>, vector<5x16xbf16>, vector<5x5xf32> -> vector<5x5xf32>
    %cst_94 = arith.constant 2.500000e-01 : f32
    %182 = vector.broadcast %cst_94 : f32 to vector<5x5xf32>
    %183 = arith.mulf %181, %182 : vector<5x5xf32>
    %c1_95 = arith.constant 1 : index
    %c1_96 = arith.constant 1 : index
    %c0_97 = arith.constant 0 : index
    %c0_98 = arith.constant 0 : index
    %184 = vector.load %arg12[%c1_95, %c1_96, %c0_97, %c0_98] : memref<4x2x5x5xf32, #tpu.memory_space<vmem>>, vector<1x1x5x5xf32>
    %185 = vector.shape_cast %184 : vector<1x1x5x5xf32> to vector<5x5xf32>
    %186 = arith.addf %183, %185 : vector<5x5xf32>
    %c1_99 = arith.constant 1 : index
    %c1_100 = arith.constant 1 : index
    %c0_101 = arith.constant 0 : index
    %c0_102 = arith.constant 0 : index
    %187 = vector.load %arg12[%c1_99, %c1_100, %c0_101, %c0_102] : memref<4x2x5x5xf32, #tpu.memory_space<vmem>>, vector<1x1x5x5xf32>
    %188 = vector.shape_cast %187 : vector<1x1x5x5xf32> to vector<5x5xf32>
    %189 = vector.shape_cast %186 : vector<5x5xf32> to vector<1x1x5x5xf32>
    tpu.vector_store %arg12[%c1_99, %c1_100, %c0_101, %c0_102], %189 {strides = array<i32>} : memref<4x2x5x5xf32, #tpu.memory_space<vmem>>, vector<1x1x5x5xf32>,
    %cst_103 = arith.constant dense<0xFF800000> : vector<5xf32>
    %190 = vector.multi_reduction <maximumf>, %186, %cst_103 [1] : vector<5x5xf32> to vector<5xf32>
    %191 = vector.shape_cast %190 : vector<5xf32> to vector<5x1xf32>
    %192 = vector.broadcast %191 : vector<5x1xf32> to vector<5x5xf32>
    %193 = arith.subf %186, %192 : vector<5x5xf32>
    %194 = math.exp %193 : vector<5x5xf32>
    %cst_104 = arith.constant dense<0.000000e+00> : vector<5xf32>
    %195 = vector.multi_reduction <add>, %194, %cst_104 [1] : vector<5x5xf32> to vector<5xf32>
    %196 = vector.shape_cast %195 : vector<5xf32> to vector<5x1xf32>
    %197 = tpu.reciprocal %196 {approx = true} : vector<5x1xf32> -> vector<5x1xf32>
    %198 = vector.broadcast %197 : vector<5x1xf32> to vector<5x5xf32>
    %199 = arith.mulf %194, %198 : vector<5x5xf32>
    %200 = arith.truncf %199 : vector<5x5xf32> to vector<5x5xbf16>
    %cst_105 = arith.constant dense<0.000000e+00> : vector<5x16xf32>
    %201 = tpu.matmul %200, %180, %cst_105 {dimension_numbers = #tpu.dot_dimension_numbers<[1], [0], [0], [1], [0, 0, 1, 1], [], []>} : vector<5x5xbf16>, vector<5x16xbf16>, vector<5x16xf32> -> vector<5x16xf32>
    %202 = tpu.concatenate %174, %201 in 1 : vector<5x16xf32>, vector<5x16xf32> -> vector<5x32xf32>
    %203 = arith.truncf %202 : vector<5x32xf32> to vector<5x32xbf16>
    %cst_106 = arith.constant dense<0.000000e+00> : vector<5x32xf32>
    %204 = tpu.matmul %203, %8, %cst_106 {dimension_numbers = #tpu.dot_dimension_numbers<[1], [0], [0], [1], [0, 0, 1, 1], [], []>} : vector<5x32xbf16>, vector<32x32xbf16>, vector<5x32xf32> -> vector<5x32xf32>
    %205 = vector.broadcast %10 : vector<1x32xf32> to vector<5x32xf32>
    %206 = arith.addf %204, %205 : vector<5x32xf32>
    %207 = arith.addf %143, %206 : vector<5x32xf32>
    %cst_107 = arith.constant 0.999994993 : f32
    %208 = vector.broadcast %cst_107 : f32 to vector<5x32xf32>
    %209 = arith.mulf %207, %208 : vector<5x32xf32>
    %210 = arith.truncf %209 : vector<5x32xf32> to vector<5x32xbf16>
    %cst_108 = arith.constant dense<0.000000e+00> : vector<5x64xf32>
    %211 = tpu.matmul %210, %12, %cst_108 {dimension_numbers = #tpu.dot_dimension_numbers<[1], [0], [0], [1], [0, 0, 1, 1], [], []>} : vector<5x32xbf16>, vector<32x64xbf16>, vector<5x64xf32> -> vector<5x64xf32>
    %212 = vector.broadcast %14 : vector<1x64xf32> to vector<5x64xf32>
    %213 = arith.addf %211, %212 : vector<5x64xf32>
    %cst_109 = arith.constant 5.000000e-01 : f32
    %214 = vector.broadcast %cst_109 : f32 to vector<5x64xf32>
    %215 = arith.mulf %214, %213 : vector<5x64xf32>
    %cst_110 = arith.constant 0.707106769 : f32
    %216 = vector.broadcast %cst_110 : f32 to vector<5x64xf32>
    %217 = arith.mulf %213, %216 : vector<5x64xf32>
    %cst_111 = arith.constant 0.000000e+00 : f32
    %218 = vector.broadcast %cst_111 : f32 to vector<5x64xf32>
    %219 = arith.cmpf oge, %217, %218 : vector<5x64xf32>
    %cst_112 = arith.constant 1.000000e+00 : f32
    %cst_113 = arith.constant -1.000000e+00 : f32
    %220 = vector.broadcast %cst_112 : f32 to vector<5x64xf32>
    %221 = vector.broadcast %cst_113 : f32 to vector<5x64xf32>
    %222 = arith.select %219, %220, %221 : vector<5x64xi1>, vector<5x64xf32>
    %223 = math.absf %217 : vector<5x64xf32>
    %cst_114 = arith.constant 0.327591091 : f32
    %224 = vector.broadcast %cst_114 : f32 to vector<5x64xf32>
    %225 = arith.mulf %224, %223 : vector<5x64xf32>
    %cst_115 = arith.constant 1.000000e+00 : f32
    %226 = vector.broadcast %cst_115 : f32 to vector<5x64xf32>
    %227 = arith.addf %226, %225 : vector<5x64xf32>
    %cst_116 = arith.constant 1.000000e+00 : f32
    %228 = vector.broadcast %cst_116 : f32 to vector<5x64xf32>
    %229 = arith.divf %228, %227 : vector<5x64xf32>
    %cst_117 = arith.constant 1.06140542 : f32
    %230 = vector.broadcast %cst_117 : f32 to vector<5x64xf32>
    %231 = arith.mulf %230, %229 : vector<5x64xf32>
    %cst_118 = arith.constant -1.45315206 : f32
    %232 = vector.broadcast %cst_118 : f32 to vector<5x64xf32>
    %233 = arith.addf %231, %232 : vector<5x64xf32>
    %234 = arith.mulf %233, %229 : vector<5x64xf32>
    %cst_119 = arith.constant 1.42141378 : f32
    %235 = vector.broadcast %cst_119 : f32 to vector<5x64xf32>
    %236 = arith.addf %234, %235 : vector<5x64xf32>
    %237 = arith.mulf %236, %229 : vector<5x64xf32>
    %cst_120 = arith.constant -0.284496725 : f32
    %238 = vector.broadcast %cst_120 : f32 to vector<5x64xf32>
    %239 = arith.addf %237, %238 : vector<5x64xf32>
    %240 = arith.mulf %239, %229 : vector<5x64xf32>
    %cst_121 = arith.constant 0.254829586 : f32
    %241 = vector.broadcast %cst_121 : f32 to vector<5x64xf32>
    %242 = arith.addf %240, %241 : vector<5x64xf32>
    %243 = arith.mulf %242, %229 : vector<5x64xf32>
    %cst_122 = arith.constant 0.000000e+00 : f32
    %244 = vector.broadcast %cst_122 : f32 to vector<5x64xf32>
    %245 = arith.subf %244, %223 : vector<5x64xf32>
    %246 = arith.mulf %245, %223 : vector<5x64xf32>
    %247 = math.exp %246 : vector<5x64xf32>
    %248 = arith.mulf %243, %247 : vector<5x64xf32>
    %cst_123 = arith.constant 1.000000e+00 : f32
    %249 = vector.broadcast %cst_123 : f32 to vector<5x64xf32>
    %250 = arith.subf %249, %248 : vector<5x64xf32>
    %251 = arith.mulf %222, %250 : vector<5x64xf32>
    %cst_124 = arith.constant 1.000000e+00 : f32
    %252 = vector.broadcast %cst_124 : f32 to vector<5x64xf32>
    %253 = arith.addf %252, %251 : vector<5x64xf32>
    %254 = arith.mulf %215, %253 : vector<5x64xf32>
    %255 = arith.truncf %254 : vector<5x64xf32> to vector<5x64xbf16>
    %cst_125 = arith.constant dense<0.000000e+00> : vector<5x32xf32>
    %256 = tpu.matmul %255, %16, %cst_125 {dimension_numbers = #tpu.dot_dimension_numbers<[1], [0], [0], [1], [0, 0, 1, 1], [], []>} : vector<5x64xbf16>, vector<64x32xbf16>, vector<5x32xf32> -> vector<5x32xf32>
    %257 = vector.broadcast %18 : vector<1x32xf32> to vector<5x32xf32>
    %258 = arith.addf %256, %257 : vector<5x32xf32>
    %259 = arith.addf %209, %258 : vector<5x32xf32>
    %cst_126 = arith.constant 0.999994993 : f32
    %260 = vector.broadcast %cst_126 : f32 to vector<5x32xf32>
    %261 = arith.mulf %259, %260 : vector<5x32xf32>
    %c1_127 = arith.constant 1 : index
    %c0_128 = arith.constant 0 : index
    %c0_129 = arith.constant 0 : index
    %262 = vector.load %arg11[%c1_127, %c0_128, %c0_129] : memref<4x5x32xf32, #tpu.memory_space<vmem>>, vector<1x5x32xf32>
    %263 = vector.shape_cast %262 : vector<1x5x32xf32> to vector<5x32xf32>
    %264 = vector.shape_cast %261 : vector<5x32xf32> to vector<1x5x32xf32>
    tpu.vector_store %arg11[%c1_127, %c0_128, %c0_129], %264 {strides = array<i32>} : memref<4x5x32xf32, #tpu.memory_space<vmem>>, vector<1x5x32xf32>,
    %c2 = arith.constant 2 : index
    %c0_130 = arith.constant 0 : index
    %c0_131 = arith.constant 0 : index
    %265 = vector.load %arg11[%c2, %c0_130, %c0_131] : memref<4x5x32xf32, #tpu.memory_space<vmem>>, vector<1x5x32xf32>
    %266 = vector.shape_cast %265 : vector<1x5x32xf32> to vector<5x32xf32>
    %267 = arith.truncf %266 : vector<5x32xf32> to vector<5x32xbf16>
    %cst_132 = arith.constant dense<0.000000e+00> : vector<5x96xf32>
    %268 = tpu.matmul %267, %4, %cst_132 {dimension_numbers = #tpu.dot_dimension_numbers<[1], [0], [0], [1], [0, 0, 1, 1], [], []>} : vector<5x32xbf16>, vector<32x96xbf16>, vector<5x96xf32> -> vector<5x96xf32>
    %269 = vector.broadcast %6 : vector<1x96xf32> to vector<5x96xf32>
    %270 = arith.addf %268, %269 : vector<5x96xf32>
    %271 = vector.extract_strided_slice %270 {offsets = [0, 0], sizes = [5, 16], strides = [1, 1]} : vector<5x96xf32> to vector<5x16xf32>
    %272 = arith.truncf %271 : vector<5x16xf32> to vector<5x16xbf16>
    %273 = vector.extract_strided_slice %270 {offsets = [0, 32], sizes = [5, 16], strides = [1, 1]} : vector<5x96xf32> to vector<5x16xf32>
    %274 = arith.truncf %273 : vector<5x16xf32> to vector<5x16xbf16>
    %275 = vector.extract_strided_slice %270 {offsets = [0, 64], sizes = [5, 16], strides = [1, 1]} : vector<5x96xf32> to vector<5x16xf32>
    %276 = arith.truncf %275 : vector<5x16xf32> to vector<5x16xbf16>
    %cst_133 = arith.constant dense<0.000000e+00> : vector<5x5xf32>
    %277 = tpu.matmul %272, %274, %cst_133 {dimension_numbers = #tpu.dot_dimension_numbers<[1], [1], [0], [0], [0, 0, 1, 0], [], []>} : vector<5x16xbf16>, vector<5x16xbf16>, vector<5x5xf32> -> vector<5x5xf32>
    %cst_134 = arith.constant 2.500000e-01 : f32
    %278 = vector.broadcast %cst_134 : f32 to vector<5x5xf32>
    %279 = arith.mulf %277, %278 : vector<5x5xf32>
    %c2_135 = arith.constant 2 : index
    %c0_136 = arith.constant 0 : index
    %c0_137 = arith.constant 0 : index
    %c0_138 = arith.constant 0 : index
    %280 = vector.load %arg12[%c2_135, %c0_136, %c0_137, %c0_138] : memref<4x2x5x5xf32, #tpu.memory_space<vmem>>, vector<1x1x5x5xf32>
    %281 = vector.shape_cast %280 : vector<1x1x5x5xf32> to vector<5x5xf32>
    %282 = arith.addf %279, %281 : vector<5x5xf32>
    %c2_139 = arith.constant 2 : index
    %c0_140 = arith.constant 0 : index
    %c0_141 = arith.constant 0 : index
    %c0_142 = arith.constant 0 : index
    %283 = vector.load %arg12[%c2_139, %c0_140, %c0_141, %c0_142] : memref<4x2x5x5xf32, #tpu.memory_space<vmem>>, vector<1x1x5x5xf32>
    %284 = vector.shape_cast %283 : vector<1x1x5x5xf32> to vector<5x5xf32>
    %285 = vector.shape_cast %282 : vector<5x5xf32> to vector<1x1x5x5xf32>
    tpu.vector_store %arg12[%c2_139, %c0_140, %c0_141, %c0_142], %285 {strides = array<i32>} : memref<4x2x5x5xf32, #tpu.memory_space<vmem>>, vector<1x1x5x5xf32>,
    %cst_143 = arith.constant dense<0xFF800000> : vector<5xf32>
    %286 = vector.multi_reduction <maximumf>, %282, %cst_143 [1] : vector<5x5xf32> to vector<5xf32>
    %287 = vector.shape_cast %286 : vector<5xf32> to vector<5x1xf32>
    %288 = vector.broadcast %287 : vector<5x1xf32> to vector<5x5xf32>
    %289 = arith.subf %282, %288 : vector<5x5xf32>
    %290 = math.exp %289 : vector<5x5xf32>
    %cst_144 = arith.constant dense<0.000000e+00> : vector<5xf32>
    %291 = vector.multi_reduction <add>, %290, %cst_144 [1] : vector<5x5xf32> to vector<5xf32>
    %292 = vector.shape_cast %291 : vector<5xf32> to vector<5x1xf32>
    %293 = tpu.reciprocal %292 {approx = true} : vector<5x1xf32> -> vector<5x1xf32>
    %294 = vector.broadcast %293 : vector<5x1xf32> to vector<5x5xf32>
    %295 = arith.mulf %290, %294 : vector<5x5xf32>
    %296 = arith.truncf %295 : vector<5x5xf32> to vector<5x5xbf16>
    %cst_145 = arith.constant dense<0.000000e+00> : vector<5x16xf32>
    %297 = tpu.matmul %296, %276, %cst_145 {dimension_numbers = #tpu.dot_dimension_numbers<[1], [0], [0], [1], [0, 0, 1, 1], [], []>} : vector<5x5xbf16>, vector<5x16xbf16>, vector<5x16xf32> -> vector<5x16xf32>
    %298 = vector.extract_strided_slice %270 {offsets = [0, 16], sizes = [5, 16], strides = [1, 1]} : vector<5x96xf32> to vector<5x16xf32>
    %299 = arith.truncf %298 : vector<5x16xf32> to vector<5x16xbf16>
    %300 = vector.extract_strided_slice %270 {offsets = [0, 48], sizes = [5, 16], strides = [1, 1]} : vector<5x96xf32> to vector<5x16xf32>
    %301 = arith.truncf %300 : vector<5x16xf32> to vector<5x16xbf16>
    %302 = vector.extract_strided_slice %270 {offsets = [0, 80], sizes = [5, 16], strides = [1, 1]} : vector<5x96xf32> to vector<5x16xf32>
    %303 = arith.truncf %302 : vector<5x16xf32> to vector<5x16xbf16>
    %cst_146 = arith.constant dense<0.000000e+00> : vector<5x5xf32>
    %304 = tpu.matmul %299, %301, %cst_146 {dimension_numbers = #tpu.dot_dimension_numbers<[1], [1], [0], [0], [0, 0, 1, 0], [], []>} : vector<5x16xbf16>, vector<5x16xbf16>, vector<5x5xf32> -> vector<5x5xf32>
    %cst_147 = arith.constant 2.500000e-01 : f32
    %305 = vector.broadcast %cst_147 : f32 to vector<5x5xf32>
    %306 = arith.mulf %304, %305 : vector<5x5xf32>
    %c2_148 = arith.constant 2 : index
    %c1_149 = arith.constant 1 : index
    %c0_150 = arith.constant 0 : index
    %c0_151 = arith.constant 0 : index
    %307 = vector.load %arg12[%c2_148, %c1_149, %c0_150, %c0_151] : memref<4x2x5x5xf32, #tpu.memory_space<vmem>>, vector<1x1x5x5xf32>
    %308 = vector.shape_cast %307 : vector<1x1x5x5xf32> to vector<5x5xf32>
    %309 = arith.addf %306, %308 : vector<5x5xf32>
    %c2_152 = arith.constant 2 : index
    %c1_153 = arith.constant 1 : index
    %c0_154 = arith.constant 0 : index
    %c0_155 = arith.constant 0 : index
    %310 = vector.load %arg12[%c2_152, %c1_153, %c0_154, %c0_155] : memref<4x2x5x5xf32, #tpu.memory_space<vmem>>, vector<1x1x5x5xf32>
    %311 = vector.shape_cast %310 : vector<1x1x5x5xf32> to vector<5x5xf32>
    %312 = vector.shape_cast %309 : vector<5x5xf32> to vector<1x1x5x5xf32>
    tpu.vector_store %arg12[%c2_152, %c1_153, %c0_154, %c0_155], %312 {strides = array<i32>} : memref<4x2x5x5xf32, #tpu.memory_space<vmem>>, vector<1x1x5x5xf32>,
    %cst_156 = arith.constant dense<0xFF800000> : vector<5xf32>
    %313 = vector.multi_reduction <maximumf>, %309, %cst_156 [1] : vector<5x5xf32> to vector<5xf32>
    %314 = vector.shape_cast %313 : vector<5xf32> to vector<5x1xf32>
    %315 = vector.broadcast %314 : vector<5x1xf32> to vector<5x5xf32>
    %316 = arith.subf %309, %315 : vector<5x5xf32>
    %317 = math.exp %316 : vector<5x5xf32>
    %cst_157 = arith.constant dense<0.000000e+00> : vector<5xf32>
    %318 = vector.multi_reduction <add>, %317, %cst_157 [1] : vector<5x5xf32> to vector<5xf32>
    %319 = vector.shape_cast %318 : vector<5xf32> to vector<5x1xf32>
    %320 = tpu.reciprocal %319 {approx = true} : vector<5x1xf32> -> vector<5x1xf32>
    %321 = vector.broadcast %320 : vector<5x1xf32> to vector<5x5xf32>
    %322 = arith.mulf %317, %321 : vector<5x5xf32>
    %323 = arith.truncf %322 : vector<5x5xf32> to vector<5x5xbf16>
    %cst_158 = arith.constant dense<0.000000e+00> : vector<5x16xf32>
    %324 = tpu.matmul %323, %303, %cst_158 {dimension_numbers = #tpu.dot_dimension_numbers<[1], [0], [0], [1], [0, 0, 1, 1], [], []>} : vector<5x5xbf16>, vector<5x16xbf16>, vector<5x16xf32> -> vector<5x16xf32>
    %325 = tpu.concatenate %297, %324 in 1 : vector<5x16xf32>, vector<5x16xf32> -> vector<5x32xf32>
    %326 = arith.truncf %325 : vector<5x32xf32> to vector<5x32xbf16>
    %cst_159 = arith.constant dense<0.000000e+00> : vector<5x32xf32>
    %327 = tpu.matmul %326, %8, %cst_159 {dimension_numbers = #tpu.dot_dimension_numbers<[1], [0], [0], [1], [0, 0, 1, 1], [], []>} : vector<5x32xbf16>, vector<32x32xbf16>, vector<5x32xf32> -> vector<5x32xf32>
    %328 = vector.broadcast %10 : vector<1x32xf32> to vector<5x32xf32>
    %329 = arith.addf %327, %328 : vector<5x32xf32>
    %330 = arith.addf %266, %329 : vector<5x32xf32>
    %cst_160 = arith.constant 0.999994993 : f32
    %331 = vector.broadcast %cst_160 : f32 to vector<5x32xf32>
    %332 = arith.mulf %330, %331 : vector<5x32xf32>
    %333 = arith.truncf %332 : vector<5x32xf32> to vector<5x32xbf16>
    %cst_161 = arith.constant dense<0.000000e+00> : vector<5x64xf32>
    %334 = tpu.matmul %333, %12, %cst_161 {dimension_numbers = #tpu.dot_dimension_numbers<[1], [0], [0], [1], [0, 0, 1, 1], [], []>} : vector<5x32xbf16>, vector<32x64xbf16>, vector<5x64xf32> -> vector<5x64xf32>
    %335 = vector.broadcast %14 : vector<1x64xf32> to vector<5x64xf32>
    %336 = arith.addf %334, %335 : vector<5x64xf32>
    %cst_162 = arith.constant 5.000000e-01 : f32
    %337 = vector.broadcast %cst_162 : f32 to vector<5x64xf32>
    %338 = arith.mulf %337, %336 : vector<5x64xf32>
    %cst_163 = arith.constant 0.707106769 : f32
    %339 = vector.broadcast %cst_163 : f32 to vector<5x64xf32>
    %340 = arith.mulf %336, %339 : vector<5x64xf32>
    %cst_164 = arith.constant 0.000000e+00 : f32
    %341 = vector.broadcast %cst_164 : f32 to vector<5x64xf32>
    %342 = arith.cmpf oge, %340, %341 : vector<5x64xf32>
    %cst_165 = arith.constant 1.000000e+00 : f32
    %cst_166 = arith.constant -1.000000e+00 : f32
    %343 = vector.broadcast %cst_165 : f32 to vector<5x64xf32>
    %344 = vector.broadcast %cst_166 : f32 to vector<5x64xf32>
    %345 = arith.select %342, %343, %344 : vector<5x64xi1>, vector<5x64xf32>
    %346 = math.absf %340 : vector<5x64xf32>
    %cst_167 = arith.constant 0.327591091 : f32
    %347 = vector.broadcast %cst_167 : f32 to vector<5x64xf32>
    %348 = arith.mulf %347, %346 : vector<5x64xf32>
    %cst_168 = arith.constant 1.000000e+00 : f32
    %349 = vector.broadcast %cst_168 : f32 to vector<5x64xf32>
    %350 = arith.addf %349, %348 : vector<5x64xf32>
    %cst_169 = arith.constant 1.000000e+00 : f32
    %351 = vector.broadcast %cst_169 : f32 to vector<5x64xf32>
    %352 = arith.divf %351, %350 : vector<5x64xf32>
    %cst_170 = arith.constant 1.06140542 : f32
    %353 = vector.broadcast %cst_170 : f32 to vector<5x64xf32>
    %354 = arith.mulf %353, %352 : vector<5x64xf32>
    %cst_171 = arith.constant -1.45315206 : f32
    %355 = vector.broadcast %cst_171 : f32 to vector<5x64xf32>
    %356 = arith.addf %354, %355 : vector<5x64xf32>
    %357 = arith.mulf %356, %352 : vector<5x64xf32>
    %cst_172 = arith.constant 1.42141378 : f32
    %358 = vector.broadcast %cst_172 : f32 to vector<5x64xf32>
    %359 = arith.addf %357, %358 : vector<5x64xf32>
    %360 = arith.mulf %359, %352 : vector<5x64xf32>
    %cst_173 = arith.constant -0.284496725 : f32
    %361 = vector.broadcast %cst_173 : f32 to vector<5x64xf32>
    %362 = arith.addf %360, %361 : vector<5x64xf32>
    %363 = arith.mulf %362, %352 : vector<5x64xf32>
    %cst_174 = arith.constant 0.254829586 : f32
    %364 = vector.broadcast %cst_174 : f32 to vector<5x64xf32>
    %365 = arith.addf %363, %364 : vector<5x64xf32>
    %366 = arith.mulf %365, %352 : vector<5x64xf32>
    %cst_175 = arith.constant 0.000000e+00 : f32
    %367 = vector.broadcast %cst_175 : f32 to vector<5x64xf32>
    %368 = arith.subf %367, %346 : vector<5x64xf32>
    %369 = arith.mulf %368, %346 : vector<5x64xf32>
    %370 = math.exp %369 : vector<5x64xf32>
    %371 = arith.mulf %366, %370 : vector<5x64xf32>
    %cst_176 = arith.constant 1.000000e+00 : f32
    %372 = vector.broadcast %cst_176 : f32 to vector<5x64xf32>
    %373 = arith.subf %372, %371 : vector<5x64xf32>
    %374 = arith.mulf %345, %373 : vector<5x64xf32>
    %cst_177 = arith.constant 1.000000e+00 : f32
    %375 = vector.broadcast %cst_177 : f32 to vector<5x64xf32>
    %376 = arith.addf %375, %374 : vector<5x64xf32>
    %377 = arith.mulf %338, %376 : vector<5x64xf32>
    %378 = arith.truncf %377 : vector<5x64xf32> to vector<5x64xbf16>
    %cst_178 = arith.constant dense<0.000000e+00> : vector<5x32xf32>
    %379 = tpu.matmul %378, %16, %cst_178 {dimension_numbers = #tpu.dot_dimension_numbers<[1], [0], [0], [1], [0, 0, 1, 1], [], []>} : vector<5x64xbf16>, vector<64x32xbf16>, vector<5x32xf32> -> vector<5x32xf32>
    %380 = vector.broadcast %18 : vector<1x32xf32> to vector<5x32xf32>
    %381 = arith.addf %379, %380 : vector<5x32xf32>
    %382 = arith.addf %332, %381 : vector<5x32xf32>
    %cst_179 = arith.constant 0.999994993 : f32
    %383 = vector.broadcast %cst_179 : f32 to vector<5x32xf32>
    %384 = arith.mulf %382, %383 : vector<5x32xf32>
    %c2_180 = arith.constant 2 : index
    %c0_181 = arith.constant 0 : index
    %c0_182 = arith.constant 0 : index
    %385 = vector.load %arg11[%c2_180, %c0_181, %c0_182] : memref<4x5x32xf32, #tpu.memory_space<vmem>>, vector<1x5x32xf32>
    %386 = vector.shape_cast %385 : vector<1x5x32xf32> to vector<5x32xf32>
    %387 = vector.shape_cast %384 : vector<5x32xf32> to vector<1x5x32xf32>
    tpu.vector_store %arg11[%c2_180, %c0_181, %c0_182], %387 {strides = array<i32>} : memref<4x5x32xf32, #tpu.memory_space<vmem>>, vector<1x5x32xf32>,
    %c3 = arith.constant 3 : index
    %c0_183 = arith.constant 0 : index
    %c0_184 = arith.constant 0 : index
    %388 = vector.load %arg11[%c3, %c0_183, %c0_184] : memref<4x5x32xf32, #tpu.memory_space<vmem>>, vector<1x5x32xf32>
    %389 = vector.shape_cast %388 : vector<1x5x32xf32> to vector<5x32xf32>
    %390 = arith.truncf %389 : vector<5x32xf32> to vector<5x32xbf16>
    %cst_185 = arith.constant dense<0.000000e+00> : vector<5x96xf32>
    %391 = tpu.matmul %390, %4, %cst_185 {dimension_numbers = #tpu.dot_dimension_numbers<[1], [0], [0], [1], [0, 0, 1, 1], [], []>} : vector<5x32xbf16>, vector<32x96xbf16>, vector<5x96xf32> -> vector<5x96xf32>
    %392 = vector.broadcast %6 : vector<1x96xf32> to vector<5x96xf32>
    %393 = arith.addf %391, %392 : vector<5x96xf32>
    %394 = vector.extract_strided_slice %393 {offsets = [0, 0], sizes = [5, 16], strides = [1, 1]} : vector<5x96xf32> to vector<5x16xf32>
    %395 = arith.truncf %394 : vector<5x16xf32> to vector<5x16xbf16>
    %396 = vector.extract_strided_slice %393 {offsets = [0, 32], sizes = [5, 16], strides = [1, 1]} : vector<5x96xf32> to vector<5x16xf32>
    %397 = arith.truncf %396 : vector<5x16xf32> to vector<5x16xbf16>
    %398 = vector.extract_strided_slice %393 {offsets = [0, 64], sizes = [5, 16], strides = [1, 1]} : vector<5x96xf32> to vector<5x16xf32>
    %399 = arith.truncf %398 : vector<5x16xf32> to vector<5x16xbf16>
    %cst_186 = arith.constant dense<0.000000e+00> : vector<5x5xf32>
    %400 = tpu.matmul %395, %397, %cst_186 {dimension_numbers = #tpu.dot_dimension_numbers<[1], [1], [0], [0], [0, 0, 1, 0], [], []>} : vector<5x16xbf16>, vector<5x16xbf16>, vector<5x5xf32> -> vector<5x5xf32>
    %cst_187 = arith.constant 2.500000e-01 : f32
    %401 = vector.broadcast %cst_187 : f32 to vector<5x5xf32>
    %402 = arith.mulf %400, %401 : vector<5x5xf32>
    %c3_188 = arith.constant 3 : index
    %c0_189 = arith.constant 0 : index
    %c0_190 = arith.constant 0 : index
    %c0_191 = arith.constant 0 : index
    %403 = vector.load %arg12[%c3_188, %c0_189, %c0_190, %c0_191] : memref<4x2x5x5xf32, #tpu.memory_space<vmem>>, vector<1x1x5x5xf32>
    %404 = vector.shape_cast %403 : vector<1x1x5x5xf32> to vector<5x5xf32>
    %405 = arith.addf %402, %404 : vector<5x5xf32>
    %c3_192 = arith.constant 3 : index
    %c0_193 = arith.constant 0 : index
    %c0_194 = arith.constant 0 : index
    %c0_195 = arith.constant 0 : index
    %406 = vector.load %arg12[%c3_192, %c0_193, %c0_194, %c0_195] : memref<4x2x5x5xf32, #tpu.memory_space<vmem>>, vector<1x1x5x5xf32>
    %407 = vector.shape_cast %406 : vector<1x1x5x5xf32> to vector<5x5xf32>
    %408 = vector.shape_cast %405 : vector<5x5xf32> to vector<1x1x5x5xf32>
    tpu.vector_store %arg12[%c3_192, %c0_193, %c0_194, %c0_195], %408 {strides = array<i32>} : memref<4x2x5x5xf32, #tpu.memory_space<vmem>>, vector<1x1x5x5xf32>,
    %cst_196 = arith.constant dense<0xFF800000> : vector<5xf32>
    %409 = vector.multi_reduction <maximumf>, %405, %cst_196 [1] : vector<5x5xf32> to vector<5xf32>
    %410 = vector.shape_cast %409 : vector<5xf32> to vector<5x1xf32>
    %411 = vector.broadcast %410 : vector<5x1xf32> to vector<5x5xf32>
    %412 = arith.subf %405, %411 : vector<5x5xf32>
    %413 = math.exp %412 : vector<5x5xf32>
    %cst_197 = arith.constant dense<0.000000e+00> : vector<5xf32>
    %414 = vector.multi_reduction <add>, %413, %cst_197 [1] : vector<5x5xf32> to vector<5xf32>
    %415 = vector.shape_cast %414 : vector<5xf32> to vector<5x1xf32>
    %416 = tpu.reciprocal %415 {approx = true} : vector<5x1xf32> -> vector<5x1xf32>
    %417 = vector.broadcast %416 : vector<5x1xf32> to vector<5x5xf32>
    %418 = arith.mulf %413, %417 : vector<5x5xf32>
    %419 = arith.truncf %418 : vector<5x5xf32> to vector<5x5xbf16>
    %cst_198 = arith.constant dense<0.000000e+00> : vector<5x16xf32>
    %420 = tpu.matmul %419, %399, %cst_198 {dimension_numbers = #tpu.dot_dimension_numbers<[1], [0], [0], [1], [0, 0, 1, 1], [], []>} : vector<5x5xbf16>, vector<5x16xbf16>, vector<5x16xf32> -> vector<5x16xf32>
    %421 = vector.extract_strided_slice %393 {offsets = [0, 16], sizes = [5, 16], strides = [1, 1]} : vector<5x96xf32> to vector<5x16xf32>
    %422 = arith.truncf %421 : vector<5x16xf32> to vector<5x16xbf16>
    %423 = vector.extract_strided_slice %393 {offsets = [0, 48], sizes = [5, 16], strides = [1, 1]} : vector<5x96xf32> to vector<5x16xf32>
    %424 = arith.truncf %423 : vector<5x16xf32> to vector<5x16xbf16>
    %425 = vector.extract_strided_slice %393 {offsets = [0, 80], sizes = [5, 16], strides = [1, 1]} : vector<5x96xf32> to vector<5x16xf32>
    %426 = arith.truncf %425 : vector<5x16xf32> to vector<5x16xbf16>
    %cst_199 = arith.constant dense<0.000000e+00> : vector<5x5xf32>
    %427 = tpu.matmul %422, %424, %cst_199 {dimension_numbers = #tpu.dot_dimension_numbers<[1], [1], [0], [0], [0, 0, 1, 0], [], []>} : vector<5x16xbf16>, vector<5x16xbf16>, vector<5x5xf32> -> vector<5x5xf32>
    %cst_200 = arith.constant 2.500000e-01 : f32
    %428 = vector.broadcast %cst_200 : f32 to vector<5x5xf32>
    %429 = arith.mulf %427, %428 : vector<5x5xf32>
    %c3_201 = arith.constant 3 : index
    %c1_202 = arith.constant 1 : index
    %c0_203 = arith.constant 0 : index
    %c0_204 = arith.constant 0 : index
    %430 = vector.load %arg12[%c3_201, %c1_202, %c0_203, %c0_204] : memref<4x2x5x5xf32, #tpu.memory_space<vmem>>, vector<1x1x5x5xf32>
    %431 = vector.shape_cast %430 : vector<1x1x5x5xf32> to vector<5x5xf32>
    %432 = arith.addf %429, %431 : vector<5x5xf32>
    %c3_205 = arith.constant 3 : index
    %c1_206 = arith.constant 1 : index
    %c0_207 = arith.constant 0 : index
    %c0_208 = arith.constant 0 : index
    %433 = vector.load %arg12[%c3_205, %c1_206, %c0_207, %c0_208] : memref<4x2x5x5xf32, #tpu.memory_space<vmem>>, vector<1x1x5x5xf32>
    %434 = vector.shape_cast %433 : vector<1x1x5x5xf32> to vector<5x5xf32>
    %435 = vector.shape_cast %432 : vector<5x5xf32> to vector<1x1x5x5xf32>
    tpu.vector_store %arg12[%c3_205, %c1_206, %c0_207, %c0_208], %435 {strides = array<i32>} : memref<4x2x5x5xf32, #tpu.memory_space<vmem>>, vector<1x1x5x5xf32>,
    %cst_209 = arith.constant dense<0xFF800000> : vector<5xf32>
    %436 = vector.multi_reduction <maximumf>, %432, %cst_209 [1] : vector<5x5xf32> to vector<5xf32>
    %437 = vector.shape_cast %436 : vector<5xf32> to vector<5x1xf32>
    %438 = vector.broadcast %437 : vector<5x1xf32> to vector<5x5xf32>
    %439 = arith.subf %432, %438 : vector<5x5xf32>
    %440 = math.exp %439 : vector<5x5xf32>
    %cst_210 = arith.constant dense<0.000000e+00> : vector<5xf32>
    %441 = vector.multi_reduction <add>, %440, %cst_210 [1] : vector<5x5xf32> to vector<5xf32>
    %442 = vector.shape_cast %441 : vector<5xf32> to vector<5x1xf32>
    %443 = tpu.reciprocal %442 {approx = true} : vector<5x1xf32> -> vector<5x1xf32>
    %444 = vector.broadcast %443 : vector<5x1xf32> to vector<5x5xf32>
    %445 = arith.mulf %440, %444 : vector<5x5xf32>
    %446 = arith.truncf %445 : vector<5x5xf32> to vector<5x5xbf16>
    %cst_211 = arith.constant dense<0.000000e+00> : vector<5x16xf32>
    %447 = tpu.matmul %446, %426, %cst_211 {dimension_numbers = #tpu.dot_dimension_numbers<[1], [0], [0], [1], [0, 0, 1, 1], [], []>} : vector<5x5xbf16>, vector<5x16xbf16>, vector<5x16xf32> -> vector<5x16xf32>
    %448 = tpu.concatenate %420, %447 in 1 : vector<5x16xf32>, vector<5x16xf32> -> vector<5x32xf32>
    %449 = arith.truncf %448 : vector<5x32xf32> to vector<5x32xbf16>
    %cst_212 = arith.constant dense<0.000000e+00> : vector<5x32xf32>
    %450 = tpu.matmul %449, %8, %cst_212 {dimension_numbers = #tpu.dot_dimension_numbers<[1], [0], [0], [1], [0, 0, 1, 1], [], []>} : vector<5x32xbf16>, vector<32x32xbf16>, vector<5x32xf32> -> vector<5x32xf32>
    %451 = vector.broadcast %10 : vector<1x32xf32> to vector<5x32xf32>
    %452 = arith.addf %450, %451 : vector<5x32xf32>
    %453 = arith.addf %389, %452 : vector<5x32xf32>
    %cst_213 = arith.constant 0.999994993 : f32
    %454 = vector.broadcast %cst_213 : f32 to vector<5x32xf32>
    %455 = arith.mulf %453, %454 : vector<5x32xf32>
    %456 = arith.truncf %455 : vector<5x32xf32> to vector<5x32xbf16>
    %cst_214 = arith.constant dense<0.000000e+00> : vector<5x64xf32>
    %457 = tpu.matmul %456, %12, %cst_214 {dimension_numbers = #tpu.dot_dimension_numbers<[1], [0], [0], [1], [0, 0, 1, 1], [], []>} : vector<5x32xbf16>, vector<32x64xbf16>, vector<5x64xf32> -> vector<5x64xf32>
    %458 = vector.broadcast %14 : vector<1x64xf32> to vector<5x64xf32>
    %459 = arith.addf %457, %458 : vector<5x64xf32>
    %cst_215 = arith.constant 5.000000e-01 : f32
    %460 = vector.broadcast %cst_215 : f32 to vector<5x64xf32>
    %461 = arith.mulf %460, %459 : vector<5x64xf32>
    %cst_216 = arith.constant 0.707106769 : f32
    %462 = vector.broadcast %cst_216 : f32 to vector<5x64xf32>
    %463 = arith.mulf %459, %462 : vector<5x64xf32>
    %cst_217 = arith.constant 0.000000e+00 : f32
    %464 = vector.broadcast %cst_217 : f32 to vector<5x64xf32>
    %465 = arith.cmpf oge, %463, %464 : vector<5x64xf32>
    %cst_218 = arith.constant 1.000000e+00 : f32
    %cst_219 = arith.constant -1.000000e+00 : f32
    %466 = vector.broadcast %cst_218 : f32 to vector<5x64xf32>
    %467 = vector.broadcast %cst_219 : f32 to vector<5x64xf32>
    %468 = arith.select %465, %466, %467 : vector<5x64xi1>, vector<5x64xf32>
    %469 = math.absf %463 : vector<5x64xf32>
    %cst_220 = arith.constant 0.327591091 : f32
    %470 = vector.broadcast %cst_220 : f32 to vector<5x64xf32>
    %471 = arith.mulf %470, %469 : vector<5x64xf32>
    %cst_221 = arith.constant 1.000000e+00 : f32
    %472 = vector.broadcast %cst_221 : f32 to vector<5x64xf32>
    %473 = arith.addf %472, %471 : vector<5x64xf32>
    %cst_222 = arith.constant 1.000000e+00 : f32
    %474 = vector.broadcast %cst_222 : f32 to vector<5x64xf32>
    %475 = arith.divf %474, %473 : vector<5x64xf32>
    %cst_223 = arith.constant 1.06140542 : f32
    %476 = vector.broadcast %cst_223 : f32 to vector<5x64xf32>
    %477 = arith.mulf %476, %475 : vector<5x64xf32>
    %cst_224 = arith.constant -1.45315206 : f32
    %478 = vector.broadcast %cst_224 : f32 to vector<5x64xf32>
    %479 = arith.addf %477, %478 : vector<5x64xf32>
    %480 = arith.mulf %479, %475 : vector<5x64xf32>
    %cst_225 = arith.constant 1.42141378 : f32
    %481 = vector.broadcast %cst_225 : f32 to vector<5x64xf32>
    %482 = arith.addf %480, %481 : vector<5x64xf32>
    %483 = arith.mulf %482, %475 : vector<5x64xf32>
    %cst_226 = arith.constant -0.284496725 : f32
    %484 = vector.broadcast %cst_226 : f32 to vector<5x64xf32>
    %485 = arith.addf %483, %484 : vector<5x64xf32>
    %486 = arith.mulf %485, %475 : vector<5x64xf32>
    %cst_227 = arith.constant 0.254829586 : f32
    %487 = vector.broadcast %cst_227 : f32 to vector<5x64xf32>
    %488 = arith.addf %486, %487 : vector<5x64xf32>
    %489 = arith.mulf %488, %475 : vector<5x64xf32>
    %cst_228 = arith.constant 0.000000e+00 : f32
    %490 = vector.broadcast %cst_228 : f32 to vector<5x64xf32>
    %491 = arith.subf %490, %469 : vector<5x64xf32>
    %492 = arith.mulf %491, %469 : vector<5x64xf32>
    %493 = math.exp %492 : vector<5x64xf32>
    %494 = arith.mulf %489, %493 : vector<5x64xf32>
    %cst_229 = arith.constant 1.000000e+00 : f32
    %495 = vector.broadcast %cst_229 : f32 to vector<5x64xf32>
    %496 = arith.subf %495, %494 : vector<5x64xf32>
    %497 = arith.mulf %468, %496 : vector<5x64xf32>
    %cst_230 = arith.constant 1.000000e+00 : f32
    %498 = vector.broadcast %cst_230 : f32 to vector<5x64xf32>
    %499 = arith.addf %498, %497 : vector<5x64xf32>
    %500 = arith.mulf %461, %499 : vector<5x64xf32>
    %501 = arith.truncf %500 : vector<5x64xf32> to vector<5x64xbf16>
    %cst_231 = arith.constant dense<0.000000e+00> : vector<5x32xf32>
    %502 = tpu.matmul %501, %16, %cst_231 {dimension_numbers = #tpu.dot_dimension_numbers<[1], [0], [0], [1], [0, 0, 1, 1], [], []>} : vector<5x64xbf16>, vector<64x32xbf16>, vector<5x32xf32> -> vector<5x32xf32>
    %503 = vector.broadcast %18 : vector<1x32xf32> to vector<5x32xf32>
    %504 = arith.addf %502, %503 : vector<5x32xf32>
    %505 = arith.addf %455, %504 : vector<5x32xf32>
    %cst_232 = arith.constant 0.999994993 : f32
    %506 = vector.broadcast %cst_232 : f32 to vector<5x32xf32>
    %507 = arith.mulf %505, %506 : vector<5x32xf32>
    %c3_233 = arith.constant 3 : index
    %c0_234 = arith.constant 0 : index
    %c0_235 = arith.constant 0 : index
    %508 = vector.load %arg11[%c3_233, %c0_234, %c0_235] : memref<4x5x32xf32, #tpu.memory_space<vmem>>, vector<1x5x32xf32>
    %509 = vector.shape_cast %508 : vector<1x5x32xf32> to vector<5x32xf32>
    %510 = vector.shape_cast %507 : vector<5x32xf32> to vector<1x5x32xf32>
    tpu.vector_store %arg11[%c3_233, %c0_234, %c0_235], %510 {strides = array<i32>} : memref<4x5x32xf32, #tpu.memory_space<vmem>>, vector<1x5x32xf32>,
    return
  }
  func.func @transform_0(%arg0: i32, %arg1: i32) -> (i32, i32, i32) {
    %c0_i32 = arith.constant 0 : i32
    %c0_i32_0 = arith.constant 0 : i32
    %c0_i32_1 = arith.constant 0 : i32
    return %arg0, %c0_i32, %c0_i32_0 : i32, i32, i32
  }
  func.func @transform_1(%arg0: i32, %arg1: i32) -> (i32, i32, i32) {
    %c0_i32 = arith.constant 0 : i32
    %c0_i32_0 = arith.constant 0 : i32
    %c0_i32_1 = arith.constant 0 : i32
    return %arg1, %c0_i32, %c0_i32_0 : i32, i32, i32
  }
  func.func @transform_2(%arg0: i32, %arg1: i32) -> (i32, i32, i32) {
    %c0_i32 = arith.constant 0 : i32
    %c0_i32_0 = arith.constant 0 : i32
    %c0_i32_1 = arith.constant 0 : i32
    return %arg1, %c0_i32, %c0_i32_0 : i32, i32, i32
  }
  func.func @transform_3(%arg0: i32, %arg1: i32) -> (i32, i32, i32) {
    %c0_i32 = arith.constant 0 : i32
    %c0_i32_0 = arith.constant 0 : i32
    %c0_i32_1 = arith.constant 0 : i32
    return %arg1, %c0_i32, %c0_i32_0 : i32, i32, i32
  }
  func.func @transform_4(%arg0: i32, %arg1: i32) -> (i32, i32, i32) {
    %c0_i32 = arith.constant 0 : i32
    %c0_i32_0 = arith.constant 0 : i32
    %c0_i32_1 = arith.constant 0 : i32
    return %arg1, %c0_i32, %c0_i32_0 : i32, i32, i32
  }
  func.func @transform_5(%arg0: i32, %arg1: i32) -> (i32, i32, i32) {
    %c0_i32 = arith.constant 0 : i32
    %c0_i32_0 = arith.constant 0 : i32
    %c0_i32_1 = arith.constant 0 : i32
    return %arg1, %c0_i32, %c0_i32_0 : i32, i32, i32
  }
  func.func @transform_6(%arg0: i32, %arg1: i32) -> (i32, i32, i32) {
    %c0_i32 = arith.constant 0 : i32
    %c0_i32_0 = arith.constant 0 : i32
    %c0_i32_1 = arith.constant 0 : i32
    return %arg1, %c0_i32, %c0_i32_0 : i32, i32, i32
  }
  func.func @transform_7(%arg0: i32, %arg1: i32) -> (i32, i32, i32) {
    %c0_i32 = arith.constant 0 : i32
    %c0_i32_0 = arith.constant 0 : i32
    %c0_i32_1 = arith.constant 0 : i32
    return %arg1, %c0_i32, %c0_i32_0 : i32, i32, i32
  }
  func.func @transform_8(%arg0: i32, %arg1: i32) -> (i32, i32, i32) {
    %c0_i32 = arith.constant 0 : i32
    %c0_i32_0 = arith.constant 0 : i32
    %c0_i32_1 = arith.constant 0 : i32
    return %arg1, %c0_i32, %c0_i32_0 : i32, i32, i32
  }
  func.func @transform_9(%arg0: i32, %arg1: i32) -> (i32, i32, i32) {
    %c0_i32 = arith.constant 0 : i32
    %c0_i32_0 = arith.constant 0 : i32
    %c0_i32_1 = arith.constant 0 : i32
    return %arg0, %c0_i32, %c0_i32_0 : i32, i32, i32
  }
}

</mosaic_0001>

<llo_original>
// kernel: seasonal_block_forward.3
$region0: #{seasonal_block_forward.3}
  #allocation0 [shape = 'u32[]', space=smem, size = 0x4, offset = 0x4, fixed_abs, tag = 'smem constant byte address 0x4 - core index']
  #allocation1 [shape = 'u32[144,128]{1,0:T(1,128)}', space=vmem, size = 0x12000, scoped, tag = 'internal scratch']
  %s0 = inlined_call_operand.vmem [shape: bf16[40,4], index: 0, kind: input, shape index: {}]
  %s1 = inlined_call_operand.vmem [shape: bf16[4,32], index: 1, kind: input, shape index: {}]
  %s2 = inlined_call_operand.vmem [shape: f32[1,32], index: 2, kind: input, shape index: {}]
  %s3 = inlined_call_operand.vmem [shape: f32[40,32], index: 3, kind: output, shape index: {}]
  %s4 = sld [smem:[#allocation0]]
  $region22: #{seasonal_block_forward.3} parent=0
    _
  %s6 = ssub.s32 1, %s4
  %s7 = scalar_select 0, %s6, %s4
  // Predicated region
  $region2: #{seasonal_block_forward.3} parent=0 // pred_check
    _
  $region3: #{seasonal_block_forward.3} parent=0 // pred_check_branch
    %9 = sbr.rel (0) target = $region5
  $region4: #{seasonal_block_forward.3} parent=0 // pred_region
    _
  $region5: #{seasonal_block_forward.3} parent=0 // pred_fallthru
    _
  // Predicated region
  $region6: #{seasonal_block_forward.3} parent=0 // pred_check
    _
  $region7: #{seasonal_block_forward.3} parent=0 // pred_check_branch
    %11 = sbr.rel (0) target = $region9
  $region8: #{seasonal_block_forward.3} parent=0 // pred_region
    _
  $region9: #{seasonal_block_forward.3} parent=0 // pred_fallthru
    _
  // Predicated region
  $region10: #{seasonal_block_forward.3} parent=0 // pred_check
    _
  $region11: #{seasonal_block_forward.3} parent=0 // pred_check_branch
    %13 = sbr.rel (0) target = $region13
  $region12: #{seasonal_block_forward.3} parent=0 // pred_region
    _
  $region13: #{seasonal_block_forward.3} parent=0 // pred_fallthru
    _
  %v15 = vld [vmem:[%s0] sm:$0xf]
  %v16 = vld [vmem:[%s0 + $0x4] sm:$0xf]
  %v17 = vld [vmem:[%s0 + $0x8] sm:$0xf]
  %v18 = vld [vmem:[%s0 + $0xc] sm:$0xf]
  %v19 = vld [vmem:[%s0 + $0x10] sm:$0xf]
  %v20 = vld [vmem:[%s1] sm:$0x3]
  %v21 = vld [vmem:[%s2] sm:$0x1]
  %v23 = vlaneseq
  %v24 = vshrl.u32 %v23, 7
  %v25 = vsub.s32 0, %v24
  %v26 = vrot.slane %v21, %v25
  %v33 = vunpack.c.l.b16 %v15
  %v34 = vunpack.c.l.b16 %v16
  %v35 = vunpack.c.l.b16 %v17
  %v36 = vunpack.c.l.b16 %v18
  %v37 = vunpack.c.l.b16 %v19
  %v38 = vpack.c.b16 %v34, %v33
  %v39 = vpack.c.b16 %v36, %v35
  %v40 = vpack.c.b16 %v37, %v37
  %vm41 = vcmask 31744
  %v43 = vsel %vm41, %v38, 0
  %v46 = vsel %vm41, %v39, 0
  %v49 = vsel %vm41, %v40, 0
  %vm51 = vcmask 1041408
  %v53 = vsel %vm51, %v20, 0
  %55 = vmatprep.subr.bf16.mxu0 0
  %56 = vmatpush1.bf16.msra.mxu0 %v53
  %57 = vmatprep.subr.bf16.mxu0 0
  %58 = vmatpush1.bf16.msra.mxu0 0
  %59 = vmatprep.subr.bf16.mxu0 0
  %60 = vmatpush1.bf16.msra.mxu0 0
  %61 = vmatprep.subr.bf16.mxu0 0
  %62 = vmatpush1.bf16.msra.mxu0 0
  %63 = vmatprep.subr.bf16.mxu0 0
  %64 = vmatpush1.bf16.msra.mxu0 0
  %65 = vmatprep.subr.bf16.mxu0 0
  %66 = vmatpush1.bf16.msra.mxu0 0
  %67 = vmatprep.subr.bf16.mxu0 0
  %68 = vmatpush1.bf16.msra.mxu0 0
  %69 = vmatprep.subr.bf16.mxu0 0
  %70 = vmatpush1.bf16.msra.mxu0 0
  %71 = vmatprep.subr.bf16.mxu0 0
  %72 = vmatpush1.bf16.msra.mxu0 0
  %73 = vmatprep.subr.bf16.mxu0 0
  %74 = vmatpush1.bf16.msra.mxu0 0
  %75 = vmatprep.subr.bf16.mxu0 0
  %76 = vmatpush1.bf16.msra.mxu0 0
  %77 = vmatprep.subr.bf16.mxu0 0
  %78 = vmatpush1.bf16.msra.mxu0 0
  %79 = vmatprep.subr.bf16.mxu0 0
  %80 = vmatpush1.bf16.msra.mxu0 0
  %81 = vmatprep.subr.bf16.mxu0 0
  %82 = vmatpush1.bf16.msra.mxu0 0
  %83 = vmatprep.subr.bf16.mxu0 0
  %84 = vmatpush1.bf16.msra.mxu0 0
  %85 = vmatprep.subr.bf16.mxu0 0
  %86 = vmatpush1.bf16.msra.mxu0 0
  %87 = vmatprep.mubr.bf16.mxu0 0
  %88 = vmatmul.mubr.bf16.gmra.mrb[0].mxu0 %v43
  %v89 = vpop.f32.mrb[0].mxu0
  %v90 = vadd.f32 %v26, %v89
  %v91 = vpop.f32.mrb[0].mxu0
  %v92 = vpop.f32.mrb[0].mxu0
  %v93 = vadd.f32 %v26, %v92
  %v94 = vpop.f32.mrb[0].mxu0
  %95 = vmatprep.mubr.bf16.mxu0 0
  %96 = vmatmul.mubr.bf16.gmra.mrb[0].mxu0 %v46
  %v97 = vpop.f32.mrb[0].mxu0
  %v98 = vadd.f32 %v26, %v97
  %v99 = vpop.f32.mrb[0].mxu0
  %v100 = vpop.f32.mrb[0].mxu0
  %v101 = vadd.f32 %v26, %v100
  %v102 = vpop.f32.mrb[0].mxu0
  %103 = vmatprep.mubr.bf16.mxu0 0
  %104 = vmatmul.mubr.bf16.gmra.mrb[0].mxu0 %v49
  %v105 = vpop.f32.mrb[0].mxu0
  %v106 = vadd.f32 %v26, %v105
  %v107 = vpop.f32.mrb[0].mxu0
  %v108 = vpop.f32.mrb[0].mxu0
  %v109 = vpop.f32.mrb[0].mxu0
  %110 = vdwg.mxu0
  %vm111 = vcmask 261120
  %112 = vst.msk [vmem:[%s3] sm:$0xff] %vm111, %v90
  %113 = vst.msk [vmem:[%s3 + $0x8] sm:$0xff] %vm111, %v93
  %114 = vst.msk [vmem:[%s3 + $0x10] sm:$0xff] %vm111, %v98
  %115 = vst.msk [vmem:[%s3 + $0x18] sm:$0xff] %vm111, %v101
  %116 = vst.msk [vmem:[%s3 + $0x20] sm:$0xff] %vm111, %v106
  // Predicated region
  $region14: #{seasonal_block_forward.3} parent=0 // pred_check
    _
  $region15: #{seasonal_block_forward.3} parent=0 // pred_check_branch
    %118 = sbr.rel (0) target = $region17
  $region16: #{seasonal_block_forward.3} parent=0 // pred_region
    _
  $region17: #{seasonal_block_forward.3} parent=0 // pred_fallthru
    _
  // Predicated region
  $region18: #{seasonal_block_forward.3} parent=0 // pred_check
    _
  $region19: #{seasonal_block_forward.3} parent=0 // pred_check_branch
    %120 = sbr.rel (0) target = $region21
  $region20: #{seasonal_block_forward.3} parent=0 // pred_region
    _
  $region21: #{seasonal_block_forward.3} parent=0 // pred_fallthru
    _

// kernel: seasonal_block_forward.5
$region0: #{seasonal_block_forward.5}
  #allocation0 [shape = 'u32[]', space=smem, size = 0x4, offset = 0x4, fixed_abs, tag = 'smem constant byte address 0x4 - core index']
  #allocation1 [shape = 'u32[144,128]{1,0:T(1,128)}', space=vmem, size = 0x12000, scoped, tag = 'internal scratch']
  %s0 = inlined_call_operand.vmem [shape: bf16[8,160], index: 0, kind: input, shape index: {}]
  %s1 = inlined_call_operand.vmem [shape: bf16[160,8], index: 1, kind: input, shape index: {}]
  %s2 = inlined_call_operand.vmem [shape: f32[1,8], index: 2, kind: input, shape index: {}]
  %s3 = inlined_call_operand.vmem [shape: f32[8,8], index: 3, kind: output, shape index: {}]
  %s4 = sld [smem:[#allocation0]]
  $region22: #{seasonal_block_forward.5} parent=0
    _
  %s6 = ssub.s32 1, %s4
  %s7 = scalar_select 0, %s6, %s4
  // Predicated region
  $region2: #{seasonal_block_forward.5} parent=0 // pred_check
    _
  $region3: #{seasonal_block_forward.5} parent=0 // pred_check_branch
    %9 = sbr.rel (0) target = $region5
  $region4: #{seasonal_block_forward.5} parent=0 // pred_region
    _
  $region5: #{seasonal_block_forward.5} parent=0 // pred_fallthru
    _
  // Predicated region
  $region6: #{seasonal_block_forward.5} parent=0 // pred_check
    _
  $region7: #{seasonal_block_forward.5} parent=0 // pred_check_branch
    %11 = sbr.rel (0) target = $region9
  $region8: #{seasonal_block_forward.5} parent=0 // pred_region
    _
  $region9: #{seasonal_block_forward.5} parent=0 // pred_fallthru
    _
  // Predicated region
  $region10: #{seasonal_block_forward.5} parent=0 // pred_check
    _
  $region11: #{seasonal_block_forward.5} parent=0 // pred_check_branch
    %13 = sbr.rel (0) target = $region13
  $region12: #{seasonal_block_forward.5} parent=0 // pred_region
    _
  $region13: #{seasonal_block_forward.5} parent=0 // pred_fallthru
    _
  %v15 = vld [vmem:[%s0] sm:$0xff]
  %v16 = vld [vmem:[%s1] sm:$0xf]
  %v17 = vld [vmem:[%s1 + $0x4] sm:$0xf]
  %v18 = vld [vmem:[%s1 + $0x8] sm:$0xf]
  %v19 = vld [vmem:[%s1 + $0xc] sm:$0xf]
  %v20 = vld [vmem:[%s1 + $0x10] sm:$0xf]
  %v21 = vld [vmem:[%s1 + $0x14] sm:$0xf]
  %v22 = vld [vmem:[%s1 + $0x18] sm:$0xf]
  %v23 = vld [vmem:[%s1 + $0x1c] sm:$0xf]
  %v24 = vld [vmem:[%s1 + $0x20] sm:$0xf]
  %v25 = vld [vmem:[%s1 + $0x24] sm:$0xf]
  %v26 = vld [vmem:[%s1 + $0x28] sm:$0xf]
  %v27 = vld [vmem:[%s1 + $0x2c] sm:$0xf]
  %v28 = vld [vmem:[%s1 + $0x30] sm:$0xf]
  %v29 = vld [vmem:[%s1 + $0x34] sm:$0xf]
  %v30 = vld [vmem:[%s1 + $0x38] sm:$0xf]
  %v31 = vld [vmem:[%s1 + $0x3c] sm:$0xf]
  %v32 = vld [vmem:[%s1 + $0x40] sm:$0xf]
  %v33 = vld [vmem:[%s1 + $0x44] sm:$0xf]
  %v34 = vld [vmem:[%s1 + $0x48] sm:$0xf]
  %v35 = vld [vmem:[%s1 + $0x4c] sm:$0xf]
  %v36 = vld [vmem:[%s2] sm:$0x1]
  %v38 = vlaneseq
  %v39 = vshrl.u32 %v38, 7
  %v40 = vsub.s32 0, %v39
  %v41 = vrot.slane %v36, %v40
  %v44 = vunpack.c.l.b16 %v15
  %v45 = vunpack.c.h.b16 %v15
  %v46 = vpack.c.b16 %v44, %v44
  %v47 = vpack.c.b16 %v45, %v45
  %v69 = vunpack.c.l.b16 %v16
  %v70 = vunpack.c.l.b16 %v17
  %v71 = vunpack.c.l.b16 %v18
  %v72 = vunpack.c.l.b16 %v19
  %v73 = vunpack.c.l.b16 %v20
  %v74 = vunpack.c.l.b16 %v21
  %v75 = vunpack.c.l.b16 %v22
  %v76 = vunpack.c.l.b16 %v23
  %v77 = vunpack.c.l.b16 %v24
  %v78 = vunpack.c.l.b16 %v25
  %v79 = vunpack.c.l.b16 %v26
  %v80 = vunpack.c.l.b16 %v27
  %v81 = vunpack.c.l.b16 %v28
  %v82 = vunpack.c.l.b16 %v29
  %v83 = vunpack.c.l.b16 %v30
  %v84 = vunpack.c.l.b16 %v31
  %v85 = vunpack.c.l.b16 %v32
  %v86 = vunpack.c.l.b16 %v33
  %v87 = vunpack.c.l.b16 %v34
  %v88 = vunpack.c.l.b16 %v35
  %v89 = vpack.c.b16 %v70, %v69
  %v90 = vpack.c.b16 %v72, %v71
  %v91 = vpack.c.b16 %v74, %v73
  %v92 = vpack.c.b16 %v76, %v75
  %v93 = vpack.c.b16 %v78, %v77
  %v94 = vpack.c.b16 %v80, %v79
  %v95 = vpack.c.b16 %v82, %v81
  %v96 = vpack.c.b16 %v84, %v83
  %v97 = vpack.c.b16 %v86, %v85
  %v98 = vpack.c.b16 %v88, %v87
  %vm109 = vcmask 261120
  %v111 = vsel %vm109, %v47, 0
  %113 = vmatprep.subr.bf16.mxu0 0
  %114 = vmatpush1.bf16.msra.mxu0 %v89
  %115 = vmatprep.subr.bf16.mxu0 0
  %116 = vmatpush1.bf16.msra.mxu0 %v90
  %117 = vmatprep.subr.bf16.mxu0 0
  %118 = vmatpush1.bf16.msra.mxu0 %v91
  %119 = vmatprep.subr.bf16.mxu0 0
  %120 = vmatpush1.bf16.msra.mxu0 %v92
  %121 = vmatprep.subr.bf16.mxu0 0
  %122 = vmatpush1.bf16.msra.mxu0 %v93
  %123 = vmatprep.subr.bf16.mxu0 0
  %124 = vmatpush1.bf16.msra.mxu0 %v94
  %125 = vmatprep.subr.bf16.mxu0 0
  %126 = vmatpush1.bf16.msra.mxu0 %v95
  %127 = vmatprep.subr.bf16.mxu0 0
  %128 = vmatpush1.bf16.msra.mxu0 %v96
  %129 = vmatprep.subr.bf16.mxu0 0
  %130 = vmatpush1.bf16.msra.mxu0 %v97
  %131 = vmatprep.subr.bf16.mxu0 0
  %132 = vmatpush1.bf16.msra.mxu0 %v98
  %133 = vmatprep.subr.bf16.mxu0 0
  %134 = vmatpush1.bf16.msra.mxu0 0
  %135 = vmatprep.subr.bf16.mxu0 0
  %136 = vmatpush1.bf16.msra.mxu0 0
  %137 = vmatprep.subr.bf16.mxu0 0
  %138 = vmatpush1.bf16.msra.mxu0 0
  %139 = vmatprep.subr.bf16.mxu0 0
  %140 = vmatpush1.bf16.msra.mxu0 0
  %141 = vmatprep.subr.bf16.mxu0 0
  %142 = vmatpush1.bf16.msra.mxu0 0
  %143 = vmatprep.subr.bf16.mxu0 0
  %144 = vmatpush1.bf16.msra.mxu0 0
  %145 = vmatprep.mubr.bf16.mxu0 %v111
  %146 = vmatmul.mubr.bf16.gmra.mrb[0].mxu0 %v46
  %v147 = vpop.f32.mrb[0].mxu0
  %v148 = vadd.f32 %v41, %v147
  %v149 = vpop.f32.mrb[0].mxu0
  %v150 = vpop.f32.mrb[0].mxu0
  %v151 = vpop.f32.mrb[0].mxu0
  %152 = vdwg.mxu0
  %vm153 = vcmask 64512
  %154 = vst.msk [vmem:[%s3] sm:$0xff] %vm153, %v148
  // Predicated region
  $region14: #{seasonal_block_forward.5} parent=0 // pred_check
    _
  $region15: #{seasonal_block_forward.5} parent=0 // pred_check_branch
    %156 = sbr.rel (0) target = $region17
  $region16: #{seasonal_block_forward.5} parent=0 // pred_region
    _
  $region17: #{seasonal_block_forward.5} parent=0 // pred_fallthru
    _
  // Predicated region
  $region18: #{seasonal_block_forward.5} parent=0 // pred_check
    _
  $region19: #{seasonal_block_forward.5} parent=0 // pred_check_branch
    %158 = sbr.rel (0) target = $region21
  $region20: #{seasonal_block_forward.5} parent=0 // pred_region
    _
  $region21: #{seasonal_block_forward.5} parent=0 // pred_fallthru
    _

// kernel: seasonal_block_forward.4
$region0: #{seasonal_block_forward.4}
  #allocation0 [shape = 'u32[]', space=smem, size = 0x4, offset = 0x4, fixed_abs, tag = 'smem constant byte address 0x4 - core index']
  #allocation1 [shape = 'u32[144,128]{1,0:T(1,128)}', space=vmem, size = 0x12000, scoped, tag = 'internal scratch']
  #allocation2 [shape = 'f32[4,2,5,5]{3,2,1,0:T(8,128)}', space=vmem, size = 0x8000, scoped, tag = 'scratch operand']
  %s0 = inlined_call_operand.vmem [shape: f32[8,5,32], index: 0, kind: input, shape index: {}]
  %s1 = inlined_call_operand.vmem [shape: bf16[2,32,96], index: 1, kind: input, shape index: {}]
  %s2 = inlined_call_operand.vmem [shape: f32[2,1,96], index: 2, kind: input, shape index: {}]
  %s3 = inlined_call_operand.vmem [shape: bf16[2,32,32], index: 3, kind: input, shape index: {}]
  %s4 = inlined_call_operand.vmem [shape: f32[2,1,32], index: 4, kind: input, shape index: {}]
  %s5 = inlined_call_operand.vmem [shape: bf16[2,32,64], index: 5, kind: input, shape index: {}]
  %s6 = inlined_call_operand.vmem [shape: f32[2,1,64], index: 6, kind: input, shape index: {}]
  %s7 = inlined_call_operand.vmem [shape: bf16[2,64,32], index: 7, kind: input, shape index: {}]
  %s8 = inlined_call_operand.vmem [shape: f32[2,1,32], index: 8, kind: input, shape index: {}]
  %s9 = inlined_call_operand.vmem [shape: f32[8,5,32], index: 9, kind: output, shape index: {}]
  %s10 = sld [smem:[#allocation0]]
  $region73: #{seasonal_block_forward.4} parent=0
    _
  %s12 = ssub.s32 1, %s10
  %s13 = scalar_select 0, %s12, %s10
  loop: start=0, step=1, limit=6
  $region2: #{seasonal_block_forward.4} parent=0 // loop_pre_header
    _
  $region3: #{seasonal_block_forward.4} parent=0 // loop_header
    %s15 = sphi 0, %s19
    %p16 = scmp.ge.s32.totalorder %s15, 6
    %s22 = sphi 0, %s34
    %s23 = sphi 0, %s30
    %s24 = sphi 0, %s22
    %s25 = sphi 0, %s23
    %s26 = sphi 0, %s24
    %s27 = sphi 0, %s25
    %s37 = sphi 0, %s39
    %s40 = sphi 0, %s37
    %s41 = sphi 0, %s40
    %s57 = sphi 0, %s41
    %s63 = sphi 0, %s65
    %s66 = sphi 0, %s63
    %s67 = sphi 0, %s66
    %s83 = sphi 0, %s67
    %s89 = sphi 0, %s91
    %s92 = sphi 0, %s89
    %s93 = sphi 0, %s92
    %s109 = sphi 0, %s93
    %s115 = sphi 0, %s117
    %s118 = sphi 0, %s115
    %s119 = sphi 0, %s118
    %s135 = sphi 0, %s119
    %s141 = sphi 0, %s143
    %s144 = sphi 0, %s141
    %s145 = sphi 0, %s144
    %s161 = sphi 0, %s145
    %s167 = sphi 0, %s169
    %s170 = sphi 0, %s167
    %s171 = sphi 0, %s170
    %s187 = sphi 0, %s171
    %s193 = sphi 0, %s195
    %s196 = sphi 0, %s193
    %s197 = sphi 0, %s196
    %s213 = sphi 0, %s197
    %s219 = sphi 0, %s221
    %s222 = sphi 0, %s219
    %s223 = sphi 0, %s222
    %s239 = sphi 0, %s223
    %s245 = sphi 0, %s247
    %s248 = sphi 0, %s245
    %s249 = sphi 0, %s248
    %s265 = sphi 0, %s249
    %s271 = sphi 0, %s273
    %s274 = sphi 0, %s271
    %s275 = sphi 0, %s274
    %s291 = sphi 0, %s275
  $region4: #{seasonal_block_forward.4} parent=0 // loop_header_branch
    %18 = sbr.rel (%p16) target = $region8
  $region5: #{seasonal_block_forward.4} parent=0 // loop_body
    %s20 = ssub.s32 %s15, 1
    %s21 = ssub.s32 %s15, 2
    %s28 = sadd.s32 1, %s23
    %p29 = scmp.ge.s32.totalorder %s28, 2
    %s30 = scalar_select %p29, 0, %s28
    %s31 = sadd.s32 1, %s22
    %s32 = scalar_select %p29, %s31, %s22
    %p33 = scmp.ge.s32.totalorder %s32, 2
    %s34 = scalar_select %p33, 0, %s32
    %s35 = ssub.s32 %s22, %s34
    %p36 = scmp.eq.s32.totalorder %s35, 0
    %s38 = sadd.s32 %s37, 1
    %s39 = scalar_select %p36, %s37, %s38
    %p42 = pneg %p36
    %p43 = scmp.eq.s32.totalorder %s15, 3
    %p44 = por %p42, %p43
    %p45 = scmp.ne.s32.totalorder %s37, %s40
    %p46 = scmp.eq.s32.totalorder %s15, 0
    %p47 = por %p45, %p46
    %p48 = scmp.ne.s32.totalorder %s37, %s40
    %p49 = scmp.eq.s32.totalorder %s20, 3
    %p50 = por %p48, %p49
    %p51 = scmp.ne.s32.totalorder %s40, %s41
    %p52 = scmp.eq.s32.totalorder %s20, 0
    %p53 = por %p51, %p52
    %p54 = scmp.ne.s32.totalorder %s40, %s41
    %p55 = scmp.eq.s32.totalorder %s21, 3
    %p56 = por %p54, %p55
    %p58 = scmp.ne.s32.totalorder %s41, %s57
    %p59 = scmp.eq.s32.totalorder %s21, 0
    %p60 = por %p58, %p59
    %s61 = ssub.s32 %s23, %s30
    %p62 = scmp.eq.s32.totalorder %s61, 0
    %s64 = sadd.s32 %s63, 1
    %s65 = scalar_select %p62, %s63, %s64
    %p68 = pneg %p62
    %p69 = scmp.eq.s32.totalorder %s15, 3
    %p70 = por %p68, %p69
    %p71 = scmp.ne.s32.totalorder %s63, %s66
    %p72 = scmp.eq.s32.totalorder %s15, 0
    %p73 = por %p71, %p72
    %p74 = scmp.ne.s32.totalorder %s63, %s66
    %p75 = scmp.eq.s32.totalorder %s20, 3
    %p76 = por %p74, %p75
    %p77 = scmp.ne.s32.totalorder %s66, %s67
    %p78 = scmp.eq.s32.totalorder %s20, 0
    %p79 = por %p77, %p78
    %p80 = scmp.ne.s32.totalorder %s66, %s67
    %p81 = scmp.eq.s32.totalorder %s21, 3
    %p82 = por %p80, %p81
    %p84 = scmp.ne.s32.totalorder %s67, %s83
    %p85 = scmp.eq.s32.totalorder %s21, 0
    %p86 = por %p84, %p85
    %s87 = ssub.s32 %s23, %s30
    %p88 = scmp.eq.s32.totalorder %s87, 0
    %s90 = sadd.s32 %s89, 1
    %s91 = scalar_select %p88, %s89, %s90
    %p94 = pneg %p88
    %p95 = scmp.eq.s32.totalorder %s15, 3
    %p96 = por %p94, %p95
    %p97 = scmp.ne.s32.totalorder %s89, %s92
    %p98 = scmp.eq.s32.totalorder %s15, 0
    %p99 = por %p97, %p98
    %p100 = scmp.ne.s32.totalorder %s89, %s92
    %p101 = scmp.eq.s32.totalorder %s20, 3
    %p102 = por %p100, %p101
    %p103 = scmp.ne.s32.totalorder %s92, %s93
    %p104 = scmp.eq.s32.totalorder %s20, 0
    %p105 = por %p103, %p104
    %p106 = scmp.ne.s32.totalorder %s92, %s93
    %p107 = scmp.eq.s32.totalorder %s21, 3
    %p108 = por %p106, %p107
    %p110 = scmp.ne.s32.totalorder %s93, %s109
    %p111 = scmp.eq.s32.totalorder %s21, 0
    %p112 = por %p110, %p111
    %s113 = ssub.s32 %s23, %s30
    %p114 = scmp.eq.s32.totalorder %s113, 0
    %s116 = sadd.s32 %s115, 1
    %s117 = scalar_select %p114, %s115, %s116
    %p120 = pneg %p114
    %p121 = scmp.eq.s32.totalorder %s15, 3
    %p122 = por %p120, %p121
    %p123 = scmp.ne.s32.totalorder %s115, %s118
    %p124 = scmp.eq.s32.totalorder %s15, 0
    %p125 = por %p123, %p124
    %p126 = scmp.ne.s32.totalorder %s115, %s118
    %p127 = scmp.eq.s32.totalorder %s20, 3
    %p128 = por %p126, %p127
    %p129 = scmp.ne.s32.totalorder %s118, %s119
    %p130 = scmp.eq.s32.totalorder %s20, 0
    %p131 = por %p129, %p130
    %p132 = scmp.ne.s32.totalorder %s118, %s119
    %p133 = scmp.eq.s32.totalorder %s21, 3
    %p134 = por %p132, %p133
    %p136 = scmp.ne.s32.totalorder %s119, %s135
    %p137 = scmp.eq.s32.totalorder %s21, 0
    %p138 = por %p136, %p137
    %s139 = ssub.s32 %s23, %s30
    %p140 = scmp.eq.s32.totalorder %s139, 0
    %s142 = sadd.s32 %s141, 1
    %s143 = scalar_select %p140, %s141, %s142
    %p146 = pneg %p140
    %p147 = scmp.eq.s32.totalorder %s15, 3
    %p148 = por %p146, %p147
    %p149 = scmp.ne.s32.totalorder %s141, %s144
    %p150 = scmp.eq.s32.totalorder %s15, 0
    %p151 = por %p149, %p150
    %p152 = scmp.ne.s32.totalorder %s141, %s144
    %p153 = scmp.eq.s32.totalorder %s20, 3
    %p154 = por %p152, %p153
    %p155 = scmp.ne.s32.totalorder %s144, %s145
    %p156 = scmp.eq.s32.totalorder %s20, 0
    %p157 = por %p155, %p156
    %p158 = scmp.ne.s32.totalorder %s144, %s145
    %p159 = scmp.eq.s32.totalorder %s21, 3
    %p160 = por %p158, %p159
    %p162 = scmp.ne.s32.totalorder %s145, %s161
    %p163 = scmp.eq.s32.totalorder %s21, 0
    %p164 = por %p162, %p163
    %s165 = ssub.s32 %s23, %s30
    %p166 = scmp.eq.s32.totalorder %s165, 0
    %s168 = sadd.s32 %s167, 1
    %s169 = scalar_select %p166, %s167, %s168
    %p172 = pneg %p166
    %p173 = scmp.eq.s32.totalorder %s15, 3
    %p174 = por %p172, %p173
    %p175 = scmp.ne.s32.totalorder %s167, %s170
    %p176 = scmp.eq.s32.totalorder %s15, 0
    %p177 = por %p175, %p176
    %p178 = scmp.ne.s32.totalorder %s167, %s170
    %p179 = scmp.eq.s32.totalorder %s20, 3
    %p180 = por %p178, %p179
    %p181 = scmp.ne.s32.totalorder %s170, %s171
    %p182 = scmp.eq.s32.totalorder %s20, 0
    %p183 = por %p181, %p182
    %p184 = scmp.ne.s32.totalorder %s170, %s171
    %p185 = scmp.eq.s32.totalorder %s21, 3
    %p186 = por %p184, %p185
    %p188 = scmp.ne.s32.totalorder %s171, %s187
    %p189 = scmp.eq.s32.totalorder %s21, 0
    %p190 = por %p188, %p189
    %s191 = ssub.s32 %s23, %s30
    %p192 = scmp.eq.s32.totalorder %s191, 0
    %s194 = sadd.s32 %s193, 1
    %s195 = scalar_select %p192, %s193, %s194
    %p198 = pneg %p192
    %p199 = scmp.eq.s32.totalorder %s15, 3
    %p200 = por %p198, %p199
    %p201 = scmp.ne.s32.totalorder %s193, %s196
    %p202 = scmp.eq.s32.totalorder %s15, 0
    %p203 = por %p201, %p202
    %p204 = scmp.ne.s32.totalorder %s193, %s196
    %p205 = scmp.eq.s32.totalorder %s20, 3
    %p206 = por %p204, %p205
    %p207 = scmp.ne.s32.totalorder %s196, %s197
    %p208 = scmp.eq.s32.totalorder %s20, 0
    %p209 = por %p207, %p208
    %p210 = scmp.ne.s32.totalorder %s196, %s197
    %p211 = scmp.eq.s32.totalorder %s21, 3
    %p212 = por %p210, %p211
    %p214 = scmp.ne.s32.totalorder %s197, %s213
    %p215 = scmp.eq.s32.totalorder %s21, 0
    %p216 = por %p214, %p215
    %s217 = ssub.s32 %s23, %s30
    %p218 = scmp.eq.s32.totalorder %s217, 0
    %s220 = sadd.s32 %s219, 1
    %s221 = scalar_select %p218, %s219, %s220
    %p224 = pneg %p218
    %p225 = scmp.eq.s32.totalorder %s15, 3
    %p226 = por %p224, %p225
    %p227 = scmp.ne.s32.totalorder %s219, %s222
    %p228 = scmp.eq.s32.totalorder %s15, 0
    %p229 = por %p227, %p228
    %p230 = scmp.ne.s32.totalorder %s219, %s222
    %p231 = scmp.eq.s32.totalorder %s20, 3
    %p232 = por %p230, %p231
    %p233 = scmp.ne.s32.totalorder %s222, %s223
    %p234 = scmp.eq.s32.totalorder %s20, 0
    %p235 = por %p233, %p234
    %p236 = scmp.ne.s32.totalorder %s222, %s223
    %p237 = scmp.eq.s32.totalorder %s21, 3
    %p238 = por %p236, %p237
    %p240 = scmp.ne.s32.totalorder %s223, %s239
    %p241 = scmp.eq.s32.totalorder %s21, 0
    %p242 = por %p240, %p241
    %s243 = ssub.s32 %s23, %s30
    %p244 = scmp.eq.s32.totalorder %s243, 0
    %s246 = sadd.s32 %s245, 1
    %s247 = scalar_select %p244, %s245, %s246
    %p250 = pneg %p244
    %p251 = scmp.eq.s32.totalorder %s15, 3
    %p252 = por %p250, %p251
    %p253 = scmp.ne.s32.totalorder %s245, %s248
    %p254 = scmp.eq.s32.totalorder %s15, 0
    %p255 = por %p253, %p254
    %p256 = scmp.ne.s32.totalorder %s245, %s248
    %p257 = scmp.eq.s32.totalorder %s20, 3
    %p258 = por %p256, %p257
    %p259 = scmp.ne.s32.totalorder %s248, %s249
    %p260 = scmp.eq.s32.totalorder %s20, 0
    %p261 = por %p259, %p260
    %p262 = scmp.ne.s32.totalorder %s248, %s249
    %p263 = scmp.eq.s32.totalorder %s21, 3
    %p264 = por %p262, %p263
    %p266 = scmp.ne.s32.totalorder %s249, %s265
    %p267 = scmp.eq.s32.totalorder %s21, 0
    %p268 = por %p266, %p267
    %s269 = ssub.s32 %s22, %s34
    %p270 = scmp.eq.s32.totalorder %s269, 0
    %s272 = sadd.s32 %s271, 1
    %s273 = scalar_select %p270, %s271, %s272
    %p276 = pneg %p270
    %p277 = scmp.eq.s32.totalorder %s15, 3
    %p278 = por %p276, %p277
    %p279 = scmp.ne.s32.totalorder %s271, %s274
    %p280 = scmp.eq.s32.totalorder %s15, 0
    %p281 = por %p279, %p280
    %p282 = scmp.ne.s32.totalorder %s271, %s274
    %p283 = scmp.eq.s32.totalorder %s20, 3
    %p284 = por %p282, %p283
    %p285 = scmp.ne.s32.totalorder %s274, %s275
    %p286 = scmp.eq.s32.totalorder %s20, 0
    %p287 = por %p285, %p286
    %p288 = scmp.ne.s32.totalorder %s274, %s275
    %p289 = scmp.eq.s32.totalorder %s21, 3
    %p290 = por %p288, %p289
    %p292 = scmp.ne.s32.totalorder %s275, %s291
    %p293 = scmp.eq.s32.totalorder %s21, 0
    %p294 = por %p292, %p293
    %p295 = scmp.le.s32.totalorder 1, %s15
    %p296 = scmp.lt.s32.totalorder %s15, 5
    %p297 = pnand %p295, %p296
    %p298 = pneg %p297
    // Predicated region
    $region9: #{seasonal_block_forward.4} parent=5 // pred_check
      _
    $region10: #{seasonal_block_forward.4} parent=5 // pred_check_branch
      %300 = sbr.rel (%p297) target = $region12
    $region11: #{seasonal_block_forward.4} parent=5 // pred_region
      %s301 = ssub.s32 %s15, 1
    $region12: #{seasonal_block_forward.4} parent=5 // pred_fallthru
      _
    %p302 = scmp.lt.s32.totalorder %s15, 4
    // Predicated region
    $region13: #{seasonal_block_forward.4} parent=5 // pred_check
      %p303 = pneg %p302
    $region14: #{seasonal_block_forward.4} parent=5 // pred_check_branch
      %305 = sbr.rel (%p303) target = $region16
    $region15: #{seasonal_block_forward.4} parent=5 // pred_region
      // Predicated region
      $region17: #{seasonal_block_forward.4} parent=15 // pred_check
        %p306 = pneg %p47
      $region18: #{seasonal_block_forward.4} parent=15 // pred_check_branch
        %308 = sbr.rel (%p306) target = $region20
      $region19: #{seasonal_block_forward.4} parent=15 // pred_region
        %s309 = smul.u32 4, %s22
        %p310 = scmp.lt.s32.totalorder %s309, 7
        %s311 = scalar_select %p310, %s309, 7
        %s312 = smul.addr %s311, 8
        %s313 = scalar_lea.vmem %s0, %s312
        %s314 = smul.u32 4, %s22
      $region20: #{seasonal_block_forward.4} parent=15 // pred_fallthru
        _
      // Predicated region
      $region21: #{seasonal_block_forward.4} parent=15 // pred_check
        %p315 = pneg %p73
      $region22: #{seasonal_block_forward.4} parent=15 // pred_check_branch
        %317 = sbr.rel (%p315) target = $region24
      $region23: #{seasonal_block_forward.4} parent=15 // pred_region
        %p318 = scmp.lt.s32.totalorder %s23, 1
        %s319 = scalar_select %p318, %s23, 1
        %s320 = smul.addr %s319, 4
        %s321 = smul.addr %s320, 4
        %s322 = scalar_lea.vmem %s1, %s321
      $region24: #{seasonal_block_forward.4} parent=15 // pred_fallthru
        _
      // Predicated region
      $region25: #{seasonal_block_forward.4} parent=15 // pred_check
        %p323 = pneg %p99
      $region26: #{seasonal_block_forward.4} parent=15 // pred_check_branch
        %325 = sbr.rel (%p323) target = $region28
      $region27: #{seasonal_block_forward.4} parent=15 // pred_region
        %p326 = scmp.lt.s32.totalorder %s23, 1
        %s327 = scalar_select %p326, %s23, 1
        %s328 = scalar_lea.vmem %s2, %s327
      $region28: #{seasonal_block_forward.4} parent=15 // pred_fallthru
        _
      // Predicated region
      $region29: #{seasonal_block_forward.4} parent=15 // pred_check
        %p329 = pneg %p125
      $region30: #{seasonal_block_forward.4} parent=15 // pred_check_branch
        %331 = sbr.rel (%p329) target = $region32
      $region31: #{seasonal_block_forward.4} parent=15 // pred_region
        %p332 = scmp.lt.s32.totalorder %s23, 1
        %s333 = scalar_select %p332, %s23, 1
        %s334 = smul.addr %s333, 4
        %s335 = smul.addr %s334, 4
        %s336 = scalar_lea.vmem %s3, %s335
      $region32: #{seasonal_block_forward.4} parent=15 // pred_fallthru
        _
      // Predicated region
      $region33: #{seasonal_block_forward.4} parent=15 // pred_check
        %p337 = pneg %p151
      $region34: #{seasonal_block_forward.4} parent=15 // pred_check_branch
        %339 = sbr.rel (%p337) target = $region36
      $region35: #{seasonal_block_forward.4} parent=15 // pred_region
        %p340 = scmp.lt.s32.totalorder %s23, 1
        %s341 = scalar_select %p340, %s23, 1
        %s342 = scalar_lea.vmem %s4, %s341
      $region36: #{seasonal_block_forward.4} parent=15 // pred_fallthru
        _
      // Predicated region
      $region37: #{seasonal_block_forward.4} parent=15 // pred_check
        %p343 = pneg %p177
      $region38: #{seasonal_block_forward.4} parent=15 // pred_check_branch
        %345 = sbr.rel (%p343) target = $region40
      $region39: #{seasonal_block_forward.4} parent=15 // pred_region
        %p346 = scmp.lt.s32.totalorder %s23, 1
        %s347 = scalar_select %p346, %s23, 1
        %s348 = smul.addr %s347, 4
        %s349 = smul.addr %s348, 4
        %s350 = scalar_lea.vmem %s5, %s349
      $region40: #{seasonal_block_forward.4} parent=15 // pred_fallthru
        _
      // Predicated region
      $region41: #{seasonal_block_forward.4} parent=15 // pred_check
        %p351 = pneg %p203
      $region42: #{seasonal_block_forward.4} parent=15 // pred_check_branch
        %353 = sbr.rel (%p351) target = $region44
      $region43: #{seasonal_block_forward.4} parent=15 // pred_region
        %p354 = scmp.lt.s32.totalorder %s23, 1
        %s355 = scalar_select %p354, %s23, 1
        %s356 = scalar_lea.vmem %s6, %s355
      $region44: #{seasonal_block_forward.4} parent=15 // pred_fallthru
        _
      // Predicated region
      $region45: #{seasonal_block_forward.4} parent=15 // pred_check
        %p357 = pneg %p229
      $region46: #{seasonal_block_forward.4} parent=15 // pred_check_branch
        %359 = sbr.rel (%p357) target = $region48
      $region47: #{seasonal_block_forward.4} parent=15 // pred_region
        %p360 = scmp.lt.s32.totalorder %s23, 1
        %s361 = scalar_select %p360, %s23, 1
        %s362 = smul.addr %s361, 8
        %s363 = smul.addr %s362, 4
        %s364 = scalar_lea.vmem %s7, %s363
      $region48: #{seasonal_block_forward.4} parent=15 // pred_fallthru
        _
      // Predicated region
      $region49: #{seasonal_block_forward.4} parent=15 // pred_check
        %p365 = pneg %p255
      $region50: #{seasonal_block_forward.4} parent=15 // pred_check_branch
        %367 = sbr.rel (%p365) target = $region52
      $region51: #{seasonal_block_forward.4} parent=15 // pred_region
        %p368 = scmp.lt.s32.totalorder %s23, 1
        %s369 = scalar_select %p368, %s23, 1
        %s370 = scalar_lea.vmem %s8, %s369
      $region52: #{seasonal_block_forward.4} parent=15 // pred_fallthru
        _
    $region16: #{seasonal_block_forward.4} parent=5 // pred_fallthru
      _
    %p371 = scmp.le.s32.totalorder 1, %s15
    %p372 = scmp.lt.s32.totalorder %s15, 5
    %p373 = pnand %p371, %p372
    %p374 = pneg %p373
    // Predicated region
    $region53: #{seasonal_block_forward.4} parent=5 // pred_check
      _
    $region54: #{seasonal_block_forward.4} parent=5 // pred_check_branch
      %376 = sbr.rel (%p373) target = $region56
    $region55: #{seasonal_block_forward.4} parent=5 // pred_region
      %s377 = ssub.s32 %s15, 1
      %s378 = smul.u32 4, %s24
      %p379 = scmp.lt.s32.totalorder %s378, 7
      %s380 = scalar_select %p379, %s378, 7
      %s381 = smul.addr %s380, 8
      %s382 = scalar_lea.vmem %s0, %s381
      %p383 = pneg %p53
      %p384 = pneg %p50
      %p385 = scmp.lt.s32.totalorder %s25, 1
      %s386 = scalar_select %p385, %s25, 1
      %s387 = smul.addr %s386, 4
      %s388 = smul.addr %s387, 4
      %s389 = scalar_lea.vmem %s1, %s388
      %p390 = pneg %p79
      %p391 = pneg %p76
      %p392 = scmp.lt.s32.totalorder %s25, 1
      %s393 = scalar_select %p392, %s25, 1
      %s394 = scalar_lea.vmem %s2, %s393
      %p395 = pneg %p105
      %p396 = pneg %p102
      %p397 = scmp.lt.s32.totalorder %s25, 1
      %s398 = scalar_select %p397, %s25, 1
      %s399 = smul.addr %s398, 4
      %s400 = smul.addr %s399, 4
      %s401 = scalar_lea.vmem %s3, %s400
      %p402 = pneg %p131
      %p403 = pneg %p128
      %p404 = scmp.lt.s32.totalorder %s25, 1
      %s405 = scalar_select %p404, %s25, 1
      %s406 = scalar_lea.vmem %s4, %s405
      %p407 = pneg %p157
      %p408 = pneg %p154
      %p409 = scmp.lt.s32.totalorder %s25, 1
      %s410 = scalar_select %p409, %s25, 1
      %s411 = smul.addr %s410, 4
      %s412 = smul.addr %s411, 4
      %s413 = scalar_lea.vmem %s5, %s412
      %p414 = pneg %p183
      %p415 = pneg %p180
      %p416 = scmp.lt.s32.totalorder %s25, 1
      %s417 = scalar_select %p416, %s25, 1
      %s418 = scalar_lea.vmem %s6, %s417
      %p419 = pneg %p209
      %p420 = pneg %p206
      %p421 = scmp.lt.s32.totalorder %s25, 1
      %s422 = scalar_select %p421, %s25, 1
      %s423 = smul.addr %s422, 8
      %s424 = smul.addr %s423, 4
      %s425 = scalar_lea.vmem %s7, %s424
      %p426 = pneg %p235
      %p427 = pneg %p232
      %p428 = scmp.lt.s32.totalorder %s25, 1
      %s429 = scalar_select %p428, %s25, 1
      %s430 = scalar_lea.vmem %s8, %s429
      %p431 = pneg %p261
      %p432 = pneg %p258
      %p433 = pneg %p287
      %p434 = pneg %p284
      %s435 = smul.u32 4, %s24
      %p436 = scmp.lt.s32.totalorder %s435, 7
      %s437 = scalar_select %p436, %s435, 7
      %s438 = smul.addr %s437, 8
      %s439 = scalar_lea.vmem %s9, %s438
      %s440 = smul.u32 4, %s24
      %p441 = scmp.lt.s32.totalorder %s440, 7
      %s442 = scalar_select %p441, %s440, 7
      %s443 = smul.addr %s442, 8
      %s444 = scalar_lea.vmem %s0, %s443
      %s445 = smul.u32 4, %s24
      %p446 = scmp.lt.s32.totalorder %s25, 1
      %s447 = scalar_select %p446, %s25, 1
      %s448 = smul.addr %s447, 4
      %s449 = smul.addr %s448, 4
      %s450 = scalar_lea.vmem %s1, %s449
      %p451 = scmp.lt.s32.totalorder %s25, 1
      %s452 = scalar_select %p451, %s25, 1
      %s453 = scalar_lea.vmem %s2, %s452
      %p454 = scmp.lt.s32.totalorder %s25, 1
      %s455 = scalar_select %p454, %s25, 1
      %s456 = smul.addr %s455, 4
      %s457 = smul.addr %s456, 4
      %s458 = scalar_lea.vmem %s3, %s457
      %p459 = scmp.lt.s32.totalorder %s25, 1
      %s460 = scalar_select %p459, %s25, 1
      %s461 = scalar_lea.vmem %s4, %s460
      %p462 = scmp.lt.s32.totalorder %s25, 1
      %s463 = scalar_select %p462, %s25, 1
      %s464 = smul.addr %s463, 4
      %s465 = smul.addr %s464, 4
      %s466 = scalar_lea.vmem %s5, %s465
      %p467 = scmp.lt.s32.totalorder %s25, 1
      %s468 = scalar_select %p467, %s25, 1
      %s469 = scalar_lea.vmem %s6, %s468
      %p470 = scmp.lt.s32.totalorder %s25, 1
      %s471 = scalar_select %p470, %s25, 1
      %s472 = smul.addr %s471, 8
      %s473 = smul.addr %s472, 4
      %s474 = scalar_lea.vmem %s7, %s473
      %p475 = scmp.lt.s32.totalorder %s25, 1
      %s476 = scalar_select %p475, %s25, 1
      %s477 = scalar_lea.vmem %s8, %s476
      %s478 = smul.u32 4, %s24
      %p479 = scmp.lt.s32.totalorder %s478, 7
      %s480 = scalar_select %p479, %s478, 7
      %s481 = smul.addr %s480, 8
      %s482 = scalar_lea.vmem %s9, %s481
      %s483 = smul.u32 4, %s24
      %p485 = scmp.eq.s32.totalorder %s25, 0
      // Predicated region
      $region57: #{seasonal_block_forward.4} parent=55 // pred_check
        %p486 = pneg %p485
      $region58: #{seasonal_block_forward.4} parent=55 // pred_check_branch
        %488 = sbr.rel (%p486) target = $region60
      $region59: #{seasonal_block_forward.4} parent=55 // pred_region
        %v489 = vld [vmem:[%s444] sm:$0x1f]
        %v490 = vld [vmem:[%s444 + $0x8] sm:$0x1f]
        %v491 = vld [vmem:[%s444 + $0x10] sm:$0x1f]
        %v492 = vld [vmem:[%s444 + $0x18] sm:$0x1f]
        %vm493 = vcmask 258048
        %494 = vst.msk [vmem:[%s482] sm:$0x1f] %vm493, %v489
        %495 = vst.msk [vmem:[%s482 + $0x8] sm:$0x1f] %vm493, %v490
        %496 = vst.msk [vmem:[%s482 + $0x10] sm:$0x1f] %vm493, %v491
        %497 = vst.msk [vmem:[%s482 + $0x18] sm:$0x1f] %vm493, %v492
        %vm498 = vcmask 36864
        %499 = vst.msk [vmem:[#allocation2] sm:$0x1f] %vm498, 0.0
        %500 = vst.msk [vmem:[#allocation2 + $0x8] sm:$0x1f] %vm498, 0.0
        %501 = vst.msk [vmem:[#allocation2 + $0x10] sm:$0x1f] %vm498, 0.0
        %502 = vst.msk [vmem:[#allocation2 + $0x18] sm:$0x1f] %vm498, 0.0
        %503 = vst.msk [vmem:[#allocation2 + $0x20] sm:$0x1f] %vm498, 0.0
        %504 = vst.msk [vmem:[#allocation2 + $0x28] sm:$0x1f] %vm498, 0.0
        %505 = vst.msk [vmem:[#allocation2 + $0x30] sm:$0x1f] %vm498, 0.0
        %506 = vst.msk [vmem:[#allocation2 + $0x38] sm:$0x1f] %vm498, 0.0
      $region60: #{seasonal_block_forward.4} parent=55 // pred_fallthru
        _
      %v507 = vld [vmem:[%s450] sm:$0xf]
      %v508 = vld [vmem:[%s450 + $0x4] sm:$0xf]
      %v509 = vld [vmem:[%s450 + $0x8] sm:$0xf]
      %v510 = vld [vmem:[%s450 + $0xc] sm:$0xf]
      %v511 = vld [vmem:[%s453] sm:$0x1]
      %v512 = vld [vmem:[%s458] sm:$0xf]
      %v513 = vld [vmem:[%s458 + $0x4] sm:$0xf]
      %v514 = vld [vmem:[%s458 + $0x8] sm:$0xf]
      %v515 = vld [vmem:[%s458 + $0xc] sm:$0xf]
      %v516 = vld [vmem:[%s461] sm:$0x1]
      %v517 = vld [vmem:[%s466] sm:$0xf]
      %v518 = vld [vmem:[%s466 + $0x4] sm:$0xf]
      %v519 = vld [vmem:[%s466 + $0x8] sm:$0xf]
      %v520 = vld [vmem:[%s466 + $0xc] sm:$0xf]
      %v521 = vld [vmem:[%s469] sm:$0x1]
      %v522 = vld [vmem:[%s474] sm:$0xf]
      %v523 = vld [vmem:[%s474 + $0x4] sm:$0xf]
      %v524 = vld [vmem:[%s474 + $0x8] sm:$0xf]
      %v525 = vld [vmem:[%s474 + $0xc] sm:$0xf]
      %v526 = vld [vmem:[%s474 + $0x10] sm:$0xf]
      %v527 = vld [vmem:[%s474 + $0x14] sm:$0xf]
      %v528 = vld [vmem:[%s474 + $0x18] sm:$0xf]
      %v529 = vld [vmem:[%s474 + $0x1c] sm:$0xf]
      %v530 = vld [vmem:[%s477] sm:$0x1]
      %v531 = vld [vmem:[%s482] sm:$0x1f]
      %v532 = vpack.c.bf16 %v531, %v531
      %v534 = vlaneseq
      %v535 = vshrl.u32 %v534, 7
      %v536 = vsub.s32 0, %v535
      %v537 = vrot.slane %v511, %v536
      %v543 = vunpack.c.l.b16 %v507
      %v544 = vunpack.c.l.b16 %v508
      %v545 = vunpack.c.l.b16 %v509
      %v546 = vunpack.c.l.b16 %v510
      %v547 = vpack.c.b16 %v544, %v543
      %v548 = vpack.c.b16 %v546, %v545
      %vm551 = vcmask 261120
      %v553 = vsel %vm551, %v532, 0
      %555 = vmatprep.subr.bf16.mxu0 0
      %556 = vmatpush1.bf16.msra.mxu0 %v547
      %557 = vmatprep.subr.bf16.mxu0 0
      %558 = vmatpush1.bf16.msra.mxu0 %v548
      %559 = vmatprep.subr.bf16.mxu0 0
      %560 = vmatpush1.bf16.msra.mxu0 0
      %561 = vmatprep.subr.bf16.mxu0 0
      %562 = vmatpush1.bf16.msra.mxu0 0
      %563 = vmatprep.subr.bf16.mxu0 0
      %564 = vmatpush1.bf16.msra.mxu0 0
      %565 = vmatprep.subr.bf16.mxu0 0
      %566 = vmatpush1.bf16.msra.mxu0 0
      %567 = vmatprep.subr.bf16.mxu0 0
      %568 = vmatpush1.bf16.msra.mxu0 0
      %569 = vmatprep.subr.bf16.mxu0 0
      %570 = vmatpush1.bf16.msra.mxu0 0
      %571 = vmatprep.subr.bf16.mxu0 0
      %572 = vmatpush1.bf16.msra.mxu0 0
      %573 = vmatprep.subr.bf16.mxu0 0
      %574 = vmatpush1.bf16.msra.mxu0 0
      %575 = vmatprep.subr.bf16.mxu0 0
      %576 = vmatpush1.bf16.msra.mxu0 0
      %577 = vmatprep.subr.bf16.mxu0 0
      %578 = vmatpush1.bf16.msra.mxu0 0
      %579 = vmatprep.subr.bf16.mxu0 0
      %580 = vmatpush1.bf16.msra.mxu0 0
      %581 = vmatprep.subr.bf16.mxu0 0
      %582 = vmatpush1.bf16.msra.mxu0 0
      %583 = vmatprep.subr.bf16.mxu0 0
      %584 = vmatpush1.bf16.msra.mxu0 0
      %585 = vmatprep.subr.bf16.mxu0 0
      %586 = vmatpush1.bf16.msra.mxu0 0
      %587 = vmatprep.mubr.bf16.mxu0 0
      %588 = vmatmul.mubr.bf16.gmra.mrb[0].mxu0 %v553
      %v589 = vpop.f32.mrb[0].mxu0
      %v590 = vadd.f32 %v537, %v589
      %v591 = vpop.f32.mrb[0].mxu0
      %v592 = vpop.f32.mrb[0].mxu0
      %v593 = vpop.f32.mrb[0].mxu0
      %594 = vdwg.mxu0
      %v595 = vpack.c.bf16 %v590, %v590
      %597 = vrot.lane.b32.xlu0 %v595, 96
      %v598 = vpop.permute.xlu0 %597
      %vm599 = vcmask 130048
      %v601 = vsel %vm599, %v595, 0
      %v604 = vsel %vm599, %v598, 0
      %606 = vmatprep.subr.bf16.mxu0 0
      %607 = vmatpush1.bf16.xpose.msra.mxu0 %v604
      %608 = vmatprep.subr.bf16.mxu0 0
      %609 = vmatpush1.bf16.xpose.msra.mxu0 0
      %610 = vmatprep.subr.bf16.mxu0 0
      %611 = vmatpush1.bf16.xpose.msra.mxu0 0
      %612 = vmatprep.subr.bf16.mxu0 0
      %613 = vmatpush1.bf16.xpose.msra.mxu0 0
      %614 = vmatprep.subr.bf16.mxu0 0
      %615 = vmatpush1.bf16.xpose.msra.mxu0 0
      %616 = vmatprep.subr.bf16.mxu0 0
      %617 = vmatpush1.bf16.xpose.msra.mxu0 0
      %618 = vmatprep.subr.bf16.mxu0 0
      %619 = vmatpush1.bf16.xpose.msra.mxu0 0
      %620 = vmatprep.subr.bf16.mxu0 0
      %621 = vmatpush1.bf16.xpose.msra.mxu0 0
      %622 = vmatprep.subr.bf16.mxu0 0
      %623 = vmatpush1.bf16.xpose.msra.mxu0 0
      %624 = vmatprep.subr.bf16.mxu0 0
      %625 = vmatpush1.bf16.xpose.msra.mxu0 0
      %626 = vmatprep.subr.bf16.mxu0 0
      %627 = vmatpush1.bf16.xpose.msra.mxu0 0
      %628 = vmatprep.subr.bf16.mxu0 0
      %629 = vmatpush1.bf16.xpose.msra.mxu0 0
      %630 = vmatprep.subr.bf16.mxu0 0
      %631 = vmatpush1.bf16.xpose.msra.mxu0 0
      %632 = vmatprep.subr.bf16.mxu0 0
      %633 = vmatpush1.bf16.xpose.msra.mxu0 0
      %634 = vmatprep.subr.bf16.mxu0 0
      %635 = vmatpush1.bf16.xpose.msra.mxu0 0
      %636 = vmatprep.subr.bf16.mxu0 0
      %637 = vmatpush1.bf16.xpose.msra.mxu0 0
      %638 = vmatprep.mubr.bf16.mxu0 0
      %639 = vmatmul.mubr.bf16.gmra.mrb[0].mxu0 %v601
      %v640 = vpop.f32.mrb[0].mxu0
      %v641 = vadd.f32 0.0, %v640
      %v642 = vpop.f32.mrb[0].mxu0
      %v643 = vpop.f32.mrb[0].mxu0
      %v644 = vpop.f32.mrb[0].mxu0
      %645 = vdwg.mxu0
      %v646 = vmul.f32 %v641, 0.25
      %v647 = vld [vmem:[#allocation2] sm:$0x1f]
      %v648 = vadd.f32 %v646, %v647
      %vm649 = vcmask 36864
      %650 = vst.msk [vmem:[#allocation2] sm:$0x1f] %vm649, %v648
      %v651 = vsel %vm649, %v648, -inf
      %652 = vmax.xlane.f32.xlu0 %v651
      %v653 = vpop.xlane.xlu0 %652
      %v654 = vsub.f32 %v648, %v653
      %v655 = vmul.f32 %v654, 1.442695
      %v656 = vpow.pop %v655
      %v657 = vsel %vm649, %v656, 0.0
      %658 = vadd.xlane.f32.xlu0 %v657
      %v659 = vpop.xlane.xlu0 %658
      %v660 = vrcp.pop %v659
      %v661 = vmul.f32 %v656, %v660
      %v662 = vpack.c.bf16 %v661, %v661
      %663 = vrot.lane.b32.xlu0 %v595, 64
      %v664 = vpop.permute.xlu0 %663
      %vm665 = vcmask 39936
      %v667 = vsel %vm665, %v662, 0
      %vm669 = vcmask 1041408
      %vm670 = vcmask 1042432
      %v671 = vsel %vm669, 4294967295, 65535
      %v672 = vsel %vm670, %v671, 0
      %v674 = vand.u32 %v664, %v672
      %676 = vmatprep.subr.bf16.mxu0 0
      %677 = vmatpush1.bf16.msra.mxu0 %v674
      %678 = vmatprep.subr.bf16.mxu0 0
      %679 = vmatpush1.bf16.msra.mxu0 0
      %680 = vmatprep.subr.bf16.mxu0 0
      %681 = vmatpush1.bf16.msra.mxu0 0
      %682 = vmatprep.subr.bf16.mxu0 0
      %683 = vmatpush1.bf16.msra.mxu0 0
      %684 = vmatprep.subr.bf16.mxu0 0
      %685 = vmatpush1.bf16.msra.mxu0 0
      %686 = vmatprep.subr.bf16.mxu0 0
      %687 = vmatpush1.bf16.msra.mxu0 0
      %688 = vmatprep.subr.bf16.mxu0 0
      %689 = vmatpush1.bf16.msra.mxu0 0
      %690 = vmatprep.subr.bf16.mxu0 0
      %691 = vmatpush1.bf16.msra.mxu0 0
      %692 = vmatprep.subr.bf16.mxu0 0
      %693 = vmatpush1.bf16.msra.mxu0 0
      %694 = vmatprep.subr.bf16.mxu0 0
      %695 = vmatpush1.bf16.msra.mxu0 0
      %696 = vmatprep.subr.bf16.mxu0 0
      %697 = vmatpush1.bf16.msra.mxu0 0
      %698 = vmatprep.subr.bf16.mxu0 0
      %699 = vmatpush1.bf16.msra.mxu0 0
      %700 = vmatprep.subr.bf16.mxu0 0
      %701 = vmatpush1.bf16.msra.mxu0 0
      %702 = vmatprep.subr.bf16.mxu0 0
      %703 = vmatpush1.bf16.msra.mxu0 0
      %704 = vmatprep.subr.bf16.mxu0 0
      %705 = vmatpush1.bf16.msra.mxu0 0
      %706 = vmatprep.subr.bf16.mxu0 0
      %707 = vmatpush1.bf16.msra.mxu0 0
      %708 = vmatprep.mubr.bf16.mxu0 0
      %709 = vmatmul.mubr.bf16.gmra.mrb[0].mxu0 %v667
      %v710 = vpop.f32.mrb[0].mxu0
      %v711 = vadd.f32 0.0, %v710
      %v712 = vpop.f32.mrb[0].mxu0
      %v713 = vpop.f32.mrb[0].mxu0
      %v714 = vpop.f32.mrb[0].mxu0
      %715 = vdwg.mxu0
      %716 = vrot.lane.b32.xlu0 %v595, 112
      %v717 = vpop.permute.xlu0 %716
      %718 = vrot.lane.b32.xlu0 %v595, 80
      %v719 = vpop.permute.xlu0 %718
      %v721 = vsel %vm599, %v717, 0
      %v724 = vsel %vm599, %v719, 0
      %726 = vmatprep.subr.bf16.mxu0 0
      %727 = vmatpush1.bf16.xpose.msra.mxu0 %v724
      %728 = vmatprep.subr.bf16.mxu0 0
      %729 = vmatpush1.bf16.xpose.msra.mxu0 0
      %730 = vmatprep.subr.bf16.mxu0 0
      %731 = vmatpush1.bf16.xpose.msra.mxu0 0
      %732 = vmatprep.subr.bf16.mxu0 0
      %733 = vmatpush1.bf16.xpose.msra.mxu0 0
      %734 = vmatprep.subr.bf16.mxu0 0
      %735 = vmatpush1.bf16.xpose.msra.mxu0 0
      %736 = vmatprep.subr.bf16.mxu0 0
      %737 = vmatpush1.bf16.xpose.msra.mxu0 0
      %738 = vmatprep.subr.bf16.mxu0 0
      %739 = vmatpush1.bf16.xpose.msra.mxu0 0
      %740 = vmatprep.subr.bf16.mxu0 0
      %741 = vmatpush1.bf16.xpose.msra.mxu0 0
      %742 = vmatprep.subr.bf16.mxu0 0
      %743 = vmatpush1.bf16.xpose.msra.mxu0 0
      %744 = vmatprep.subr.bf16.mxu0 0
      %745 = vmatpush1.bf16.xpose.msra.mxu0 0
      %746 = vmatprep.subr.bf16.mxu0 0
      %747 = vmatpush1.bf16.xpose.msra.mxu0 0
      %748 = vmatprep.subr.bf16.mxu0 0
      %749 = vmatpush1.bf16.xpose.msra.mxu0 0
      %750 = vmatprep.subr.bf16.mxu0 0
      %751 = vmatpush1.bf16.xpose.msra.mxu0 0
      %752 = vmatprep.subr.bf16.mxu0 0
      %753 = vmatpush1.bf16.xpose.msra.mxu0 0
      %754 = vmatprep.subr.bf16.mxu0 0
      %755 = vmatpush1.bf16.xpose.msra.mxu0 0
      %756 = vmatprep.subr.bf16.mxu0 0
      %757 = vmatpush1.bf16.xpose.msra.mxu0 0
      %758 = vmatprep.mubr.bf16.mxu0 0
      %759 = vmatmul.mubr.bf16.gmra.mrb[0].mxu0 %v721
      %v760 = vpop.f32.mrb[0].mxu0
      %v761 = vadd.f32 0.0, %v760
      %v762 = vpop.f32.mrb[0].mxu0
      %v763 = vpop.f32.mrb[0].mxu0
      %v764 = vpop.f32.mrb[0].mxu0
      %765 = vdwg.mxu0
      %v766 = vmul.f32 %v761, 0.25
      %s767 = scalar_lea.vmem [#allocation2], 8
      %v768 = vld [vmem:[%s767] sm:$0x1f]
      %v769 = vadd.f32 %v766, %v768
      %770 = vst.msk [vmem:[%s767] sm:$0x1f] %vm649, %v769
      %v771 = vsel %vm649, %v769, -inf
      %772 = vmax.xlane.f32.xlu0 %v771
      %v773 = vpop.xlane.xlu0 %772
      %v774 = vsub.f32 %v769, %v773
      %v775 = vmul.f32 %v774, 1.442695
      %v776 = vpow.pop %v775
      %v777 = vsel %vm649, %v776, 0.0
      %778 = vadd.xlane.f32.xlu0 %v777
      %v779 = vpop.xlane.xlu0 %778
      %v780 = vrcp.pop %v779
      %v781 = vmul.f32 %v776, %v780
      %v782 = vpack.c.bf16 %v781, %v781
      %783 = vrot.lane.b32.xlu0 %v595, 48
      %v784 = vpop.permute.xlu0 %783
      %v786 = vsel %vm665, %v782, 0
      %v789 = vand.u32 %v784, %v672
      %791 = vmatprep.subr.bf16.mxu0 0
      %792 = vmatpush1.bf16.msra.mxu0 %v789
      %793 = vmatprep.subr.bf16.mxu0 0
      %794 = vmatpush1.bf16.msra.mxu0 0
      %795 = vmatprep.subr.bf16.mxu0 0
      %796 = vmatpush1.bf16.msra.mxu0 0
      %797 = vmatprep.subr.bf16.mxu0 0
      %798 = vmatpush1.bf16.msra.mxu0 0
      %799 = vmatprep.subr.bf16.mxu0 0
      %800 = vmatpush1.bf16.msra.mxu0 0
      %801 = vmatprep.subr.bf16.mxu0 0
      %802 = vmatpush1.bf16.msra.mxu0 0
      %803 = vmatprep.subr.bf16.mxu0 0
      %804 = vmatpush1.bf16.msra.mxu0 0
      %805 = vmatprep.subr.bf16.mxu0 0
      %806 = vmatpush1.bf16.msra.mxu0 0
      %807 = vmatprep.subr.bf16.mxu0 0
      %808 = vmatpush1.bf16.msra.mxu0 0
      %809 = vmatprep.subr.bf16.mxu0 0
      %810 = vmatpush1.bf16.msra.mxu0 0
      %811 = vmatprep.subr.bf16.mxu0 0
      %812 = vmatpush1.bf16.msra.mxu0 0
      %813 = vmatprep.subr.bf16.mxu0 0
      %814 = vmatpush1.bf16.msra.mxu0 0
      %815 = vmatprep.subr.bf16.mxu0 0
      %816 = vmatpush1.bf16.msra.mxu0 0
      %817 = vmatprep.subr.bf16.mxu0 0
      %818 = vmatpush1.bf16.msra.mxu0 0
      %819 = vmatprep.subr.bf16.mxu0 0
      %820 = vmatpush1.bf16.msra.mxu0 0
      %821 = vmatprep.subr.bf16.mxu0 0
      %822 = vmatpush1.bf16.msra.mxu0 0
      %823 = vmatprep.mubr.bf16.mxu0 0
      %824 = vmatmul.mubr.bf16.gmra.mrb[0].mxu0 %v786
      %v825 = vpop.f32.mrb[0].mxu0
      %v826 = vadd.f32 0.0, %v825
      %v827 = vpop.f32.mrb[0].mxu0
      %v828 = vpop.f32.mrb[0].mxu0
      %v829 = vpop.f32.mrb[0].mxu0
      %830 = vdwg.mxu0
      %832 = vrot.lane.b32.xlu0 %v826, 16
      %v833 = vpop.permute.xlu0 %832
      %v835 = vsel %vm599, %v711, %v833
      %v836 = vpack.c.bf16 %v835, %v835
      %v838 = vlaneseq
      %v839 = vshrl.u32 %v838, 7
      %v840 = vsub.s32 0, %v839
      %v841 = vrot.slane %v516, %v840
      %v847 = vunpack.c.l.b16 %v512
      %v848 = vunpack.c.l.b16 %v513
      %v849 = vunpack.c.l.b16 %v514
      %v850 = vunpack.c.l.b16 %v515
      %v851 = vpack.c.b16 %v848, %v847
      %v852 = vpack.c.b16 %v850, %v849
      %v856 = vsel %vm551, %v836, 0
      %858 = vmatprep.subr.bf16.mxu0 0
      %859 = vmatpush1.bf16.msra.mxu0 %v851
      %860 = vmatprep.subr.bf16.mxu0 0
      %861 = vmatpush1.bf16.msra.mxu0 %v852
      %862 = vmatprep.subr.bf16.mxu0 0
      %863 = vmatpush1.bf16.msra.mxu0 0
      %864 = vmatprep.subr.bf16.mxu0 0
      %865 = vmatpush1.bf16.msra.mxu0 0
      %866 = vmatprep.subr.bf16.mxu0 0
      %867 = vmatpush1.bf16.msra.mxu0 0
      %868 = vmatprep.subr.bf16.mxu0 0
      %869 = vmatpush1.bf16.msra.mxu0 0
      %870 = vmatprep.subr.bf16.mxu0 0
      %871 = vmatpush1.bf16.msra.mxu0 0
      %872 = vmatprep.subr.bf16.mxu0 0
      %873 = vmatpush1.bf16.msra.mxu0 0
      %874 = vmatprep.subr.bf16.mxu0 0
      %875 = vmatpush1.bf16.msra.mxu0 0
      %876 = vmatprep.subr.bf16.mxu0 0
      %877 = vmatpush1.bf16.msra.mxu0 0
      %878 = vmatprep.subr.bf16.mxu0 0
      %879 = vmatpush1.bf16.msra.mxu0 0
      %880 = vmatprep.subr.bf16.mxu0 0
      %881 = vmatpush1.bf16.msra.mxu0 0
      %882 = vmatprep.subr.bf16.mxu0 0
      %883 = vmatpush1.bf16.msra.mxu0 0
      %884 = vmatprep.subr.bf16.mxu0 0
      %885 = vmatpush1.bf16.msra.mxu0 0
      %886 = vmatprep.subr.bf16.mxu0 0
      %887 = vmatpush1.bf16.msra.mxu0 0
      %888 = vmatprep.subr.bf16.mxu0 0
      %889 = vmatpush1.bf16.msra.mxu0 0
      %890 = vmatprep.mubr.bf16.mxu0 0
      %891 = vmatmul.mubr.bf16.gmra.mrb[0].mxu0 %v856
      %v892 = vpop.f32.mrb[0].mxu0
      %v893 = vadd.f32 %v841, %v892
      %v894 = vpop.f32.mrb[0].mxu0
      %v895 = vpop.f32.mrb[0].mxu0
      %v896 = vpop.f32.mrb[0].mxu0
      %897 = vdwg.mxu0
      %v898 = vadd.f32 %v531, %v893
      %v899 = vmul.f32 %v898, 0.999995
      %v900 = vpack.c.bf16 %v899, %v899
      %v902 = vlaneseq
      %v903 = vshrl.u32 %v902, 7
      %v904 = vsub.s32 0, %v903
      %v905 = vrot.slane %v521, %v904
      %v911 = vunpack.c.l.b16 %v517
      %v912 = vunpack.c.l.b16 %v518
      %v913 = vunpack.c.l.b16 %v519
      %v914 = vunpack.c.l.b16 %v520
      %v915 = vpack.c.b16 %v912, %v911
      %v916 = vpack.c.b16 %v914, %v913
      %v920 = vsel %vm551, %v900, 0
      %922 = vmatprep.subr.bf16.mxu0 0
      %923 = vmatpush1.bf16.msra.mxu0 %v915
      %924 = vmatprep.subr.bf16.mxu0 0
      %925 = vmatpush1.bf16.msra.mxu0 %v916
      %926 = vmatprep.subr.bf16.mxu0 0
      %927 = vmatpush1.bf16.msra.mxu0 0
      %928 = vmatprep.subr.bf16.mxu0 0
      %929 = vmatpush1.bf16.msra.mxu0 0
      %930 = vmatprep.subr.bf16.mxu0 0
      %931 = vmatpush1.bf16.msra.mxu0 0
      %932 = vmatprep.subr.bf16.mxu0 0
      %933 = vmatpush1.bf16.msra.mxu0 0
      %934 = vmatprep.subr.bf16.mxu0 0
      %935 = vmatpush1.bf16.msra.mxu0 0
      %936 = vmatprep.subr.bf16.mxu0 0
      %937 = vmatpush1.bf16.msra.mxu0 0
      %938 = vmatprep.subr.bf16.mxu0 0
      %939 = vmatpush1.bf16.msra.mxu0 0
      %940 = vmatprep.subr.bf16.mxu0 0
      %941 = vmatpush1.bf16.msra.mxu0 0
      %942 = vmatprep.subr.bf16.mxu0 0
      %943 = vmatpush1.bf16.msra.mxu0 0
      %944 = vmatprep.subr.bf16.mxu0 0
      %945 = vmatpush1.bf16.msra.mxu0 0
      %946 = vmatprep.subr.bf16.mxu0 0
      %947 = vmatpush1.bf16.msra.mxu0 0
      %948 = vmatprep.subr.bf16.mxu0 0
      %949 = vmatpush1.bf16.msra.mxu0 0
      %950 = vmatprep.subr.bf16.mxu0 0
      %951 = vmatpush1.bf16.msra.mxu0 0
      %952 = vmatprep.subr.bf16.mxu0 0
      %953 = vmatpush1.bf16.msra.mxu0 0
      %954 = vmatprep.mubr.bf16.mxu0 0
      %955 = vmatmul.mubr.bf16.gmra.mrb[0].mxu0 %v920
      %v956 = vpop.f32.mrb[0].mxu0
      %v957 = vadd.f32 %v905, %v956
      %v958 = vpop.f32.mrb[0].mxu0
      %v959 = vpop.f32.mrb[0].mxu0
      %v960 = vpop.f32.mrb[0].mxu0
      %961 = vdwg.mxu0
      %v962 = vmul.f32 %v957, 0.5
      %v963 = vmul.f32 %v957, 0.70710677
      %vm964 = vcmp.ge.f32.partialorder %v963, 0.0
      %v965 = vsel %vm964, 1.0, -1.0
      %v966 = vand.u32 2147483647, %v963
      %v967 = vmul.f32 %v966, 0.3275911
      %v968 = vadd.f32 %v967, 1.0
      %v969 = vrcp.pop %v968
      %v970 = vmul.f32 1.0, %v969
      %v971 = vmul.f32 %v970, 1.0614054
      %v972 = vadd.f32 %v971, -1.4531521
      %v973 = vmul.f32 %v972, %v970
      %v974 = vadd.f32 %v973, 1.4214138
      %v975 = vmul.f32 %v974, %v970
      %v976 = vadd.f32 %v975, -0.28449672
      %v977 = vmul.f32 %v976, %v970
      %v978 = vadd.f32 %v977, 0.2548296
      %v979 = vmul.f32 %v978, %v970
      %v980 = vsub.f32 0.0, %v966
      %v981 = vmul.f32 %v980, %v966
      %v982 = vmul.f32 %v981, 1.442695
      %v983 = vpow.pop %v982
      %v984 = vmul.f32 %v979, %v983
      %v985 = vsub.f32 1.0, %v984
      %v986 = vmul.f32 %v965, %v985
      %v987 = vadd.f32 %v986, 1.0
      %v988 = vmul.f32 %v962, %v987
      %v989 = vpack.c.bf16 %v988, %v988
      %v991 = vlaneseq
      %v992 = vshrl.u32 %v991, 7
      %v993 = vsub.s32 0, %v992
      %v994 = vrot.slane %v530, %v993
      %v1004 = vunpack.c.l.b16 %v522
      %v1005 = vunpack.c.l.b16 %v523
      %v1006 = vunpack.c.l.b16 %v524
      %v1007 = vunpack.c.l.b16 %v525
      %v1008 = vunpack.c.l.b16 %v526
      %v1009 = vunpack.c.l.b16 %v527
      %v1010 = vunpack.c.l.b16 %v528
      %v1011 = vunpack.c.l.b16 %v529
      %v1012 = vpack.c.b16 %v1005, %v1004
      %v1013 = vpack.c.b16 %v1007, %v1006
      %v1014 = vpack.c.b16 %v1009, %v1008
      %v1015 = vpack.c.b16 %v1011, %v1010
      %vm1020 = vcmask 523264
      %v1022 = vsel %vm1020, %v989, 0
      %1024 = vmatprep.subr.bf16.mxu0 0
      %1025 = vmatpush1.bf16.msra.mxu0 %v1012
      %1026 = vmatprep.subr.bf16.mxu0 0
      %1027 = vmatpush1.bf16.msra.mxu0 %v1013
      %1028 = vmatprep.subr.bf16.mxu0 0
      %1029 = vmatpush1.bf16.msra.mxu0 %v1014
      %1030 = vmatprep.subr.bf16.mxu0 0
      %1031 = vmatpush1.bf16.msra.mxu0 %v1015
      %1032 = vmatprep.subr.bf16.mxu0 0
      %1033 = vmatpush1.bf16.msra.mxu0 0
      %1034 = vmatprep.subr.bf16.mxu0 0
      %1035 = vmatpush1.bf16.msra.mxu0 0
      %1036 = vmatprep.subr.bf16.mxu0 0
      %1037 = vmatpush1.bf16.msra.mxu0 0
      %1038 = vmatprep.subr.bf16.mxu0 0
      %1039 = vmatpush1.bf16.msra.mxu0 0
      %1040 = vmatprep.subr.bf16.mxu0 0
      %1041 = vmatpush1.bf16.msra.mxu0 0
      %1042 = vmatprep.subr.bf16.mxu0 0
      %1043 = vmatpush1.bf16.msra.mxu0 0
      %1044 = vmatprep.subr.bf16.mxu0 0
      %1045 = vmatpush1.bf16.msra.mxu0 0
      %1046 = vmatprep.subr.bf16.mxu0 0
      %1047 = vmatpush1.bf16.msra.mxu0 0
      %1048 = vmatprep.subr.bf16.mxu0 0
      %1049 = vmatpush1.bf16.msra.mxu0 0
      %1050 = vmatprep.subr.bf16.mxu0 0
      %1051 = vmatpush1.bf16.msra.mxu0 0
      %1052 = vmatprep.subr.bf16.mxu0 0
      %1053 = vmatpush1.bf16.msra.mxu0 0
      %1054 = vmatprep.subr.bf16.mxu0 0
      %1055 = vmatpush1.bf16.msra.mxu0 0
      %1056 = vmatprep.mubr.bf16.mxu0 0
      %1057 = vmatmul.mubr.bf16.gmra.mrb[0].mxu0 %v1022
      %v1058 = vpop.f32.mrb[0].mxu0
      %v1059 = vadd.f32 %v994, %v1058
      %v1060 = vpop.f32.mrb[0].mxu0
      %v1061 = vpop.f32.mrb[0].mxu0
      %v1062 = vpop.f32.mrb[0].mxu0
      %1063 = vdwg.mxu0
      %v1064 = vadd.f32 %v899, %v1059
      %v1065 = vmul.f32 %v1064, 0.999995
      %vm1066 = vcmask 258048
      %1067 = vst.msk [vmem:[%s482] sm:$0x1f] %vm1066, %v1065
      %s1068 = scalar_lea.vmem %s482, 8
      %v1069 = vld [vmem:[%s1068] sm:$0x1f]
      %v1070 = vpack.c.bf16 %v1069, %v1069
      %v1072 = vsel %vm551, %v1070, 0
      %1074 = vmatprep.subr.bf16.mxu0 0
      %1075 = vmatpush1.bf16.msra.mxu0 %v547
      %1076 = vmatprep.subr.bf16.mxu0 0
      %1077 = vmatpush1.bf16.msra.mxu0 %v548
      %1078 = vmatprep.subr.bf16.mxu0 0
      %1079 = vmatpush1.bf16.msra.mxu0 0
      %1080 = vmatprep.subr.bf16.mxu0 0
      %1081 = vmatpush1.bf16.msra.mxu0 0
      %1082 = vmatprep.subr.bf16.mxu0 0
      %1083 = vmatpush1.bf16.msra.mxu0 0
      %1084 = vmatprep.subr.bf16.mxu0 0
      %1085 = vmatpush1.bf16.msra.mxu0 0
      %1086 = vmatprep.subr.bf16.mxu0 0
      %1087 = vmatpush1.bf16.msra.mxu0 0
      %1088 = vmatprep.subr.bf16.mxu0 0
      %1089 = vmatpush1.bf16.msra.mxu0 0
      %1090 = vmatprep.subr.bf16.mxu0 0
      %1091 = vmatpush1.bf16.msra.mxu0 0
      %1092 = vmatprep.subr.bf16.mxu0 0
      %1093 = vmatpush1.bf16.msra.mxu0 0
      %1094 = vmatprep.subr.bf16.mxu0 0
      %1095 = vmatpush1.bf16.msra.mxu0 0
      %1096 = vmatprep.subr.bf16.mxu0 0
      %1097 = vmatpush1.bf16.msra.mxu0 0
      %1098 = vmatprep.subr.bf16.mxu0 0
      %1099 = vmatpush1.bf16.msra.mxu0 0
      %1100 = vmatprep.subr.bf16.mxu0 0
      %1101 = vmatpush1.bf16.msra.mxu0 0
      %1102 = vmatprep.subr.bf16.mxu0 0
      %1103 = vmatpush1.bf16.msra.mxu0 0
      %1104 = vmatprep.subr.bf16.mxu0 0
      %1105 = vmatpush1.bf16.msra.mxu0 0
      %1106 = vmatprep.mubr.bf16.mxu0 0
      %1107 = vmatmul.mubr.bf16.gmra.mrb[0].mxu0 %v1072
      %v1108 = vpop.f32.mrb[0].mxu0
      %v1109 = vadd.f32 %v537, %v1108
      %v1110 = vpop.f32.mrb[0].mxu0
      %v1111 = vpop.f32.mrb[0].mxu0
      %v1112 = vpop.f32.mrb[0].mxu0
      %1113 = vdwg.mxu0
      %v1114 = vpack.c.bf16 %v1109, %v1109
      %1116 = vrot.lane.b32.xlu0 %v1114, 96
      %v1117 = vpop.permute.xlu0 %1116
      %v1119 = vsel %vm599, %v1114, 0
      %v1122 = vsel %vm599, %v1117, 0
      %1124 = vmatprep.subr.bf16.mxu0 0
      %1125 = vmatpush1.bf16.xpose.msra.mxu0 %v1122
      %1126 = vmatprep.subr.bf16.mxu0 0
      %1127 = vmatpush1.bf16.xpose.msra.mxu0 0
      %1128 = vmatprep.subr.bf16.mxu0 0
      %1129 = vmatpush1.bf16.xpose.msra.mxu0 0
      %1130 = vmatprep.subr.bf16.mxu0 0
      %1131 = vmatpush1.bf16.xpose.msra.mxu0 0
      %1132 = vmatprep.subr.bf16.mxu0 0
      %1133 = vmatpush1.bf16.xpose.msra.mxu0 0
      %1134 = vmatprep.subr.bf16.mxu0 0
      %1135 = vmatpush1.bf16.xpose.msra.mxu0 0
      %1136 = vmatprep.subr.bf16.mxu0 0
      %1137 = vmatpush1.bf16.xpose.msra.mxu0 0
      %1138 = vmatprep.subr.bf16.mxu0 0
      %1139 = vmatpush1.bf16.xpose.msra.mxu0 0
      %1140 = vmatprep.subr.bf16.mxu0 0
      %1141 = vmatpush1.bf16.xpose.msra.mxu0 0
      %1142 = vmatprep.subr.bf16.mxu0 0
      %1143 = vmatpush1.bf16.xpose.msra.mxu0 0
      %1144 = vmatprep.subr.bf16.mxu0 0
      %1145 = vmatpush1.bf16.xpose.msra.mxu0 0
      %1146 = vmatprep.subr.bf16.mxu0 0
      %1147 = vmatpush1.bf16.xpose.msra.mxu0 0
      %1148 = vmatprep.subr.bf16.mxu0 0
      %1149 = vmatpush1.bf16.xpose.msra.mxu0 0
      %1150 = vmatprep.subr.bf16.mxu0 0
      %1151 = vmatpush1.bf16.xpose.msra.mxu0 0
      %1152 = vmatprep.subr.bf16.mxu0 0
      %1153 = vmatpush1.bf16.xpose.msra.mxu0 0
      %1154 = vmatprep.subr.bf16.mxu0 0
      %1155 = vmatpush1.bf16.xpose.msra.mxu0 0
      %1156 = vmatprep.mubr.bf16.mxu0 0
      %1157 = vmatmul.mubr.bf16.gmra.mrb[0].mxu0 %v1119
      %v1158 = vpop.f32.mrb[0].mxu0
      %v1159 = vadd.f32 0.0, %v1158
      %v1160 = vpop.f32.mrb[0].mxu0
      %v1161 = vpop.f32.mrb[0].mxu0
      %v1162 = vpop.f32.mrb[0].mxu0
      %1163 = vdwg.mxu0
      %v1164 = vmul.f32 %v1159, 0.25
      %s1165 = scalar_lea.vmem [#allocation2], 16
      %v1166 = vld [vmem:[%s1165] sm:$0x1f]
      %v1167 = vadd.f32 %v1164, %v1166
      %1168 = vst.msk [vmem:[%s1165] sm:$0x1f] %vm649, %v1167
      %v1169 = vsel %vm649, %v1167, -inf
      %1170 = vmax.xlane.f32.xlu0 %v1169
      %v1171 = vpop.xlane.xlu0 %1170
      %v1172 = vsub.f32 %v1167, %v1171
      %v1173 = vmul.f32 %v1172, 1.442695
      %v1174 = vpow.pop %v1173
      %v1175 = vsel %vm649, %v1174, 0.0
      %1176 = vadd.xlane.f32.xlu0 %v1175
      %v1177 = vpop.xlane.xlu0 %1176
      %v1178 = vrcp.pop %v1177
      %v1179 = vmul.f32 %v1174, %v1178
      %v1180 = vpack.c.bf16 %v1179, %v1179
      %1181 = vrot.lane.b32.xlu0 %v1114, 64
      %v1182 = vpop.permute.xlu0 %1181
      %v1184 = vsel %vm665, %v1180, 0
      %v1187 = vand.u32 %v1182, %v672
      %1189 = vmatprep.subr.bf16.mxu0 0
      %1190 = vmatpush1.bf16.msra.mxu0 %v1187
      %1191 = vmatprep.subr.bf16.mxu0 0
      %1192 = vmatpush1.bf16.msra.mxu0 0
      %1193 = vmatprep.subr.bf16.mxu0 0
      %1194 = vmatpush1.bf16.msra.mxu0 0
      %1195 = vmatprep.subr.bf16.mxu0 0
      %1196 = vmatpush1.bf16.msra.mxu0 0
      %1197 = vmatprep.subr.bf16.mxu0 0
      %1198 = vmatpush1.bf16.msra.mxu0 0
      %1199 = vmatprep.subr.bf16.mxu0 0
      %1200 = vmatpush1.bf16.msra.mxu0 0
      %1201 = vmatprep.subr.bf16.mxu0 0
      %1202 = vmatpush1.bf16.msra.mxu0 0
      %1203 = vmatprep.subr.bf16.mxu0 0
      %1204 = vmatpush1.bf16.msra.mxu0 0
      %1205 = vmatprep.subr.bf16.mxu0 0
      %1206 = vmatpush1.bf16.msra.mxu0 0
      %1207 = vmatprep.subr.bf16.mxu0 0
      %1208 = vmatpush1.bf16.msra.mxu0 0
      %1209 = vmatprep.subr.bf16.mxu0 0
      %1210 = vmatpush1.bf16.msra.mxu0 0
      %1211 = vmatprep.subr.bf16.mxu0 0
      %1212 = vmatpush1.bf16.msra.mxu0 0
      %1213 = vmatprep.subr.bf16.mxu0 0
      %1214 = vmatpush1.bf16.msra.mxu0 0
      %1215 = vmatprep.subr.bf16.mxu0 0
      %1216 = vmatpush1.bf16.msra.mxu0 0
      %1217 = vmatprep.subr.bf16.mxu0 0
      %1218 = vmatpush1.bf16.msra.mxu0 0
      %1219 = vmatprep.subr.bf16.mxu0 0
      %1220 = vmatpush1.bf16.msra.mxu0 0
      %1221 = vmatprep.mubr.bf16.mxu0 0
      %1222 = vmatmul.mubr.bf16.gmra.mrb[0].mxu0 %v1184
      %v1223 = vpop.f32.mrb[0].mxu0
      %v1224 = vadd.f32 0.0, %v1223
      %v1225 = vpop.f32.mrb[0].mxu0
      %v1226 = vpop.f32.mrb[0].mxu0
      %v1227 = vpop.f32.mrb[0].mxu0
      %1228 = vdwg.mxu0
      %1229 = vrot.lane.b32.xlu0 %v1114, 112
      %v1230 = vpop.permute.xlu0 %1229
      %1231 = vrot.lane.b32.xlu0 %v1114, 80
      %v1232 = vpop.permute.xlu0 %1231
      %v1234 = vsel %vm599, %v1230, 0
      %v1237 = vsel %vm599, %v1232, 0
      %1239 = vmatprep.subr.bf16.mxu0 0
      %1240 = vmatpush1.bf16.xpose.msra.mxu0 %v1237
      %1241 = vmatprep.subr.bf16.mxu0 0
      %1242 = vmatpush1.bf16.xpose.msra.mxu0 0
      %1243 = vmatprep.subr.bf16.mxu0 0
      %1244 = vmatpush1.bf16.xpose.msra.mxu0 0
      %1245 = vmatprep.subr.bf16.mxu0 0
      %1246 = vmatpush1.bf16.xpose.msra.mxu0 0
      %1247 = vmatprep.subr.bf16.mxu0 0
      %1248 = vmatpush1.bf16.xpose.msra.mxu0 0
      %1249 = vmatprep.subr.bf16.mxu0 0
      %1250 = vmatpush1.bf16.xpose.msra.mxu0 0
      %1251 = vmatprep.subr.bf16.mxu0 0
      %1252 = vmatpush1.bf16.xpose.msra.mxu0 0
      %1253 = vmatprep.subr.bf16.mxu0 0
      %1254 = vmatpush1.bf16.xpose.msra.mxu0 0
      %1255 = vmatprep.subr.bf16.mxu0 0
      %1256 = vmatpush1.bf16.xpose.msra.mxu0 0
      %1257 = vmatprep.subr.bf16.mxu0 0
      %1258 = vmatpush1.bf16.xpose.msra.mxu0 0
      %1259 = vmatprep.subr.bf16.mxu0 0
      %1260 = vmatpush1.bf16.xpose.msra.mxu0 0
      %1261 = vmatprep.subr.bf16.mxu0 0
      %1262 = vmatpush1.bf16.xpose.msra.mxu0 0
      %1263 = vmatprep.subr.bf16.mxu0 0
      %1264 = vmatpush1.bf16.xpose.msra.mxu0 0
      %1265 = vmatprep.subr.bf16.mxu0 0
      %1266 = vmatpush1.bf16.xpose.msra.mxu0 0
      %1267 = vmatprep.subr.bf16.mxu0 0
      %1268 = vmatpush1.bf16.xpose.msra.mxu0 0
      %1269 = vmatprep.subr.bf16.mxu0 0
      %1270 = vmatpush1.bf16.xpose.msra.mxu0 0
      %1271 = vmatprep.mubr.bf16.mxu0 0
      %1272 = vmatmul.mubr.bf16.gmra.mrb[0].mxu0 %v1234
      %v1273 = vpop.f32.mrb[0].mxu0
      %v1274 = vadd.f32 0.0, %v1273
      %v1275 = vpop.f32.mrb[0].mxu0
      %v1276 = vpop.f32.mrb[0].mxu0
      %v1277 = vpop.f32.mrb[0].mxu0
      %1278 = vdwg.mxu0
      %v1279 = vmul.f32 %v1274, 0.25
      %s1280 = scalar_lea.vmem [#allocation2], 24
      %v1281 = vld [vmem:[%s1280] sm:$0x1f]
      %v1282 = vadd.f32 %v1279, %v1281
      %1283 = vst.msk [vmem:[%s1280] sm:$0x1f] %vm649, %v1282
      %v1284 = vsel %vm649, %v1282, -inf
      %1285 = vmax.xlane.f32.xlu0 %v1284
      %v1286 = vpop.xlane.xlu0 %1285
      %v1287 = vsub.f32 %v1282, %v1286
      %v1288 = vmul.f32 %v1287, 1.442695
      %v1289 = vpow.pop %v1288
      %v1290 = vsel %vm649, %v1289, 0.0
      %1291 = vadd.xlane.f32.xlu0 %v1290
      %v1292 = vpop.xlane.xlu0 %1291
      %v1293 = vrcp.pop %v1292
      %v1294 = vmul.f32 %v1289, %v1293
      %v1295 = vpack.c.bf16 %v1294, %v1294
      %1296 = vrot.lane.b32.xlu0 %v1114, 48
      %v1297 = vpop.permute.xlu0 %1296
      %v1299 = vsel %vm665, %v1295, 0
      %v1302 = vand.u32 %v1297, %v672
      %1304 = vmatprep.subr.bf16.mxu0 0
      %1305 = vmatpush1.bf16.msra.mxu0 %v1302
      %1306 = vmatprep.subr.bf16.mxu0 0
      %1307 = vmatpush1.bf16.msra.mxu0 0
      %1308 = vmatprep.subr.bf16.mxu0 0
      %1309 = vmatpush1.bf16.msra.mxu0 0
      %1310 = vmatprep.subr.bf16.mxu0 0
      %1311 = vmatpush1.bf16.msra.mxu0 0
      %1312 = vmatprep.subr.bf16.mxu0 0
      %1313 = vmatpush1.bf16.msra.mxu0 0
      %1314 = vmatprep.subr.bf16.mxu0 0
      %1315 = vmatpush1.bf16.msra.mxu0 0
      %1316 = vmatprep.subr.bf16.mxu0 0
      %1317 = vmatpush1.bf16.msra.mxu0 0
      %1318 = vmatprep.subr.bf16.mxu0 0
      %1319 = vmatpush1.bf16.msra.mxu0 0
      %1320 = vmatprep.subr.bf16.mxu0 0
      %1321 = vmatpush1.bf16.msra.mxu0 0
      %1322 = vmatprep.subr.bf16.mxu0 0
      %1323 = vmatpush1.bf16.msra.mxu0 0
      %1324 = vmatprep.subr.bf16.mxu0 0
      %1325 = vmatpush1.bf16.msra.mxu0 0
      %1326 = vmatprep.subr.bf16.mxu0 0
      %1327 = vmatpush1.bf16.msra.mxu0 0
      %1328 = vmatprep.subr.bf16.mxu0 0
      %1329 = vmatpush1.bf16.msra.mxu0 0
      %1330 = vmatprep.subr.bf16.mxu0 0
      %1331 = vmatpush1.bf16.msra.mxu0 0
      %1332 = vmatprep.subr.bf16.mxu0 0
      %1333 = vmatpush1.bf16.msra.mxu0 0
      %1334 = vmatprep.subr.bf16.mxu0 0
      %1335 = vmatpush1.bf16.msra.mxu0 0
      %1336 = vmatprep.mubr.bf16.mxu0 0
      %1337 = vmatmul.mubr.bf16.gmra.mrb[0].mxu0 %v1299
      %v1338 = vpop.f32.mrb[0].mxu0
      %v1339 = vadd.f32 0.0, %v1338
      %v1340 = vpop.f32.mrb[0].mxu0
      %v1341 = vpop.f32.mrb[0].mxu0
      %v1342 = vpop.f32.mrb[0].mxu0
      %1343 = vdwg.mxu0
      %1345 = vrot.lane.b32.xlu0 %v1339, 16
      %v1346 = vpop.permute.xlu0 %1345
      %v1348 = vsel %vm599, %v1224, %v1346
      %v1349 = vpack.c.bf16 %v1348, %v1348
      %v1351 = vsel %vm551, %v1349, 0
      %1353 = vmatprep.subr.bf16.mxu0 0
      %1354 = vmatpush1.bf16.msra.mxu0 %v851
      %1355 = vmatprep.subr.bf16.mxu0 0
      %1356 = vmatpush1.bf16.msra.mxu0 %v852
      %1357 = vmatprep.subr.bf16.mxu0 0
      %1358 = vmatpush1.bf16.msra.mxu0 0
      %1359 = vmatprep.subr.bf16.mxu0 0
      %1360 = vmatpush1.bf16.msra.mxu0 0
      %1361 = vmatprep.subr.bf16.mxu0 0
      %1362 = vmatpush1.bf16.msra.mxu0 0
      %1363 = vmatprep.subr.bf16.mxu0 0
      %1364 = vmatpush1.bf16.msra.mxu0 0
      %1365 = vmatprep.subr.bf16.mxu0 0
      %1366 = vmatpush1.bf16.msra.mxu0 0
      %1367 = vmatprep.subr.bf16.mxu0 0
      %1368 = vmatpush1.bf16.msra.mxu0 0
      %1369 = vmatprep.subr.bf16.mxu0 0
      %1370 = vmatpush1.bf16.msra.mxu0 0
      %1371 = vmatprep.subr.bf16.mxu0 0
      %1372 = vmatpush1.bf16.msra.mxu0 0
      %1373 = vmatprep.subr.bf16.mxu0 0
      %1374 = vmatpush1.bf16.msra.mxu0 0
      %1375 = vmatprep.subr.bf16.mxu0 0
      %1376 = vmatpush1.bf16.msra.mxu0 0
      %1377 = vmatprep.subr.bf16.mxu0 0
      %1378 = vmatpush1.bf16.msra.mxu0 0
      %1379 = vmatprep.subr.bf16.mxu0 0
      %1380 = vmatpush1.bf16.msra.mxu0 0
      %1381 = vmatprep.subr.bf16.mxu0 0
      %1382 = vmatpush1.bf16.msra.mxu0 0
      %1383 = vmatprep.subr.bf16.mxu0 0
      %1384 = vmatpush1.bf16.msra.mxu0 0
      %1385 = vmatprep.mubr.bf16.mxu0 0
      %1386 = vmatmul.mubr.bf16.gmra.mrb[0].mxu0 %v1351
      %v1387 = vpop.f32.mrb[0].mxu0
      %v1388 = vadd.f32 %v841, %v1387
      %v1389 = vpop.f32.mrb[0].mxu0
      %v1390 = vpop.f32.mrb[0].mxu0
      %v1391 = vpop.f32.mrb[0].mxu0
      %1392 = vdwg.mxu0
      %v1393 = vadd.f32 %v1069, %v1388
      %v1394 = vmul.f32 %v1393, 0.999995
      %v1395 = vpack.c.bf16 %v1394, %v1394
      %v1397 = vsel %vm551, %v1395, 0
      %1399 = vmatprep.subr.bf16.mxu0 0
      %1400 = vmatpush1.bf16.msra.mxu0 %v915
      %1401 = vmatprep.subr.bf16.mxu0 0
      %1402 = vmatpush1.bf16.msra.mxu0 %v916
      %1403 = vmatprep.subr.bf16.mxu0 0
      %1404 = vmatpush1.bf16.msra.mxu0 0
      %1405 = vmatprep.subr.bf16.mxu0 0
      %1406 = vmatpush1.bf16.msra.mxu0 0
      %1407 = vmatprep.subr.bf16.mxu0 0
      %1408 = vmatpush1.bf16.msra.mxu0 0
      %1409 = vmatprep.subr.bf16.mxu0 0
      %1410 = vmatpush1.bf16.msra.mxu0 0
      %1411 = vmatprep.subr.bf16.mxu0 0
      %1412 = vmatpush1.bf16.msra.mxu0 0
      %1413 = vmatprep.subr.bf16.mxu0 0
      %1414 = vmatpush1.bf16.msra.mxu0 0
      %1415 = vmatprep.subr.bf16.mxu0 0
      %1416 = vmatpush1.bf16.msra.mxu0 0
      %1417 = vmatprep.subr.bf16.mxu0 0
      %1418 = vmatpush1.bf16.msra.mxu0 0
      %1419 = vmatprep.subr.bf16.mxu0 0
      %1420 = vmatpush1.bf16.msra.mxu0 0
      %1421 = vmatprep.subr.bf16.mxu0 0
      %1422 = vmatpush1.bf16.msra.mxu0 0
      %1423 = vmatprep.subr.bf16.mxu0 0
      %1424 = vmatpush1.bf16.msra.mxu0 0
      %1425 = vmatprep.subr.bf16.mxu0 0
      %1426 = vmatpush1.bf16.msra.mxu0 0
      %1427 = vmatprep.subr.bf16.mxu0 0
      %1428 = vmatpush1.bf16.msra.mxu0 0
      %1429 = vmatprep.subr.bf16.mxu0 0
      %1430 = vmatpush1.bf16.msra.mxu0 0
      %1431 = vmatprep.mubr.bf16.mxu0 0
      %1432 = vmatmul.mubr.bf16.gmra.mrb[0].mxu0 %v1397
      %v1433 = vpop.f32.mrb[0].mxu0
      %v1434 = vadd.f32 %v905, %v1433
      %v1435 = vpop.f32.mrb[0].mxu0
      %v1436 = vpop.f32.mrb[0].mxu0
      %v1437 = vpop.f32.mrb[0].mxu0
      %1438 = vdwg.mxu0
      %v1439 = vmul.f32 %v1434, 0.5
      %v1440 = vmul.f32 %v1434, 0.70710677
      %vm1441 = vcmp.ge.f32.partialorder %v1440, 0.0
      %v1442 = vsel %vm1441, 1.0, -1.0
      %v1443 = vand.u32 2147483647, %v1440
      %v1444 = vmul.f32 %v1443, 0.3275911
      %v1445 = vadd.f32 %v1444, 1.0
      %v1446 = vrcp.pop %v1445
      %v1447 = vmul.f32 1.0, %v1446
      %v1448 = vmul.f32 %v1447, 1.0614054
      %v1449 = vadd.f32 %v1448, -1.4531521
      %v1450 = vmul.f32 %v1449, %v1447
      %v1451 = vadd.f32 %v1450, 1.4214138
      %v1452 = vmul.f32 %v1451, %v1447
      %v1453 = vadd.f32 %v1452, -0.28449672
      %v1454 = vmul.f32 %v1453, %v1447
      %v1455 = vadd.f32 %v1454, 0.2548296
      %v1456 = vmul.f32 %v1455, %v1447
      %v1457 = vsub.f32 0.0, %v1443
      %v1458 = vmul.f32 %v1457, %v1443
      %v1459 = vmul.f32 %v1458, 1.442695
      %v1460 = vpow.pop %v1459
      %v1461 = vmul.f32 %v1456, %v1460
      %v1462 = vsub.f32 1.0, %v1461
      %v1463 = vmul.f32 %v1442, %v1462
      %v1464 = vadd.f32 %v1463, 1.0
      %v1465 = vmul.f32 %v1439, %v1464
      %v1466 = vpack.c.bf16 %v1465, %v1465
      %v1468 = vsel %vm1020, %v1466, 0
      %1470 = vmatprep.subr.bf16.mxu0 0
      %1471 = vmatpush1.bf16.msra.mxu0 %v1012
      %1472 = vmatprep.subr.bf16.mxu0 0
      %1473 = vmatpush1.bf16.msra.mxu0 %v1013
      %1474 = vmatprep.subr.bf16.mxu0 0
      %1475 = vmatpush1.bf16.msra.mxu0 %v1014
      %1476 = vmatprep.subr.bf16.mxu0 0
      %1477 = vmatpush1.bf16.msra.mxu0 %v1015
      %1478 = vmatprep.subr.bf16.mxu0 0
      %1479 = vmatpush1.bf16.msra.mxu0 0
      %1480 = vmatprep.subr.bf16.mxu0 0
      %1481 = vmatpush1.bf16.msra.mxu0 0
      %1482 = vmatprep.subr.bf16.mxu0 0
      %1483 = vmatpush1.bf16.msra.mxu0 0
      %1484 = vmatprep.subr.bf16.mxu0 0
      %1485 = vmatpush1.bf16.msra.mxu0 0
      %1486 = vmatprep.subr.bf16.mxu0 0
      %1487 = vmatpush1.bf16.msra.mxu0 0
      %1488 = vmatprep.subr.bf16.mxu0 0
      %1489 = vmatpush1.bf16.msra.mxu0 0
      %1490 = vmatprep.subr.bf16.mxu0 0
      %1491 = vmatpush1.bf16.msra.mxu0 0
      %1492 = vmatprep.subr.bf16.mxu0 0
      %1493 = vmatpush1.bf16.msra.mxu0 0
      %1494 = vmatprep.subr.bf16.mxu0 0
      %1495 = vmatpush1.bf16.msra.mxu0 0
      %1496 = vmatprep.subr.bf16.mxu0 0
      %1497 = vmatpush1.bf16.msra.mxu0 0
      %1498 = vmatprep.subr.bf16.mxu0 0
      %1499 = vmatpush1.bf16.msra.mxu0 0
      %1500 = vmatprep.subr.bf16.mxu0 0
      %1501 = vmatpush1.bf16.msra.mxu0 0
      %1502 = vmatprep.mubr.bf16.mxu0 0
      %1503 = vmatmul.mubr.bf16.gmra.mrb[0].mxu0 %v1468
      %v1504 = vpop.f32.mrb[0].mxu0
      %v1505 = vadd.f32 %v994, %v1504
      %v1506 = vpop.f32.mrb[0].mxu0
      %v1507 = vpop.f32.mrb[0].mxu0
      %v1508 = vpop.f32.mrb[0].mxu0
      %1509 = vdwg.mxu0
      %v1510 = vadd.f32 %v1394, %v1505
      %v1511 = vmul.f32 %v1510, 0.999995
      %1512 = vst.msk [vmem:[%s1068] sm:$0x1f] %vm1066, %v1511
      %s1513 = scalar_lea.vmem %s482, 16
      %v1514 = vld [vmem:[%s1513] sm:$0x1f]
      %v1515 = vpack.c.bf16 %v1514, %v1514
      %v1517 = vsel %vm551, %v1515, 0
      %1519 = vmatprep.subr.bf16.mxu0 0
      %1520 = vmatpush1.bf16.msra.mxu0 %v547
      %1521 = vmatprep.subr.bf16.mxu0 0
      %1522 = vmatpush1.bf16.msra.mxu0 %v548
      %1523 = vmatprep.subr.bf16.mxu0 0
      %1524 = vmatpush1.bf16.msra.mxu0 0
      %1525 = vmatprep.subr.bf16.mxu0 0
      %1526 = vmatpush1.bf16.msra.mxu0 0
      %1527 = vmatprep.subr.bf16.mxu0 0
      %1528 = vmatpush1.bf16.msra.mxu0 0
      %1529 = vmatprep.subr.bf16.mxu0 0
      %1530 = vmatpush1.bf16.msra.mxu0 0
      %1531 = vmatprep.subr.bf16.mxu0 0
      %1532 = vmatpush1.bf16.msra.mxu0 0
      %1533 = vmatprep.subr.bf16.mxu0 0
      %1534 = vmatpush1.bf16.msra.mxu0 0
      %1535 = vmatprep.subr.bf16.mxu0 0
      %1536 = vmatpush1.bf16.msra.mxu0 0
      %1537 = vmatprep.subr.bf16.mxu0 0
      %1538 = vmatpush1.bf16.msra.mxu0 0
      %1539 = vmatprep.subr.bf16.mxu0 0
      %1540 = vmatpush1.bf16.msra.mxu0 0
      %1541 = vmatprep.subr.bf16.mxu0 0
      %1542 = vmatpush1.bf16.msra.mxu0 0
      %1543 = vmatprep.subr.bf16.mxu0 0
      %1544 = vmatpush1.bf16.msra.mxu0 0
      %1545 = vmatprep.subr.bf16.mxu0 0
      %1546 = vmatpush1.bf16.msra.mxu0 0
      %1547 = vmatprep.subr.bf16.mxu0 0
      %1548 = vmatpush1.bf16.msra.mxu0 0
      %1549 = vmatprep.subr.bf16.mxu0 0
      %1550 = vmatpush1.bf16.msra.mxu0 0
      %1551 = vmatprep.mubr.bf16.mxu0 0
      %1552 = vmatmul.mubr.bf16.gmra.mrb[0].mxu0 %v1517
      %v1553 = vpop.f32.mrb[0].mxu0
      %v1554 = vadd.f32 %v537, %v1553
      %v1555 = vpop.f32.mrb[0].mxu0
      %v1556 = vpop.f32.mrb[0].mxu0
      %v1557 = vpop.f32.mrb[0].mxu0
      %1558 = vdwg.mxu0
      %v1559 = vpack.c.bf16 %v1554, %v1554
      %1561 = vrot.lane.b32.xlu0 %v1559, 96
      %v1562 = vpop.permute.xlu0 %1561
      %v1564 = vsel %vm599, %v1559, 0
      %v1567 = vsel %vm599, %v1562, 0
      %1569 = vmatprep.subr.bf16.mxu0 0
      %1570 = vmatpush1.bf16.xpose.msra.mxu0 %v1567
      %1571 = vmatprep.subr.bf16.mxu0 0
      %1572 = vmatpush1.bf16.xpose.msra.mxu0 0
      %1573 = vmatprep.subr.bf16.mxu0 0
      %1574 = vmatpush1.bf16.xpose.msra.mxu0 0
      %1575 = vmatprep.subr.bf16.mxu0 0
      %1576 = vmatpush1.bf16.xpose.msra.mxu0 0
      %1577 = vmatprep.subr.bf16.mxu0 0
      %1578 = vmatpush1.bf16.xpose.msra.mxu0 0
      %1579 = vmatprep.subr.bf16.mxu0 0
      %1580 = vmatpush1.bf16.xpose.msra.mxu0 0
      %1581 = vmatprep.subr.bf16.mxu0 0
      %1582 = vmatpush1.bf16.xpose.msra.mxu0 0
      %1583 = vmatprep.subr.bf16.mxu0 0
      %1584 = vmatpush1.bf16.xpose.msra.mxu0 0
      %1585 = vmatprep.subr.bf16.mxu0 0
      %1586 = vmatpush1.bf16.xpose.msra.mxu0 0
      %1587 = vmatprep.subr.bf16.mxu0 0
      %1588 = vmatpush1.bf16.xpose.msra.mxu0 0
      %1589 = vmatprep.subr.bf16.mxu0 0
      %1590 = vmatpush1.bf16.xpose.msra.mxu0 0
      %1591 = vmatprep.subr.bf16.mxu0 0
      %1592 = vmatpush1.bf16.xpose.msra.mxu0 0
      %1593 = vmatprep.subr.bf16.mxu0 0
      %1594 = vmatpush1.bf16.xpose.msra.mxu0 0
      %1595 = vmatprep.subr.bf16.mxu0 0
      %1596 = vmatpush1.bf16.xpose.msra.mxu0 0
      %1597 = vmatprep.subr.bf16.mxu0 0
      %1598 = vmatpush1.bf16.xpose.msra.mxu0 0
      %1599 = vmatprep.subr.bf16.mxu0 0
      %1600 = vmatpush1.bf16.xpose.msra.mxu0 0
      %1601 = vmatprep.mubr.bf16.mxu0 0
      %1602 = vmatmul.mubr.bf16.gmra.mrb[0].mxu0 %v1564
      %v1603 = vpop.f32.mrb[0].mxu0
      %v1604 = vadd.f32 0.0, %v1603
      %v1605 = vpop.f32.mrb[0].mxu0
      %v1606 = vpop.f32.mrb[0].mxu0
      %v1607 = vpop.f32.mrb[0].mxu0
      %1608 = vdwg.mxu0
      %v1609 = vmul.f32 %v1604, 0.25
      %s1610 = scalar_lea.vmem [#allocation2], 32
      %v1611 = vld [vmem:[%s1610] sm:$0x1f]
      %v1612 = vadd.f32 %v1609, %v1611
      %1613 = vst.msk [vmem:[%s1610] sm:$0x1f] %vm649, %v1612
      %v1614 = vsel %vm649, %v1612, -inf
      %1615 = vmax.xlane.f32.xlu0 %v1614
      %v1616 = vpop.xlane.xlu0 %1615
      %v1617 = vsub.f32 %v1612, %v1616
      %v1618 = vmul.f32 %v1617, 1.442695
      %v1619 = vpow.pop %v1618
      %v1620 = vsel %vm649, %v1619, 0.0
      %1621 = vadd.xlane.f32.xlu0 %v1620
      %v1622 = vpop.xlane.xlu0 %1621
      %v1623 = vrcp.pop %v1622
      %v1624 = vmul.f32 %v1619, %v1623
      %v1625 = vpack.c.bf16 %v1624, %v1624
      %1626 = vrot.lane.b32.xlu0 %v1559, 64
      %v1627 = vpop.permute.xlu0 %1626
      %v1629 = vsel %vm665, %v1625, 0
      %v1632 = vand.u32 %v1627, %v672
      %1634 = vmatprep.subr.bf16.mxu0 0
      %1635 = vmatpush1.bf16.msra.mxu0 %v1632
      %1636 = vmatprep.subr.bf16.mxu0 0
      %1637 = vmatpush1.bf16.msra.mxu0 0
      %1638 = vmatprep.subr.bf16.mxu0 0
      %1639 = vmatpush1.bf16.msra.mxu0 0
      %1640 = vmatprep.subr.bf16.mxu0 0
      %1641 = vmatpush1.bf16.msra.mxu0 0
      %1642 = vmatprep.subr.bf16.mxu0 0
      %1643 = vmatpush1.bf16.msra.mxu0 0
      %1644 = vmatprep.subr.bf16.mxu0 0
      %1645 = vmatpush1.bf16.msra.mxu0 0
      %1646 = vmatprep.subr.bf16.mxu0 0
      %1647 = vmatpush1.bf16.msra.mxu0 0
      %1648 = vmatprep.subr.bf16.mxu0 0
      %1649 = vmatpush1.bf16.msra.mxu0 0
      %1650 = vmatprep.subr.bf16.mxu0 0
      %1651 = vmatpush1.bf16.msra.mxu0 0
      %1652 = vmatprep.subr.bf16.mxu0 0
      %1653 = vmatpush1.bf16.msra.mxu0 0
      %1654 = vmatprep.subr.bf16.mxu0 0
      %1655 = vmatpush1.bf16.msra.mxu0 0
      %1656 = vmatprep.subr.bf16.mxu0 0
      %1657 = vmatpush1.bf16.msra.mxu0 0
      %1658 = vmatprep.subr.bf16.mxu0 0
      %1659 = vmatpush1.bf16.msra.mxu0 0
      %1660 = vmatprep.subr.bf16.mxu0 0
      %1661 = vmatpush1.bf16.msra.mxu0 0
      %1662 = vmatprep.subr.bf16.mxu0 0
      %1663 = vmatpush1.bf16.msra.mxu0 0
      %1664 = vmatprep.subr.bf16.mxu0 0
      %1665 = vmatpush1.bf16.msra.mxu0 0
      %1666 = vmatprep.mubr.bf16.mxu0 0
      %1667 = vmatmul.mubr.bf16.gmra.mrb[0].mxu0 %v1629
      %v1668 = vpop.f32.mrb[0].mxu0
      %v1669 = vadd.f32 0.0, %v1668
      %v1670 = vpop.f32.mrb[0].mxu0
      %v1671 = vpop.f32.mrb[0].mxu0
      %v1672 = vpop.f32.mrb[0].mxu0
      %1673 = vdwg.mxu0
      %1674 = vrot.lane.b32.xlu0 %v1559, 112
      %v1675 = vpop.permute.xlu0 %1674
      %1676 = vrot.lane.b32.xlu0 %v1559, 80
      %v1677 = vpop.permute.xlu0 %1676
      %v1679 = vsel %vm599, %v1675, 0
      %v1682 = vsel %vm599, %v1677, 0
      %1684 = vmatprep.subr.bf16.mxu0 0
      %1685 = vmatpush1.bf16.xpose.msra.mxu0 %v1682
      %1686 = vmatprep.subr.bf16.mxu0 0
      %1687 = vmatpush1.bf16.xpose.msra.mxu0 0
      %1688 = vmatprep.subr.bf16.mxu0 0
      %1689 = vmatpush1.bf16.xpose.msra.mxu0 0
      %1690 = vmatprep.subr.bf16.mxu0 0
      %1691 = vmatpush1.bf16.xpose.msra.mxu0 0
      %1692 = vmatprep.subr.bf16.mxu0 0
      %1693 = vmatpush1.bf16.xpose.msra.mxu0 0
      %1694 = vmatprep.subr.bf16.mxu0 0
      %1695 = vmatpush1.bf16.xpose.msra.mxu0 0
      %1696 = vmatprep.subr.bf16.mxu0 0
      %1697 = vmatpush1.bf16.xpose.msra.mxu0 0
      %1698 = vmatprep.subr.bf16.mxu0 0
      %1699 = vmatpush1.bf16.xpose.msra.mxu0 0
      %1700 = vmatprep.subr.bf16.mxu0 0
      %1701 = vmatpush1.bf16.xpose.msra.mxu0 0
      %1702 = vmatprep.subr.bf16.mxu0 0
      %1703 = vmatpush1.bf16.xpose.msra.mxu0 0
      %1704 = vmatprep.subr.bf16.mxu0 0
      %1705 = vmatpush1.bf16.xpose.msra.mxu0 0
      %1706 = vmatprep.subr.bf16.mxu0 0
      %1707 = vmatpush1.bf16.xpose.msra.mxu0 0
      %1708 = vmatprep.subr.bf16.mxu0 0
      %1709 = vmatpush1.bf16.xpose.msra.mxu0 0
      %1710 = vmatprep.subr.bf16.mxu0 0
      %1711 = vmatpush1.bf16.xpose.msra.mxu0 0
      %1712 = vmatprep.subr.bf16.mxu0 0
      %1713 = vmatpush1.bf16.xpose.msra.mxu0 0
      %1714 = vmatprep.subr.bf16.mxu0 0
      %1715 = vmatpush1.bf16.xpose.msra.mxu0 0
      %1716 = vmatprep.mubr.bf16.mxu0 0
      %1717 = vmatmul.mubr.bf16.gmra.mrb[0].mxu0 %v1679
      %v1718 = vpop.f32.mrb[0].mxu0
      %v1719 = vadd.f32 0.0, %v1718
      %v1720 = vpop.f32.mrb[0].mxu0
      %v1721 = vpop.f32.mrb[0].mxu0
      %v1722 = vpop.f32.mrb[0].mxu0
      %1723 = vdwg.mxu0
      %v1724 = vmul.f32 %v1719, 0.25
      %s1725 = scalar_lea.vmem [#allocation2], 40
      %v1726 = vld [vmem:[%s1725] sm:$0x1f]
      %v1727 = vadd.f32 %v1724, %v1726
      %1728 = vst.msk [vmem:[%s1725] sm:$0x1f] %vm649, %v1727
      %v1729 = vsel %vm649, %v1727, -inf
      %1730 = vmax.xlane.f32.xlu0 %v1729
      %v1731 = vpop.xlane.xlu0 %1730
      %v1732 = vsub.f32 %v1727, %v1731
      %v1733 = vmul.f32 %v1732, 1.442695
      %v1734 = vpow.pop %v1733
      %v1735 = vsel %vm649, %v1734, 0.0
      %1736 = vadd.xlane.f32.xlu0 %v1735
      %v1737 = vpop.xlane.xlu0 %1736
      %v1738 = vrcp.pop %v1737
      %v1739 = vmul.f32 %v1734, %v1738
      %v1740 = vpack.c.bf16 %v1739, %v1739
      %1741 = vrot.lane.b32.xlu0 %v1559, 48
      %v1742 = vpop.permute.xlu0 %1741
      %v1744 = vsel %vm665, %v1740, 0
      %v1747 = vand.u32 %v1742, %v672
      %1749 = vmatprep.subr.bf16.mxu0 0
      %1750 = vmatpush1.bf16.msra.mxu0 %v1747
      %1751 = vmatprep.subr.bf16.mxu0 0
      %1752 = vmatpush1.bf16.msra.mxu0 0
      %1753 = vmatprep.subr.bf16.mxu0 0
      %1754 = vmatpush1.bf16.msra.mxu0 0
      %1755 = vmatprep.subr.bf16.mxu0 0
      %1756 = vmatpush1.bf16.msra.mxu0 0
      %1757 = vmatprep.subr.bf16.mxu0 0
      %1758 = vmatpush1.bf16.msra.mxu0 0
      %1759 = vmatprep.subr.bf16.mxu0 0
      %1760 = vmatpush1.bf16.msra.mxu0 0
      %1761 = vmatprep.subr.bf16.mxu0 0
      %1762 = vmatpush1.bf16.msra.mxu0 0
      %1763 = vmatprep.subr.bf16.mxu0 0
      %1764 = vmatpush1.bf16.msra.mxu0 0
      %1765 = vmatprep.subr.bf16.mxu0 0
      %1766 = vmatpush1.bf16.msra.mxu0 0
      %1767 = vmatprep.subr.bf16.mxu0 0
      %1768 = vmatpush1.bf16.msra.mxu0 0
      %1769 = vmatprep.subr.bf16.mxu0 0
      %1770 = vmatpush1.bf16.msra.mxu0 0
      %1771 = vmatprep.subr.bf16.mxu0 0
      %1772 = vmatpush1.bf16.msra.mxu0 0
      %1773 = vmatprep.subr.bf16.mxu0 0
      %1774 = vmatpush1.bf16.msra.mxu0 0
      %1775 = vmatprep.subr.bf16.mxu0 0
      %1776 = vmatpush1.bf16.msra.mxu0 0
      %1777 = vmatprep.subr.bf16.mxu0 0
      %1778 = vmatpush1.bf16.msra.mxu0 0
      %1779 = vmatprep.subr.bf16.mxu0 0
      %1780 = vmatpush1.bf16.msra.mxu0 0
      %1781 = vmatprep.mubr.bf16.mxu0 0
      %1782 = vmatmul.mubr.bf16.gmra.mrb[0].mxu0 %v1744
      %v1783 = vpop.f32.mrb[0].mxu0
      %v1784 = vadd.f32 0.0, %v1783
      %v1785 = vpop.f32.mrb[0].mxu0
      %v1786 = vpop.f32.mrb[0].mxu0
      %v1787 = vpop.f32.mrb[0].mxu0
      %1788 = vdwg.mxu0
      %1790 = vrot.lane.b32.xlu0 %v1784, 16
      %v1791 = vpop.permute.xlu0 %1790
      %v1793 = vsel %vm599, %v1669, %v1791
      %v1794 = vpack.c.bf16 %v1793, %v1793
      %v1796 = vsel %vm551, %v1794, 0
      %1798 = vmatprep.subr.bf16.mxu0 0
      %1799 = vmatpush1.bf16.msra.mxu0 %v851
      %1800 = vmatprep.subr.bf16.mxu0 0
      %1801 = vmatpush1.bf16.msra.mxu0 %v852
      %1802 = vmatprep.subr.bf16.mxu0 0
      %1803 = vmatpush1.bf16.msra.mxu0 0
      %1804 = vmatprep.subr.bf16.mxu0 0
      %1805 = vmatpush1.bf16.msra.mxu0 0
      %1806 = vmatprep.subr.bf16.mxu0 0
      %1807 = vmatpush1.bf16.msra.mxu0 0
      %1808 = vmatprep.subr.bf16.mxu0 0
      %1809 = vmatpush1.bf16.msra.mxu0 0
      %1810 = vmatprep.subr.bf16.mxu0 0
      %1811 = vmatpush1.bf16.msra.mxu0 0
      %1812 = vmatprep.subr.bf16.mxu0 0
      %1813 = vmatpush1.bf16.msra.mxu0 0
      %1814 = vmatprep.subr.bf16.mxu0 0
      %1815 = vmatpush1.bf16.msra.mxu0 0
      %1816 = vmatprep.subr.bf16.mxu0 0
      %1817 = vmatpush1.bf16.msra.mxu0 0
      %1818 = vmatprep.subr.bf16.mxu0 0
      %1819 = vmatpush1.bf16.msra.mxu0 0
      %1820 = vmatprep.subr.bf16.mxu0 0
      %1821 = vmatpush1.bf16.msra.mxu0 0
      %1822 = vmatprep.subr.bf16.mxu0 0
      %1823 = vmatpush1.bf16.msra.mxu0 0
      %1824 = vmatprep.subr.bf16.mxu0 0
      %1825 = vmatpush1.bf16.msra.mxu0 0
      %1826 = vmatprep.subr.bf16.mxu0 0
      %1827 = vmatpush1.bf16.msra.mxu0 0
      %1828 = vmatprep.subr.bf16.mxu0 0
      %1829 = vmatpush1.bf16.msra.mxu0 0
      %1830 = vmatprep.mubr.bf16.mxu0 0
      %1831 = vmatmul.mubr.bf16.gmra.mrb[0].mxu0 %v1796
      %v1832 = vpop.f32.mrb[0].mxu0
      %v1833 = vadd.f32 %v841, %v1832
      %v1834 = vpop.f32.mrb[0].mxu0
      %v1835 = vpop.f32.mrb[0].mxu0
      %v1836 = vpop.f32.mrb[0].mxu0
      %1837 = vdwg.mxu0
      %v1838 = vadd.f32 %v1514, %v1833
      %v1839 = vmul.f32 %v1838, 0.999995
      %v1840 = vpack.c.bf16 %v1839, %v1839
      %v1842 = vsel %vm551, %v1840, 0
      %1844 = vmatprep.subr.bf16.mxu0 0
      %1845 = vmatpush1.bf16.msra.mxu0 %v915
      %1846 = vmatprep.subr.bf16.mxu0 0
      %1847 = vmatpush1.bf16.msra.mxu0 %v916
      %1848 = vmatprep.subr.bf16.mxu0 0
      %1849 = vmatpush1.bf16.msra.mxu0 0
      %1850 = vmatprep.subr.bf16.mxu0 0
      %1851 = vmatpush1.bf16.msra.mxu0 0
      %1852 = vmatprep.subr.bf16.mxu0 0
      %1853 = vmatpush1.bf16.msra.mxu0 0
      %1854 = vmatprep.subr.bf16.mxu0 0
      %1855 = vmatpush1.bf16.msra.mxu0 0
      %1856 = vmatprep.subr.bf16.mxu0 0
      %1857 = vmatpush1.bf16.msra.mxu0 0
      %1858 = vmatprep.subr.bf16.mxu0 0
      %1859 = vmatpush1.bf16.msra.mxu0 0
      %1860 = vmatprep.subr.bf16.mxu0 0
      %1861 = vmatpush1.bf16.msra.mxu0 0
      %1862 = vmatprep.subr.bf16.mxu0 0
      %1863 = vmatpush1.bf16.msra.mxu0 0
      %1864 = vmatprep.subr.bf16.mxu0 0
      %1865 = vmatpush1.bf16.msra.mxu0 0
      %1866 = vmatprep.subr.bf16.mxu0 0
      %1867 = vmatpush1.bf16.msra.mxu0 0
      %1868 = vmatprep.subr.bf16.mxu0 0
      %1869 = vmatpush1.bf16.msra.mxu0 0
      %1870 = vmatprep.subr.bf16.mxu0 0
      %1871 = vmatpush1.bf16.msra.mxu0 0
      %1872 = vmatprep.subr.bf16.mxu0 0
      %1873 = vmatpush1.bf16.msra.mxu0 0
      %1874 = vmatprep.subr.bf16.mxu0 0
      %1875 = vmatpush1.bf16.msra.mxu0 0
      %1876 = vmatprep.mubr.bf16.mxu0 0
      %1877 = vmatmul.mubr.bf16.gmra.mrb[0].mxu0 %v1842
      %v1878 = vpop.f32.mrb[0].mxu0
      %v1879 = vadd.f32 %v905, %v1878
      %v1880 = vpop.f32.mrb[0].mxu0
      %v1881 = vpop.f32.mrb[0].mxu0
      %v1882 = vpop.f32.mrb[0].mxu0
      %1883 = vdwg.mxu0
      %v1884 = vmul.f32 %v1879, 0.5
      %v1885 = vmul.f32 %v1879, 0.70710677
      %vm1886 = vcmp.ge.f32.partialorder %v1885, 0.0
      %v1887 = vsel %vm1886, 1.0, -1.0
      %v1888 = vand.u32 2147483647, %v1885
      %v1889 = vmul.f32 %v1888, 0.3275911
      %v1890 = vadd.f32 %v1889, 1.0
      %v1891 = vrcp.pop %v1890
      %v1892 = vmul.f32 1.0, %v1891
      %v1893 = vmul.f32 %v1892, 1.0614054
      %v1894 = vadd.f32 %v1893, -1.4531521
      %v1895 = vmul.f32 %v1894, %v1892
      %v1896 = vadd.f32 %v1895, 1.4214138
      %v1897 = vmul.f32 %v1896, %v1892
      %v1898 = vadd.f32 %v1897, -0.28449672
      %v1899 = vmul.f32 %v1898, %v1892
      %v1900 = vadd.f32 %v1899, 0.2548296
      %v1901 = vmul.f32 %v1900, %v1892
      %v1902 = vsub.f32 0.0, %v1888
      %v1903 = vmul.f32 %v1902, %v1888
      %v1904 = vmul.f32 %v1903, 1.442695
      %v1905 = vpow.pop %v1904
      %v1906 = vmul.f32 %v1901, %v1905
      %v1907 = vsub.f32 1.0, %v1906
      %v1908 = vmul.f32 %v1887, %v1907
      %v1909 = vadd.f32 %v1908, 1.0
      %v1910 = vmul.f32 %v1884, %v1909
      %v1911 = vpack.c.bf16 %v1910, %v1910
      %v1913 = vsel %vm1020, %v1911, 0
      %1915 = vmatprep.subr.bf16.mxu0 0
      %1916 = vmatpush1.bf16.msra.mxu0 %v1012
      %1917 = vmatprep.subr.bf16.mxu0 0
      %1918 = vmatpush1.bf16.msra.mxu0 %v1013
      %1919 = vmatprep.subr.bf16.mxu0 0
      %1920 = vmatpush1.bf16.msra.mxu0 %v1014
      %1921 = vmatprep.subr.bf16.mxu0 0
      %1922 = vmatpush1.bf16.msra.mxu0 %v1015
      %1923 = vmatprep.subr.bf16.mxu0 0
      %1924 = vmatpush1.bf16.msra.mxu0 0
      %1925 = vmatprep.subr.bf16.mxu0 0
      %1926 = vmatpush1.bf16.msra.mxu0 0
      %1927 = vmatprep.subr.bf16.mxu0 0
      %1928 = vmatpush1.bf16.msra.mxu0 0
      %1929 = vmatprep.subr.bf16.mxu0 0
      %1930 = vmatpush1.bf16.msra.mxu0 0
      %1931 = vmatprep.subr.bf16.mxu0 0
      %1932 = vmatpush1.bf16.msra.mxu0 0
      %1933 = vmatprep.subr.bf16.mxu0 0
      %1934 = vmatpush1.bf16.msra.mxu0 0
      %1935 = vmatprep.subr.bf16.mxu0 0
      %1936 = vmatpush1.bf16.msra.mxu0 0
      %1937 = vmatprep.subr.bf16.mxu0 0
      %1938 = vmatpush1.bf16.msra.mxu0 0
      %1939 = vmatprep.subr.bf16.mxu0 0
      %1940 = vmatpush1.bf16.msra.mxu0 0
      %1941 = vmatprep.subr.bf16.mxu0 0
      %1942 = vmatpush1.bf16.msra.mxu0 0
      %1943 = vmatprep.subr.bf16.mxu0 0
      %1944 = vmatpush1.bf16.msra.mxu0 0
      %1945 = vmatprep.subr.bf16.mxu0 0
      %1946 = vmatpush1.bf16.msra.mxu0 0
      %1947 = vmatprep.mubr.bf16.mxu0 0
      %1948 = vmatmul.mubr.bf16.gmra.mrb[0].mxu0 %v1913
      %v1949 = vpop.f32.mrb[0].mxu0
      %v1950 = vadd.f32 %v994, %v1949
      %v1951 = vpop.f32.mrb[0].mxu0
      %v1952 = vpop.f32.mrb[0].mxu0
      %v1953 = vpop.f32.mrb[0].mxu0
      %1954 = vdwg.mxu0
      %v1955 = vadd.f32 %v1839, %v1950
      %v1956 = vmul.f32 %v1955, 0.999995
      %1957 = vst.msk [vmem:[%s1513] sm:$0x1f] %vm1066, %v1956
      %s1958 = scalar_lea.vmem %s482, 24
      %v1959 = vld [vmem:[%s1958] sm:$0x1f]
      %v1960 = vpack.c.bf16 %v1959, %v1959
      %v1962 = vsel %vm551, %v1960, 0
      %1964 = vmatprep.subr.bf16.mxu0 0
      %1965 = vmatpush1.bf16.msra.mxu0 %v547
      %1966 = vmatprep.subr.bf16.mxu0 0
      %1967 = vmatpush1.bf16.msra.mxu0 %v548
      %1968 = vmatprep.subr.bf16.mxu0 0
      %1969 = vmatpush1.bf16.msra.mxu0 0
      %1970 = vmatprep.subr.bf16.mxu0 0
      %1971 = vmatpush1.bf16.msra.mxu0 0
      %1972 = vmatprep.subr.bf16.mxu0 0
      %1973 = vmatpush1.bf16.msra.mxu0 0
      %1974 = vmatprep.subr.bf16.mxu0 0
      %1975 = vmatpush1.bf16.msra.mxu0 0
      %1976 = vmatprep.subr.bf16.mxu0 0
      %1977 = vmatpush1.bf16.msra.mxu0 0
      %1978 = vmatprep.subr.bf16.mxu0 0
      %1979 = vmatpush1.bf16.msra.mxu0 0
      %1980 = vmatprep.subr.bf16.mxu0 0
      %1981 = vmatpush1.bf16.msra.mxu0 0
      %1982 = vmatprep.subr.bf16.mxu0 0
      %1983 = vmatpush1.bf16.msra.mxu0 0
      %1984 = vmatprep.subr.bf16.mxu0 0
      %1985 = vmatpush1.bf16.msra.mxu0 0
      %1986 = vmatprep.subr.bf16.mxu0 0
      %1987 = vmatpush1.bf16.msra.mxu0 0
      %1988 = vmatprep.subr.bf16.mxu0 0
      %1989 = vmatpush1.bf16.msra.mxu0 0
      %1990 = vmatprep.subr.bf16.mxu0 0
      %1991 = vmatpush1.bf16.msra.mxu0 0
      %1992 = vmatprep.subr.bf16.mxu0 0
      %1993 = vmatpush1.bf16.msra.mxu0 0
      %1994 = vmatprep.subr.bf16.mxu0 0
      %1995 = vmatpush1.bf16.msra.mxu0 0
      %1996 = vmatprep.mubr.bf16.mxu0 0
      %1997 = vmatmul.mubr.bf16.gmra.mrb[0].mxu0 %v1962
      %v1998 = vpop.f32.mrb[0].mxu0
      %v1999 = vadd.f32 %v537, %v1998
      %v2000 = vpop.f32.mrb[0].mxu0
      %v2001 = vpop.f32.mrb[0].mxu0
      %v2002 = vpop.f32.mrb[0].mxu0
      %2003 = vdwg.mxu0
      %v2004 = vpack.c.bf16 %v1999, %v1999
      %2006 = vrot.lane.b32.xlu0 %v2004, 96
      %v2007 = vpop.permute.xlu0 %2006
      %v2009 = vsel %vm599, %v2004, 0
      %v2012 = vsel %vm599, %v2007, 0
      %2014 = vmatprep.subr.bf16.mxu0 0
      %2015 = vmatpush1.bf16.xpose.msra.mxu0 %v2012
      %2016 = vmatprep.subr.bf16.mxu0 0
      %2017 = vmatpush1.bf16.xpose.msra.mxu0 0
      %2018 = vmatprep.subr.bf16.mxu0 0
      %2019 = vmatpush1.bf16.xpose.msra.mxu0 0
      %2020 = vmatprep.subr.bf16.mxu0 0
      %2021 = vmatpush1.bf16.xpose.msra.mxu0 0
      %2022 = vmatprep.subr.bf16.mxu0 0
      %2023 = vmatpush1.bf16.xpose.msra.mxu0 0
      %2024 = vmatprep.subr.bf16.mxu0 0
      %2025 = vmatpush1.bf16.xpose.msra.mxu0 0
      %2026 = vmatprep.subr.bf16.mxu0 0
      %2027 = vmatpush1.bf16.xpose.msra.mxu0 0
      %2028 = vmatprep.subr.bf16.mxu0 0
      %2029 = vmatpush1.bf16.xpose.msra.mxu0 0
      %2030 = vmatprep.subr.bf16.mxu0 0
      %2031 = vmatpush1.bf16.xpose.msra.mxu0 0
      %2032 = vmatprep.subr.bf16.mxu0 0
      %2033 = vmatpush1.bf16.xpose.msra.mxu0 0
      %2034 = vmatprep.subr.bf16.mxu0 0
      %2035 = vmatpush1.bf16.xpose.msra.mxu0 0
      %2036 = vmatprep.subr.bf16.mxu0 0
      %2037 = vmatpush1.bf16.xpose.msra.mxu0 0
      %2038 = vmatprep.subr.bf16.mxu0 0
      %2039 = vmatpush1.bf16.xpose.msra.mxu0 0
      %2040 = vmatprep.subr.bf16.mxu0 0
      %2041 = vmatpush1.bf16.xpose.msra.mxu0 0
      %2042 = vmatprep.subr.bf16.mxu0 0
      %2043 = vmatpush1.bf16.xpose.msra.mxu0 0
      %2044 = vmatprep.subr.bf16.mxu0 0
      %2045 = vmatpush1.bf16.xpose.msra.mxu0 0
      %2046 = vmatprep.mubr.bf16.mxu0 0
      %2047 = vmatmul.mubr.bf16.gmra.mrb[0].mxu0 %v2009
      %v2048 = vpop.f32.mrb[0].mxu0
      %v2049 = vadd.f32 0.0, %v2048
      %v2050 = vpop.f32.mrb[0].mxu0
      %v2051 = vpop.f32.mrb[0].mxu0
      %v2052 = vpop.f32.mrb[0].mxu0
      %2053 = vdwg.mxu0
      %v2054 = vmul.f32 %v2049, 0.25
      %s2055 = scalar_lea.vmem [#allocation2], 48
      %v2056 = vld [vmem:[%s2055] sm:$0x1f]
      %v2057 = vadd.f32 %v2054, %v2056
      %2058 = vst.msk [vmem:[%s2055] sm:$0x1f] %vm649, %v2057
      %v2059 = vsel %vm649, %v2057, -inf
      %2060 = vmax.xlane.f32.xlu0 %v2059
      %v2061 = vpop.xlane.xlu0 %2060
      %v2062 = vsub.f32 %v2057, %v2061
      %v2063 = vmul.f32 %v2062, 1.442695
      %v2064 = vpow.pop %v2063
      %v2065 = vsel %vm649, %v2064, 0.0
      %2066 = vadd.xlane.f32.xlu0 %v2065
      %v2067 = vpop.xlane.xlu0 %2066
      %v2068 = vrcp.pop %v2067
      %v2069 = vmul.f32 %v2064, %v2068
      %v2070 = vpack.c.bf16 %v2069, %v2069
      %2071 = vrot.lane.b32.xlu0 %v2004, 64
      %v2072 = vpop.permute.xlu0 %2071
      %v2074 = vsel %vm665, %v2070, 0
      %v2077 = vand.u32 %v2072, %v672
      %2079 = vmatprep.subr.bf16.mxu0 0
      %2080 = vmatpush1.bf16.msra.mxu0 %v2077
      %2081 = vmatprep.subr.bf16.mxu0 0
      %2082 = vmatpush1.bf16.msra.mxu0 0
      %2083 = vmatprep.subr.bf16.mxu0 0
      %2084 = vmatpush1.bf16.msra.mxu0 0
      %2085 = vmatprep.subr.bf16.mxu0 0
      %2086 = vmatpush1.bf16.msra.mxu0 0
      %2087 = vmatprep.subr.bf16.mxu0 0
      %2088 = vmatpush1.bf16.msra.mxu0 0
      %2089 = vmatprep.subr.bf16.mxu0 0
      %2090 = vmatpush1.bf16.msra.mxu0 0
      %2091 = vmatprep.subr.bf16.mxu0 0
      %2092 = vmatpush1.bf16.msra.mxu0 0
      %2093 = vmatprep.subr.bf16.mxu0 0
      %2094 = vmatpush1.bf16.msra.mxu0 0
      %2095 = vmatprep.subr.bf16.mxu0 0
      %2096 = vmatpush1.bf16.msra.mxu0 0
      %2097 = vmatprep.subr.bf16.mxu0 0
      %2098 = vmatpush1.bf16.msra.mxu0 0
      %2099 = vmatprep.subr.bf16.mxu0 0
      %2100 = vmatpush1.bf16.msra.mxu0 0
      %2101 = vmatprep.subr.bf16.mxu0 0
      %2102 = vmatpush1.bf16.msra.mxu0 0
      %2103 = vmatprep.subr.bf16.mxu0 0
      %2104 = vmatpush1.bf16.msra.mxu0 0
      %2105 = vmatprep.subr.bf16.mxu0 0
      %2106 = vmatpush1.bf16.msra.mxu0 0
      %2107 = vmatprep.subr.bf16.mxu0 0
      %2108 = vmatpush1.bf16.msra.mxu0 0
      %2109 = vmatprep.subr.bf16.mxu0 0
      %2110 = vmatpush1.bf16.msra.mxu0 0
      %2111 = vmatprep.mubr.bf16.mxu0 0
      %2112 = vmatmul.mubr.bf16.gmra.mrb[0].mxu0 %v2074
      %v2113 = vpop.f32.mrb[0].mxu0
      %v2114 = vadd.f32 0.0, %v2113
      %v2115 = vpop.f32.mrb[0].mxu0
      %v2116 = vpop.f32.mrb[0].mxu0
      %v2117 = vpop.f32.mrb[0].mxu0
      %2118 = vdwg.mxu0
      %2119 = vrot.lane.b32.xlu0 %v2004, 112
      %v2120 = vpop.permute.xlu0 %2119
      %2121 = vrot.lane.b32.xlu0 %v2004, 80
      %v2122 = vpop.permute.xlu0 %2121
      %v2124 = vsel %vm599, %v2120, 0
      %v2127 = vsel %vm599, %v2122, 0
      %2129 = vmatprep.subr.bf16.mxu0 0
      %2130 = vmatpush1.bf16.xpose.msra.mxu0 %v2127
      %2131 = vmatprep.subr.bf16.mxu0 0
      %2132 = vmatpush1.bf16.xpose.msra.mxu0 0
      %2133 = vmatprep.subr.bf16.mxu0 0
      %2134 = vmatpush1.bf16.xpose.msra.mxu0 0
      %2135 = vmatprep.subr.bf16.mxu0 0
      %2136 = vmatpush1.bf16.xpose.msra.mxu0 0
      %2137 = vmatprep.subr.bf16.mxu0 0
      %2138 = vmatpush1.bf16.xpose.msra.mxu0 0
      %2139 = vmatprep.subr.bf16.mxu0 0
      %2140 = vmatpush1.bf16.xpose.msra.mxu0 0
      %2141 = vmatprep.subr.bf16.mxu0 0
      %2142 = vmatpush1.bf16.xpose.msra.mxu0 0
      %2143 = vmatprep.subr.bf16.mxu0 0
      %2144 = vmatpush1.bf16.xpose.msra.mxu0 0
      %2145 = vmatprep.subr.bf16.mxu0 0
      %2146 = vmatpush1.bf16.xpose.msra.mxu0 0
      %2147 = vmatprep.subr.bf16.mxu0 0
      %2148 = vmatpush1.bf16.xpose.msra.mxu0 0
      %2149 = vmatprep.subr.bf16.mxu0 0
      %2150 = vmatpush1.bf16.xpose.msra.mxu0 0
      %2151 = vmatprep.subr.bf16.mxu0 0
      %2152 = vmatpush1.bf16.xpose.msra.mxu0 0
      %2153 = vmatprep.subr.bf16.mxu0 0
      %2154 = vmatpush1.bf16.xpose.msra.mxu0 0
      %2155 = vmatprep.subr.bf16.mxu0 0
      %2156 = vmatpush1.bf16.xpose.msra.mxu0 0
      %2157 = vmatprep.subr.bf16.mxu0 0
      %2158 = vmatpush1.bf16.xpose.msra.mxu0 0
      %2159 = vmatprep.subr.bf16.mxu0 0
      %2160 = vmatpush1.bf16.xpose.msra.mxu0 0
      %2161 = vmatprep.mubr.bf16.mxu0 0
      %2162 = vmatmul.mubr.bf16.gmra.mrb[0].mxu0 %v2124
      %v2163 = vpop.f32.mrb[0].mxu0
      %v2164 = vadd.f32 0.0, %v2163
      %v2165 = vpop.f32.mrb[0].mxu0
      %v2166 = vpop.f32.mrb[0].mxu0
      %v2167 = vpop.f32.mrb[0].mxu0
      %2168 = vdwg.mxu0
      %v2169 = vmul.f32 %v2164, 0.25
      %s2170 = scalar_lea.vmem [#allocation2], 56
      %v2171 = vld [vmem:[%s2170] sm:$0x1f]
      %v2172 = vadd.f32 %v2169, %v2171
      %2173 = vst.msk [vmem:[%s2170] sm:$0x1f] %vm649, %v2172
      %v2174 = vsel %vm649, %v2172, -inf
      %2175 = vmax.xlane.f32.xlu0 %v2174
      %v2176 = vpop.xlane.xlu0 %2175
      %v2177 = vsub.f32 %v2172, %v2176
      %v2178 = vmul.f32 %v2177, 1.442695
      %v2179 = vpow.pop %v2178
      %v2180 = vsel %vm649, %v2179, 0.0
      %2181 = vadd.xlane.f32.xlu0 %v2180
      %v2182 = vpop.xlane.xlu0 %2181
      %v2183 = vrcp.pop %v2182
      %v2184 = vmul.f32 %v2179, %v2183
      %v2185 = vpack.c.bf16 %v2184, %v2184
      %2186 = vrot.lane.b32.xlu0 %v2004, 48
      %v2187 = vpop.permute.xlu0 %2186
      %v2189 = vsel %vm665, %v2185, 0
      %v2192 = vand.u32 %v2187, %v672
      %2194 = vmatprep.subr.bf16.mxu0 0
      %2195 = vmatpush1.bf16.msra.mxu0 %v2192
      %2196 = vmatprep.subr.bf16.mxu0 0
      %2197 = vmatpush1.bf16.msra.mxu0 0
      %2198 = vmatprep.subr.bf16.mxu0 0
      %2199 = vmatpush1.bf16.msra.mxu0 0
      %2200 = vmatprep.subr.bf16.mxu0 0
      %2201 = vmatpush1.bf16.msra.mxu0 0
      %2202 = vmatprep.subr.bf16.mxu0 0
      %2203 = vmatpush1.bf16.msra.mxu0 0
      %2204 = vmatprep.subr.bf16.mxu0 0
      %2205 = vmatpush1.bf16.msra.mxu0 0
      %2206 = vmatprep.subr.bf16.mxu0 0
      %2207 = vmatpush1.bf16.msra.mxu0 0
      %2208 = vmatprep.subr.bf16.mxu0 0
      %2209 = vmatpush1.bf16.msra.mxu0 0
      %2210 = vmatprep.subr.bf16.mxu0 0
      %2211 = vmatpush1.bf16.msra.mxu0 0
      %2212 = vmatprep.subr.bf16.mxu0 0
      %2213 = vmatpush1.bf16.msra.mxu0 0
      %2214 = vmatprep.subr.bf16.mxu0 0
      %2215 = vmatpush1.bf16.msra.mxu0 0
      %2216 = vmatprep.subr.bf16.mxu0 0
      %2217 = vmatpush1.bf16.msra.mxu0 0
      %2218 = vmatprep.subr.bf16.mxu0 0
      %2219 = vmatpush1.bf16.msra.mxu0 0
      %2220 = vmatprep.subr.bf16.mxu0 0
      %2221 = vmatpush1.bf16.msra.mxu0 0
      %2222 = vmatprep.subr.bf16.mxu0 0
      %2223 = vmatpush1.bf16.msra.mxu0 0
      %2224 = vmatprep.subr.bf16.mxu0 0
      %2225 = vmatpush1.bf16.msra.mxu0 0
      %2226 = vmatprep.mubr.bf16.mxu0 0
      %2227 = vmatmul.mubr.bf16.gmra.mrb[0].mxu0 %v2189
      %v2228 = vpop.f32.mrb[0].mxu0
      %v2229 = vadd.f32 0.0, %v2228
      %v2230 = vpop.f32.mrb[0].mxu0
      %v2231 = vpop.f32.mrb[0].mxu0
      %v2232 = vpop.f32.mrb[0].mxu0
      %2233 = vdwg.mxu0
      %2235 = vrot.lane.b32.xlu0 %v2229, 16
      %v2236 = vpop.permute.xlu0 %2235
      %v2238 = vsel %vm599, %v2114, %v2236
      %v2239 = vpack.c.bf16 %v2238, %v2238
      %v2241 = vsel %vm551, %v2239, 0
      %2243 = vmatprep.subr.bf16.mxu0 0
      %2244 = vmatpush1.bf16.msra.mxu0 %v851
      %2245 = vmatprep.subr.bf16.mxu0 0
      %2246 = vmatpush1.bf16.msra.mxu0 %v852
      %2247 = vmatprep.subr.bf16.mxu0 0
      %2248 = vmatpush1.bf16.msra.mxu0 0
      %2249 = vmatprep.subr.bf16.mxu0 0
      %2250 = vmatpush1.bf16.msra.mxu0 0
      %2251 = vmatprep.subr.bf16.mxu0 0
      %2252 = vmatpush1.bf16.msra.mxu0 0
      %2253 = vmatprep.subr.bf16.mxu0 0
      %2254 = vmatpush1.bf16.msra.mxu0 0
      %2255 = vmatprep.subr.bf16.mxu0 0
      %2256 = vmatpush1.bf16.msra.mxu0 0
      %2257 = vmatprep.subr.bf16.mxu0 0
      %2258 = vmatpush1.bf16.msra.mxu0 0
      %2259 = vmatprep.subr.bf16.mxu0 0
      %2260 = vmatpush1.bf16.msra.mxu0 0
      %2261 = vmatprep.subr.bf16.mxu0 0
      %2262 = vmatpush1.bf16.msra.mxu0 0
      %2263 = vmatprep.subr.bf16.mxu0 0
      %2264 = vmatpush1.bf16.msra.mxu0 0
      %2265 = vmatprep.subr.bf16.mxu0 0
      %2266 = vmatpush1.bf16.msra.mxu0 0
      %2267 = vmatprep.subr.bf16.mxu0 0
      %2268 = vmatpush1.bf16.msra.mxu0 0
      %2269 = vmatprep.subr.bf16.mxu0 0
      %2270 = vmatpush1.bf16.msra.mxu0 0
      %2271 = vmatprep.subr.bf16.mxu0 0
      %2272 = vmatpush1.bf16.msra.mxu0 0
      %2273 = vmatprep.subr.bf16.mxu0 0
      %2274 = vmatpush1.bf16.msra.mxu0 0
      %2275 = vmatprep.mubr.bf16.mxu0 0
      %2276 = vmatmul.mubr.bf16.gmra.mrb[0].mxu0 %v2241
      %v2277 = vpop.f32.mrb[0].mxu0
      %v2278 = vadd.f32 %v841, %v2277
      %v2279 = vpop.f32.mrb[0].mxu0
      %v2280 = vpop.f32.mrb[0].mxu0
      %v2281 = vpop.f32.mrb[0].mxu0
      %2282 = vdwg.mxu0
      %v2283 = vadd.f32 %v1959, %v2278
      %v2284 = vmul.f32 %v2283, 0.999995
      %v2285 = vpack.c.bf16 %v2284, %v2284
      %v2287 = vsel %vm551, %v2285, 0
      %2289 = vmatprep.subr.bf16.mxu0 0
      %2290 = vmatpush1.bf16.msra.mxu0 %v915
      %2291 = vmatprep.subr.bf16.mxu0 0
      %2292 = vmatpush1.bf16.msra.mxu0 %v916
      %2293 = vmatprep.subr.bf16.mxu0 0
      %2294 = vmatpush1.bf16.msra.mxu0 0
      %2295 = vmatprep.subr.bf16.mxu0 0
      %2296 = vmatpush1.bf16.msra.mxu0 0
      %2297 = vmatprep.subr.bf16.mxu0 0
      %2298 = vmatpush1.bf16.msra.mxu0 0
      %2299 = vmatprep.subr.bf16.mxu0 0
      %2300 = vmatpush1.bf16.msra.mxu0 0
      %2301 = vmatprep.subr.bf16.mxu0 0
      %2302 = vmatpush1.bf16.msra.mxu0 0
      %2303 = vmatprep.subr.bf16.mxu0 0
      %2304 = vmatpush1.bf16.msra.mxu0 0
      %2305 = vmatprep.subr.bf16.mxu0 0
      %2306 = vmatpush1.bf16.msra.mxu0 0
      %2307 = vmatprep.subr.bf16.mxu0 0
      %2308 = vmatpush1.bf16.msra.mxu0 0
      %2309 = vmatprep.subr.bf16.mxu0 0
      %2310 = vmatpush1.bf16.msra.mxu0 0
      %2311 = vmatprep.subr.bf16.mxu0 0
      %2312 = vmatpush1.bf16.msra.mxu0 0
      %2313 = vmatprep.subr.bf16.mxu0 0
      %2314 = vmatpush1.bf16.msra.mxu0 0
      %2315 = vmatprep.subr.bf16.mxu0 0
      %2316 = vmatpush1.bf16.msra.mxu0 0
      %2317 = vmatprep.subr.bf16.mxu0 0
      %2318 = vmatpush1.bf16.msra.mxu0 0
      %2319 = vmatprep.subr.bf16.mxu0 0
      %2320 = vmatpush1.bf16.msra.mxu0 0
      %2321 = vmatprep.mubr.bf16.mxu0 0
      %2322 = vmatmul.mubr.bf16.gmra.mrb[0].mxu0 %v2287
      %v2323 = vpop.f32.mrb[0].mxu0
      %v2324 = vadd.f32 %v905, %v2323
      %v2325 = vpop.f32.mrb[0].mxu0
      %v2326 = vpop.f32.mrb[0].mxu0
      %v2327 = vpop.f32.mrb[0].mxu0
      %2328 = vdwg.mxu0
      %v2329 = vmul.f32 %v2324, 0.5
      %v2330 = vmul.f32 %v2324, 0.70710677
      %vm2331 = vcmp.ge.f32.partialorder %v2330, 0.0
      %v2332 = vsel %vm2331, 1.0, -1.0
      %v2333 = vand.u32 2147483647, %v2330
      %v2334 = vmul.f32 %v2333, 0.3275911
      %v2335 = vadd.f32 %v2334, 1.0
      %v2336 = vrcp.pop %v2335
      %v2337 = vmul.f32 1.0, %v2336
      %v2338 = vmul.f32 %v2337, 1.0614054
      %v2339 = vadd.f32 %v2338, -1.4531521
      %v2340 = vmul.f32 %v2339, %v2337
      %v2341 = vadd.f32 %v2340, 1.4214138
      %v2342 = vmul.f32 %v2341, %v2337
      %v2343 = vadd.f32 %v2342, -0.28449672
      %v2344 = vmul.f32 %v2343, %v2337
      %v2345 = vadd.f32 %v2344, 0.2548296
      %v2346 = vmul.f32 %v2345, %v2337
      %v2347 = vsub.f32 0.0, %v2333
      %v2348 = vmul.f32 %v2347, %v2333
      %v2349 = vmul.f32 %v2348, 1.442695
      %v2350 = vpow.pop %v2349
      %v2351 = vmul.f32 %v2346, %v2350
      %v2352 = vsub.f32 1.0, %v2351
      %v2353 = vmul.f32 %v2332, %v2352
      %v2354 = vadd.f32 %v2353, 1.0
      %v2355 = vmul.f32 %v2329, %v2354
      %v2356 = vpack.c.bf16 %v2355, %v2355
      %v2358 = vsel %vm1020, %v2356, 0
      %2360 = vmatprep.subr.bf16.mxu0 0
      %2361 = vmatpush1.bf16.msra.mxu0 %v1012
      %2362 = vmatprep.subr.bf16.mxu0 0
      %2363 = vmatpush1.bf16.msra.mxu0 %v1013
      %2364 = vmatprep.subr.bf16.mxu0 0
      %2365 = vmatpush1.bf16.msra.mxu0 %v1014
      %2366 = vmatprep.subr.bf16.mxu0 0
      %2367 = vmatpush1.bf16.msra.mxu0 %v1015
      %2368 = vmatprep.subr.bf16.mxu0 0
      %2369 = vmatpush1.bf16.msra.mxu0 0
      %2370 = vmatprep.subr.bf16.mxu0 0
      %2371 = vmatpush1.bf16.msra.mxu0 0
      %2372 = vmatprep.subr.bf16.mxu0 0
      %2373 = vmatpush1.bf16.msra.mxu0 0
      %2374 = vmatprep.subr.bf16.mxu0 0
      %2375 = vmatpush1.bf16.msra.mxu0 0
      %2376 = vmatprep.subr.bf16.mxu0 0
      %2377 = vmatpush1.bf16.msra.mxu0 0
      %2378 = vmatprep.subr.bf16.mxu0 0
      %2379 = vmatpush1.bf16.msra.mxu0 0
      %2380 = vmatprep.subr.bf16.mxu0 0
      %2381 = vmatpush1.bf16.msra.mxu0 0
      %2382 = vmatprep.subr.bf16.mxu0 0
      %2383 = vmatpush1.bf16.msra.mxu0 0
      %2384 = vmatprep.subr.bf16.mxu0 0
      %2385 = vmatpush1.bf16.msra.mxu0 0
      %2386 = vmatprep.subr.bf16.mxu0 0
      %2387 = vmatpush1.bf16.msra.mxu0 0
      %2388 = vmatprep.subr.bf16.mxu0 0
      %2389 = vmatpush1.bf16.msra.mxu0 0
      %2390 = vmatprep.subr.bf16.mxu0 0
      %2391 = vmatpush1.bf16.msra.mxu0 0
      %2392 = vmatprep.mubr.bf16.mxu0 0
      %2393 = vmatmul.mubr.bf16.gmra.mrb[0].mxu0 %v2358
      %v2394 = vpop.f32.mrb[0].mxu0
      %v2395 = vadd.f32 %v994, %v2394
      %v2396 = vpop.f32.mrb[0].mxu0
      %v2397 = vpop.f32.mrb[0].mxu0
      %v2398 = vpop.f32.mrb[0].mxu0
      %2399 = vdwg.mxu0
      %v2400 = vadd.f32 %v2284, %v2395
      %v2401 = vmul.f32 %v2400, 0.999995
      %2402 = vst.msk [vmem:[%s1958] sm:$0x1f] %vm1066, %v2401
      %s2403 = smul.u32 4, %s24
      %p2404 = scmp.lt.s32.totalorder %s2403, 7
      %s2405 = scalar_select %p2404, %s2403, 7
      %s2406 = smul.addr %s2405, 8
      %s2407 = scalar_lea.vmem %s9, %s2406
      // Predicated region
      $region61: #{seasonal_block_forward.4} parent=55 // pred_check
        %p2408 = pneg %p284
      $region62: #{seasonal_block_forward.4} parent=55 // pred_check_branch
        %2410 = sbr.rel (%p2408) target = $region64
      $region63: #{seasonal_block_forward.4} parent=55 // pred_region
        %s2411 = smul.u32 4, %s24
      $region64: #{seasonal_block_forward.4} parent=55 // pred_fallthru
        _
    $region56: #{seasonal_block_forward.4} parent=5 // pred_fallthru
      _
    %p2412 = scmp.le.s32.totalorder 2, %s15
    // Predicated region
    $region65: #{seasonal_block_forward.4} parent=5 // pred_check
      %p2413 = pneg %p2412
    $region66: #{seasonal_block_forward.4} parent=5 // pred_check_branch
      %2415 = sbr.rel (%p2413) target = $region68
    $region67: #{seasonal_block_forward.4} parent=5 // pred_region
      %s2416 = ssub.s32 %s15, 2
      // Predicated region
      $region69: #{seasonal_block_forward.4} parent=67 // pred_check
        %p2417 = pneg %p290
      $region70: #{seasonal_block_forward.4} parent=67 // pred_check_branch
        %2419 = sbr.rel (%p2417) target = $region72
      $region71: #{seasonal_block_forward.4} parent=67 // pred_region
        %s2420 = smul.u32 4, %s26
        %p2421 = scmp.lt.s32.totalorder %s2420, 7
        %s2422 = scalar_select %p2421, %s2420, 7
        %s2423 = smul.addr %s2422, 8
        %s2424 = scalar_lea.vmem %s9, %s2423
      $region72: #{seasonal_block_forward.4} parent=67 // pred_fallthru
        _
    $region68: #{seasonal_block_forward.4} parent=5 // pred_fallthru
      _
  $region6: #{seasonal_block_forward.4} parent=0 // loop_footer
    %s19 = sadd.s32 1, %s15
  $region7: #{seasonal_block_forward.4} parent=0 // loop_footer_branch
    %14 = sbr.rel target = $region3
  $region8: #{seasonal_block_forward.4} parent=0 // loop_exit
    _

</llo_original>
